<compile_context>
chip_gen: v7x
topology: tpu7x:2x2x1
jax: 0.10.0
libtpu: 0.0.40
codegen_flags: <defaults>
</compile_context>

<pallas_src>
import functools

import jax
import jax.numpy as jnp
import numpy as np
from jax import lax
from jax.experimental import pallas as pl
from jax.experimental.pallas import tpu as pltpu


# ----------------------------------------------------------------------------
# Trace-time constants (pack once, reuse for every forward).
# ----------------------------------------------------------------------------
@functools.lru_cache(maxsize=None)
def _dft2_blocks(H, W):
    """Per-plane 2-D rfft matrices: rows index (h, w), cols index (h', wr)."""
    Wr = W // 2 + 1
    hh = np.arange(H)
    ww = np.arange(W)
    wr = np.arange(Wr)
    ang = 2.0 * np.pi * (
        (hh[:, None, None, None] * hh[None, None, :, None]) / H
        + (ww[None, :, None, None] * wr[None, None, None, :]) / W)   # (H,W,H,Wr)
    cos = np.cos(ang).reshape(H * W, H * Wr).astype(np.float32)
    nsin = (-np.sin(ang)).reshape(H * W, H * Wr).astype(np.float32)
    return cos, nsin


def pack_params(params, x_shape, ksize=4, weight_dtype=jnp.bfloat16):
    """Fold gather + 2-D DFT + patch-conv + NCHW flatten + concat into constants.

    Independent of the batch size (only C, H, W matter).
    """
    _, C, H, W = x_shape
    k = ksize
    assert H % k == 0 and W % k == 0
    Wr = W // 2 + 1
    Hp, Wps, Wpf = H // k, W // k, (Wr - k) // k + 1
    conv_w = np.asarray(params["conv_w"], np.float32)               # (C*k*k, F)
    conv_b = np.asarray(params["conv_b"], np.float32).reshape(-1)   # (F,)
    F = conv_w.shape[1]
    Ds, Df = F * Hp * Wps, F * Hp * Wpf
    CHW, CHWr = C * H * W, C * H * Wr

    # 2-D rfft, block-diagonal over channels:  re = x_flat @ a1, im = x_flat @ a2.
    cos_blk, nsin_blk = _dft2_blocks(H, W)
    a1 = np.zeros((CHW, CHWr), np.float32)
    a2 = np.zeros((CHW, CHWr), np.float32)
    for c in range(C):
        a1[c * H * W:(c + 1) * H * W, c * H * Wr:(c + 1) * H * Wr] = cos_blk
        a2[c * H * W:(c + 1) * H * W, c * H * Wr:(c + 1) * H * Wr] = nsin_blk

    def conv_matrix(Win, Wp):
        # rows index (c, h, w) of a flattened (C, H, Win) plane; cols index the
        # channel-major NCHW flatten (f, ph, pw) of the (F, Hp, Wp) conv output.
        out = np.zeros((C * H * Win, F * Hp * Wp), np.float32)
        for c in range(C):
            for ph in range(Hp):
                for i in range(k):
                    h = ph * k + i
                    for pw in range(Wp):
                        for j in range(k):
                            w = pw * k + j
                            r = (c * H + h) * Win + w
                            out[r, ph * Wp + pw::Hp * Wp] = conv_w[(c * k + i) * k + j]
        return out

    w1 = np.asarray(params["w1"], np.float32)
    assert w1.shape[0] == Ds + Df
    wd = weight_dtype
    return dict(
        a1=jnp.asarray(a1), a2=jnp.asarray(a2),                       # f32 (precision-sensitive)
        ws=jnp.asarray(conv_matrix(W, Wps), dtype=wd),                # (CHW,  Ds)
        wf=jnp.asarray(conv_matrix(Wr, Wpf), dtype=wd),               # (CHWr, Df)
        bs=jnp.asarray(np.repeat(conv_b, Hp * Wps)[None, :]),         # (1, Ds) f32
        bf=jnp.asarray(np.repeat(conv_b, Hp * Wpf)[None, :]),         # (1, Df) f32
        w1s=jnp.asarray(w1[:Ds], dtype=wd),                           # (Ds, dim_in)
        w1f=jnp.asarray(w1[Ds:Ds + Df], dtype=wd),                    # (Df, dim_in)
        b1=jnp.asarray(params["b1"], jnp.float32),
        w2=jnp.asarray(params["w2"], dtype=wd),
        b2=jnp.asarray(params["b2"], jnp.float32),
    )


# ----------------------------------------------------------------------------
# The single fused kernel: ~7 wide MXU matmuls, everything lane-dense.
# ----------------------------------------------------------------------------
def _fused_kernel(x_ref, a1_ref, a2_ref, ws_ref, wf_ref, bs_ref, bf_ref,
                  w1s_ref, w1f_ref, b1_ref, w2_ref, b2_ref, o_ref):
    f32 = jnp.float32
    dot = functools.partial(jnp.dot, preferred_element_type=f32)

    x = x_ref[...]                                   # (BG, C*H*W) f32
    wd = ws_ref.dtype                                # bf16 (or f32) weight dtype

    # |rfft2(x)|: two wide f32 matmuls + one lane-dense elementwise sqrt.
    re = dot(x, a1_ref[...])                         # (BG, C*H*Wr)
    im = dot(x, a2_ref[...])
    mag = jnp.sqrt(re * re + im * im)                # f32 elementwise (v5e-friendly)

    # 4x4 / stride-4 patch conv + ReLU for both paths: one matmul each, output
    # lanes already in PyTorch's channel-major NCHW flatten order.
    zs = jnp.maximum(dot(x.astype(wd), ws_ref[...]) + bs_ref[...], 0.0)     # (BG, Ds)
    zf = jnp.maximum(dot(mag.astype(wd), wf_ref[...]) + bf_ref[...], 0.0)   # (BG, Df)

    # Head: Linear -> ReLU -> Linear; torch.cat is folded into the w1 split.
    h = dot(zs.astype(wd), w1s_ref[...]) + dot(zf.astype(wd), w1f_ref[...]) + b1_ref[...]
    h = jnp.maximum(h, 0.0)
    z = dot(h.astype(wd), w2_ref[...]) + b2_ref[...]                        # (BG, feat_dim)

    # F.normalize(p=2, dim=1, eps=1e-12): rsqrt on the squared norm (EUP slot).
    nsq = jnp.sum(z * z, axis=1, keepdims=True)
    o_ref[...] = z * lax.rsqrt(jnp.maximum(nsq, 1e-24))


def patchwise_detector_with_freq(x, packed, *, batch_tile=8):
    """Fused forward.  For large batches raise `batch_tile` toward 128/256."""
    B, C, H, W = x.shape
    CHW = C * H * W
    CHWr = packed["a1"].shape[1]
    Ds, Df = packed["ws"].shape[1], packed["wf"].shape[1]
    dim_in, feat_dim = packed["w2"].shape

    BG = batch_tile
    nb = -(-B // BG)
    Bp = nb * BG
    xflat = x.reshape(B, CHW)
    if Bp != B:
        xflat = jnp.pad(xflat, ((0, Bp - B), (0, 0)))

    def wspec(arr):  # weight: full-shape block, constant index map -> VMEM-resident
        return pl.BlockSpec(arr.shape, lambda i: (0, 0))

    weight_keys = ("a1", "a2", "ws", "wf", "bs", "bf", "w1s", "w1f", "b1", "w2", "b2")
    weight_bytes = sum(int(packed[k].size) * packed[k].dtype.itemsize for k in weight_keys)
    flops = 2 * Bp * (CHW * CHWr * 2 + CHW * Ds + CHWr * Df
                      + Ds * dim_in + Df * dim_in + dim_in * feat_dim)
    cost = pl.CostEstimate(
        flops=int(flops),
        transcendentals=int(Bp * (CHWr + 1)),
        bytes_accessed=int(weight_bytes + Bp * CHW * 4 + Bp * feat_dim * 4))

    out = pl.pallas_call(
        _fused_kernel,
        out_shape=jax.ShapeDtypeStruct((Bp, feat_dim), jnp.float32),
        grid=(nb,),
        in_specs=[pl.BlockSpec((BG, CHW), lambda i: (i, 0))]
                 + [wspec(packed[k]) for k in weight_keys],
        out_specs=pl.BlockSpec((BG, feat_dim), lambda i: (i, 0)),
        compiler_params=pltpu.CompilerParams(
            dimension_semantics=("parallel",),          # megacore split on v7x
            vmem_limit_bytes=32 * 1024 * 1024),          # fits v7x's 64 MiB easily
        cost_estimate=cost,
    )(xflat, *(packed[k] for k in weight_keys))
    return out[:B]


forward = jax.jit(patchwise_detector_with_freq, static_argnames=("batch_tile",))


# ----------------------------------------------------------------------------
# Parameter init (same stand-in backbone as before) + pure-JAX reference.
# ----------------------------------------------------------------------------
def init_params(key, in_ch=3, feat_ch=32, ksize=4, dim_in=768, feat_dim=128):
    ks = jax.random.split(key, 6)
    K = in_ch * ksize * ksize
    conv_w = 0.05 * jax.random.normal(ks[0], (K, feat_ch), jnp.float32)
    conv_b = 0.05 * jax.random.normal(ks[1], (1, feat_ch), jnp.float32)
    w1 = (1.0 / np.sqrt(dim_in)) * jax.random.normal(ks[2], (dim_in, dim_in), jnp.float32)
    b1 = 0.01 * jax.random.normal(ks[3], (1, dim_in), jnp.float32)
    w2 = (1.0 / np.sqrt(dim_in)) * jax.random.normal(ks[4], (dim_in, feat_dim), jnp.float32)
    b2 = 0.01 * jax.random.normal(ks[5], (1, feat_dim), jnp.float32)
    return dict(conv_w=conv_w, conv_b=conv_b, w1=w1, b1=b1, w2=w2, b2=b2)


def reference_forward(x, params, ksize=4):
    """Plain-JAX reference of the same forward (uses jnp.fft.rfft2)."""
    k = ksize
    F = params["conv_w"].shape[1]

    def feats(v):
        Bv, Cv, Hv, Wv = v.shape
        Hp, Wp = (Hv - k) // k + 1, (Wv - k) // k + 1
        vc = v[:, :, :Hp * k, :Wp * k].reshape(Bv, Cv, Hp, k, Wp, k)
        patches = jnp.transpose(vc, (0, 2, 4, 1, 3, 5)).reshape(Bv, Hp * Wp, Cv * k * k)
        y = jnp.maximum(patches @ params["conv_w"] + params["conv_b"], 0.0)
        return jnp.transpose(y, (0, 2, 1)).reshape(Bv, F * Hp * Wp)

    mag = jnp.abs(jnp.fft.rfft2(x))
    feat = jnp.concatenate([feats(x), feats(mag)], axis=1)
    h = jnp.maximum(feat @ params["w1"] + params["b1"], 0.0)
    z = h @ params["w2"] + params["b2"]
    nrm = jnp.sqrt(jnp.sum(z * z, axis=1, keepdims=True))
    return z / jnp.maximum(nrm, 1e-12)


# ----------------------------------------------------------------------------
if __name__ == "__main__":
    B, C, H, W = 16, 3, 16, 16                       # B=16 -> grid=(2,) of 8-row groups
    ksize, feat_ch, feat_dim = 4, 32, 128
    Hp, Wps = H // ksize, W // ksize
    Wr = W // 2 + 1
    Wpf = (Wr - ksize) // ksize + 1
    dim_in = feat_ch * Hp * Wps + feat_ch * Hp * Wpf               # = 768

    key = jax.random.PRNGKey(0)
    kx, kp = jax.random.split(key)
    x = jax.random.normal(kx, (B, C, H, W), jnp.float32)
    params = init_params(kp, in_ch=C, feat_ch=feat_ch, ksize=ksize,
                         dim_in=dim_in, feat_dim=feat_dim)
    ref = reference_forward(x, params, ksize=ksize)

    # Exact-math check: f32 weights, tight tolerance (validates the restructure).
    packed_f32 = pack_params(params, x.shape, ksize=ksize, weight_dtype=jnp.float32)
    out_f32 = jax.block_until_ready(forward(x, packed_f32))
    assert out_f32.shape == (B, feat_dim) and out_f32.dtype == jnp.float32
    np.testing.assert_allclose(np.asarray(out_f32), np.asarray(ref), rtol=2e-3, atol=2e-3)

    # Production config: bf16 weights (halves constant DMA, native MXU path);
    # looser tolerance accounts only for bf16 weight/activation quantization.
    packed = pack_params(params, x.shape, ksize=ksize, weight_dtype=jnp.bfloat16)
    out = jax.block_until_ready(forward(x, packed))
    assert out.shape == (B, feat_dim) and out.dtype == jnp.float32
    np.testing.assert_allclose(np.asarray(out), np.asarray(ref), rtol=1e-2, atol=1e-2)

    print("KERNEL_OK")
</pallas_src>

<mosaic_0001>
module attributes {stable_mosaic.version = 11 : i64} {
  func.func @_fused_kernel(%arg0: i32, %arg1: memref<8x768xf32, #tpu.memory_space<vmem>>, %arg2: memref<768x432xf32, #tpu.memory_space<vmem>>, %arg3: memref<768x432xf32, #tpu.memory_space<vmem>>, %arg4: memref<768x512xf32, #tpu.memory_space<vmem>>, %arg5: memref<432x256xf32, #tpu.memory_space<vmem>>, %arg6: memref<1x512xf32, #tpu.memory_space<vmem>>, %arg7: memref<1x256xf32, #tpu.memory_space<vmem>>, %arg8: memref<512x768xf32, #tpu.memory_space<vmem>>, %arg9: memref<256x768xf32, #tpu.memory_space<vmem>>, %arg10: memref<1x768xf32, #tpu.memory_space<vmem>>, %arg11: memref<768x128xf32, #tpu.memory_space<vmem>>, %arg12: memref<1x128xf32, #tpu.memory_space<vmem>>, %arg13: memref<8x128xf32, #tpu.memory_space<vmem>>) attributes {dimension_semantics = [#tpu.dimension_semantics<parallel>], iteration_bounds = array<i64: 2>, scalar_prefetch = 0 : i64, scratch_operands = 0 : i64, tpu.core_type = #tpu.core_type<tc>, window_params = [{transform_indices = @transform_0, window_bounds = array<i64: 8, 768>}, {pipeline_mode = #tpu.pipeline_mode<synchronous>, transform_indices = @transform_1, window_bounds = array<i64: 768, 432>}, {pipeline_mode = #tpu.pipeline_mode<synchronous>, transform_indices = @transform_2, window_bounds = array<i64: 768, 432>}, {pipeline_mode = #tpu.pipeline_mode<synchronous>, transform_indices = @transform_3, window_bounds = array<i64: 768, 512>}, {pipeline_mode = #tpu.pipeline_mode<synchronous>, transform_indices = @transform_4, window_bounds = array<i64: 432, 256>}, {pipeline_mode = #tpu.pipeline_mode<synchronous>, transform_indices = @transform_5, window_bounds = array<i64: 1, 512>}, {pipeline_mode = #tpu.pipeline_mode<synchronous>, transform_indices = @transform_6, window_bounds = array<i64: 1, 256>}, {pipeline_mode = #tpu.pipeline_mode<synchronous>, transform_indices = @transform_7, window_bounds = array<i64: 512, 768>}, {pipeline_mode = #tpu.pipeline_mode<synchronous>, transform_indices = @transform_8, window_bounds = array<i64: 256, 768>}, {pipeline_mode = #tpu.pipeline_mode<synchronous>, transform_indices = @transform_9, window_bounds = array<i64: 1, 768>}, {pipeline_mode = #tpu.pipeline_mode<synchronous>, transform_indices = @transform_10, window_bounds = array<i64: 768, 128>}, {pipeline_mode = #tpu.pipeline_mode<synchronous>, transform_indices = @transform_11, window_bounds = array<i64: 1, 128>}, {transform_indices = @transform_12, window_bounds = array<i64: 8, 128>}]} {
    %c0 = arith.constant 0 : index
    %c0_0 = arith.constant 0 : index
    %0 = vector.load %arg1[%c0, %c0_0] : memref<8x768xf32, #tpu.memory_space<vmem>>, vector<8x768xf32>
    %c0_1 = arith.constant 0 : index
    %c0_2 = arith.constant 0 : index
    %1 = vector.load %arg2[%c0_1, %c0_2] : memref<768x432xf32, #tpu.memory_space<vmem>>, vector<768x432xf32>
    %cst = arith.constant dense<0.000000e+00> : vector<8x432xf32>
    %2 = tpu.matmul %0, %1, %cst {dimension_numbers = #tpu.dot_dimension_numbers<[1], [0], [0], [1], [0, 0, 1, 1], [], []>} : vector<8x768xf32>, vector<768x432xf32>, vector<8x432xf32> -> vector<8x432xf32>
    %c0_3 = arith.constant 0 : index
    %c0_4 = arith.constant 0 : index
    %3 = vector.load %arg3[%c0_3, %c0_4] : memref<768x432xf32, #tpu.memory_space<vmem>>, vector<768x432xf32>
    %cst_5 = arith.constant dense<0.000000e+00> : vector<8x432xf32>
    %4 = tpu.matmul %0, %3, %cst_5 {dimension_numbers = #tpu.dot_dimension_numbers<[1], [0], [0], [1], [0, 0, 1, 1], [], []>} : vector<8x768xf32>, vector<768x432xf32>, vector<8x432xf32> -> vector<8x432xf32>
    %5 = arith.mulf %2, %2 : vector<8x432xf32>
    %6 = arith.mulf %4, %4 : vector<8x432xf32>
    %7 = arith.addf %5, %6 : vector<8x432xf32>
    %8 = math.sqrt %7 : vector<8x432xf32>
    %c0_6 = arith.constant 0 : index
    %c0_7 = arith.constant 0 : index
    %9 = vector.load %arg4[%c0_6, %c0_7] : memref<768x512xf32, #tpu.memory_space<vmem>>, vector<768x512xf32>
    %cst_8 = arith.constant dense<0.000000e+00> : vector<8x512xf32>
    %10 = tpu.matmul %0, %9, %cst_8 {dimension_numbers = #tpu.dot_dimension_numbers<[1], [0], [0], [1], [0, 0, 1, 1], [], []>} : vector<8x768xf32>, vector<768x512xf32>, vector<8x512xf32> -> vector<8x512xf32>
    %c0_9 = arith.constant 0 : index
    %c0_10 = arith.constant 0 : index
    %11 = vector.load %arg6[%c0_9, %c0_10] : memref<1x512xf32, #tpu.memory_space<vmem>>, vector<1x512xf32>
    %12 = vector.broadcast %11 : vector<1x512xf32> to vector<8x512xf32>
    %13 = arith.addf %10, %12 : vector<8x512xf32>
    %cst_11 = arith.constant 0.000000e+00 : f32
    %14 = vector.broadcast %cst_11 : f32 to vector<8x512xf32>
    %15 = arith.maximumf %13, %14 : vector<8x512xf32>
    %c0_12 = arith.constant 0 : index
    %c0_13 = arith.constant 0 : index
    %16 = vector.load %arg5[%c0_12, %c0_13] : memref<432x256xf32, #tpu.memory_space<vmem>>, vector<432x256xf32>
    %cst_14 = arith.constant dense<0.000000e+00> : vector<8x256xf32>
    %17 = tpu.matmul %8, %16, %cst_14 {dimension_numbers = #tpu.dot_dimension_numbers<[1], [0], [0], [1], [0, 0, 1, 1], [], []>} : vector<8x432xf32>, vector<432x256xf32>, vector<8x256xf32> -> vector<8x256xf32>
    %c0_15 = arith.constant 0 : index
    %c0_16 = arith.constant 0 : index
    %18 = vector.load %arg7[%c0_15, %c0_16] : memref<1x256xf32, #tpu.memory_space<vmem>>, vector<1x256xf32>
    %19 = vector.broadcast %18 : vector<1x256xf32> to vector<8x256xf32>
    %20 = arith.addf %17, %19 : vector<8x256xf32>
    %cst_17 = arith.constant 0.000000e+00 : f32
    %21 = vector.broadcast %cst_17 : f32 to vector<8x256xf32>
    %22 = arith.maximumf %20, %21 : vector<8x256xf32>
    %c0_18 = arith.constant 0 : index
    %c0_19 = arith.constant 0 : index
    %23 = vector.load %arg8[%c0_18, %c0_19] : memref<512x768xf32, #tpu.memory_space<vmem>>, vector<512x768xf32>
    %cst_20 = arith.constant dense<0.000000e+00> : vector<8x768xf32>
    %24 = tpu.matmul %15, %23, %cst_20 {dimension_numbers = #tpu.dot_dimension_numbers<[1], [0], [0], [1], [0, 0, 1, 1], [], []>} : vector<8x512xf32>, vector<512x768xf32>, vector<8x768xf32> -> vector<8x768xf32>
    %c0_21 = arith.constant 0 : index
    %c0_22 = arith.constant 0 : index
    %25 = vector.load %arg9[%c0_21, %c0_22] : memref<256x768xf32, #tpu.memory_space<vmem>>, vector<256x768xf32>
    %cst_23 = arith.constant dense<0.000000e+00> : vector<8x768xf32>
    %26 = tpu.matmul %22, %25, %cst_23 {dimension_numbers = #tpu.dot_dimension_numbers<[1], [0], [0], [1], [0, 0, 1, 1], [], []>} : vector<8x256xf32>, vector<256x768xf32>, vector<8x768xf32> -> vector<8x768xf32>
    %27 = arith.addf %24, %26 : vector<8x768xf32>
    %c0_24 = arith.constant 0 : index
    %c0_25 = arith.constant 0 : index
    %28 = vector.load %arg10[%c0_24, %c0_25] : memref<1x768xf32, #tpu.memory_space<vmem>>, vector<1x768xf32>
    %29 = vector.broadcast %28 : vector<1x768xf32> to vector<8x768xf32>
    %30 = arith.addf %27, %29 : vector<8x768xf32>
    %cst_26 = arith.constant 0.000000e+00 : f32
    %31 = vector.broadcast %cst_26 : f32 to vector<8x768xf32>
    %32 = arith.maximumf %30, %31 : vector<8x768xf32>
    %c0_27 = arith.constant 0 : index
    %c0_28 = arith.constant 0 : index
    %33 = vector.load %arg11[%c0_27, %c0_28] : memref<768x128xf32, #tpu.memory_space<vmem>>, vector<768x128xf32>
    %cst_29 = arith.constant dense<0.000000e+00> : vector<8x128xf32>
    %34 = tpu.matmul %32, %33, %cst_29 {dimension_numbers = #tpu.dot_dimension_numbers<[1], [0], [0], [1], [0, 0, 1, 1], [], []>} : vector<8x768xf32>, vector<768x128xf32>, vector<8x128xf32> -> vector<8x128xf32>
    %c0_30 = arith.constant 0 : index
    %c0_31 = arith.constant 0 : index
    %35 = vector.load %arg12[%c0_30, %c0_31] : memref<1x128xf32, #tpu.memory_space<vmem>>, vector<1x128xf32>
    %36 = vector.broadcast %35 : vector<1x128xf32> to vector<8x128xf32>
    %37 = arith.addf %34, %36 : vector<8x128xf32>
    %38 = arith.mulf %37, %37 : vector<8x128xf32>
    %cst_32 = arith.constant dense<0.000000e+00> : vector<8xf32>
    %39 = vector.multi_reduction <add>, %38, %cst_32 [1] : vector<8x128xf32> to vector<8xf32>
    %40 = vector.shape_cast %39 : vector<8xf32> to vector<8x1xf32>
    %cst_33 = arith.constant 1.000000e-24 : f32
    %41 = vector.broadcast %cst_33 : f32 to vector<8x1xf32>
    %42 = arith.maximumf %40, %41 : vector<8x1xf32>
    %43 = math.rsqrt %42 : vector<8x1xf32>
    %44 = vector.broadcast %43 : vector<8x1xf32> to vector<8x128xf32>
    %45 = arith.mulf %37, %44 : vector<8x128xf32>
    %c0_34 = arith.constant 0 : index
    %c0_35 = arith.constant 0 : index
    %46 = vector.load %arg13[%c0_34, %c0_35] : memref<8x128xf32, #tpu.memory_space<vmem>>, vector<8x128xf32>
    tpu.vector_store %arg13[%c0_34, %c0_35], %45 {strides = array<i32>} : memref<8x128xf32, #tpu.memory_space<vmem>>, vector<8x128xf32>,
    return
  }
  func.func @transform_0(%arg0: i32) -> (i32, i32) {
    %c0_i32 = arith.constant 0 : i32
    %c0_i32_0 = arith.constant 0 : i32
    return %arg0, %c0_i32 : i32, i32
  }
  func.func @transform_1(%arg0: i32) -> (i32, i32) {
    %c0_i32 = arith.constant 0 : i32
    %c0_i32_0 = arith.constant 0 : i32
    %c0_i32_1 = arith.constant 0 : i32
    return %c0_i32, %c0_i32_0 : i32, i32
  }
  func.func @transform_2(%arg0: i32) -> (i32, i32) {
    %c0_i32 = arith.constant 0 : i32
    %c0_i32_0 = arith.constant 0 : i32
    %c0_i32_1 = arith.constant 0 : i32
    return %c0_i32, %c0_i32_0 : i32, i32
  }
  func.func @transform_3(%arg0: i32) -> (i32, i32) {
    %c0_i32 = arith.constant 0 : i32
    %c0_i32_0 = arith.constant 0 : i32
    %c0_i32_1 = arith.constant 0 : i32
    return %c0_i32, %c0_i32_0 : i32, i32
  }
  func.func @transform_4(%arg0: i32) -> (i32, i32) {
    %c0_i32 = arith.constant 0 : i32
    %c0_i32_0 = arith.constant 0 : i32
    %c0_i32_1 = arith.constant 0 : i32
    return %c0_i32, %c0_i32_0 : i32, i32
  }
  func.func @transform_5(%arg0: i32) -> (i32, i32) {
    %c0_i32 = arith.constant 0 : i32
    %c0_i32_0 = arith.constant 0 : i32
    %c0_i32_1 = arith.constant 0 : i32
    return %c0_i32, %c0_i32_0 : i32, i32
  }
  func.func @transform_6(%arg0: i32) -> (i32, i32) {
    %c0_i32 = arith.constant 0 : i32
    %c0_i32_0 = arith.constant 0 : i32
    %c0_i32_1 = arith.constant 0 : i32
    return %c0_i32, %c0_i32_0 : i32, i32
  }
  func.func @transform_7(%arg0: i32) -> (i32, i32) {
    %c0_i32 = arith.constant 0 : i32
    %c0_i32_0 = arith.constant 0 : i32
    %c0_i32_1 = arith.constant 0 : i32
    return %c0_i32, %c0_i32_0 : i32, i32
  }
  func.func @transform_8(%arg0: i32) -> (i32, i32) {
    %c0_i32 = arith.constant 0 : i32
    %c0_i32_0 = arith.constant 0 : i32
    %c0_i32_1 = arith.constant 0 : i32
    return %c0_i32, %c0_i32_0 : i32, i32
  }
  func.func @transform_9(%arg0: i32) -> (i32, i32) {
    %c0_i32 = arith.constant 0 : i32
    %c0_i32_0 = arith.constant 0 : i32
    %c0_i32_1 = arith.constant 0 : i32
    return %c0_i32, %c0_i32_0 : i32, i32
  }
  func.func @transform_10(%arg0: i32) -> (i32, i32) {
    %c0_i32 = arith.constant 0 : i32
    %c0_i32_0 = arith.constant 0 : i32
    %c0_i32_1 = arith.constant 0 : i32
    return %c0_i32, %c0_i32_0 : i32, i32
  }
  func.func @transform_11(%arg0: i32) -> (i32, i32) {
    %c0_i32 = arith.constant 0 : i32
    %c0_i32_0 = arith.constant 0 : i32
    %c0_i32_1 = arith.constant 0 : i32
    return %c0_i32, %c0_i32_0 : i32, i32
  }
  func.func @transform_12(%arg0: i32) -> (i32, i32) {
    %c0_i32 = arith.constant 0 : i32
    %c0_i32_0 = arith.constant 0 : i32
    return %arg0, %c0_i32 : i32, i32
  }
}

</mosaic_0001>

<llo_original>
// kernel: patchwise_detector_with_freq.1
$region0: #{patchwise_detector_with_freq.1}
  #allocation0 [shape = 'u32[]', space=smem, size = 0x4, offset = 0x4, fixed_abs, tag = 'smem constant byte address 0x4 - core index']
  #allocation1 [shape = 'u32[144,128]{1,0:T(1,128)}', space=vmem, size = 0x12000, scoped, tag = 'internal scratch']
  %s0 = inlined_call_operand.vmem [shape: f32[16,768], index: 0, kind: input, shape index: {}]
  %s1 = inlined_call_operand.vmem [shape: f32[768,432], index: 1, kind: input, shape index: {}]
  %s2 = inlined_call_operand.vmem [shape: f32[768,432], index: 2, kind: input, shape index: {}]
  %s3 = inlined_call_operand.vmem [shape: f32[768,512], index: 3, kind: input, shape index: {}]
  %s4 = inlined_call_operand.vmem [shape: f32[432,256], index: 4, kind: input, shape index: {}]
  %s5 = inlined_call_operand.vmem [shape: f32[1,512], index: 5, kind: input, shape index: {}]
  %s6 = inlined_call_operand.vmem [shape: f32[1,256], index: 6, kind: input, shape index: {}]
  %s7 = inlined_call_operand.vmem [shape: f32[512,768], index: 7, kind: input, shape index: {}]
  %s8 = inlined_call_operand.vmem [shape: f32[256,768], index: 8, kind: input, shape index: {}]
  %s9 = inlined_call_operand.vmem [shape: f32[1,768], index: 9, kind: input, shape index: {}]
  %s10 = inlined_call_operand.vmem [shape: f32[768,128], index: 10, kind: input, shape index: {}]
  %s11 = inlined_call_operand.vmem [shape: f32[1,128], index: 11, kind: input, shape index: {}]
  %s12 = inlined_call_operand.hbm [shape: f32[16,128], index: 12, kind: output, shape index: {}]
  %s13 = sld [smem:[#allocation0]]
  $region81: #{patchwise_detector_with_freq.1} parent=0
    _
  %s15 = ssub.s32 1, %s13
  %s16 = scalar_select 0, %s15, %s13
  $region1: #{patchwise_detector_with_freq.1} parent=0
    #allocation2 [shape = 'u8[8192]{0}', space=vmem, size = 0x2000, scoped, tag = 'output window, operand 0']
    #allocation3 [shape = 's32[2]{0}', space=sflag, size = 0x8, scoped, tag = 'scoped memory for patchwise_detector_with_freq.1']
    %17 = vsyncpa [#allocation3], 0
    %s18 = scalar_lea.sflag [#allocation3], 1
    %19 = vsyncpa %s18, 0
    loop: start=0, step=1, limit=4
    $region2: #{patchwise_detector_with_freq.1} parent=1 // loop_pre_header
      _
    $region3: #{patchwise_detector_with_freq.1} parent=1 // loop_header
      %s21 = sphi 0, %s25
      %p22 = scmp.ge.s32.totalorder %s21, 4
      %s31 = sphi 0, %s33
      %s34 = sphi 0, %s31
      %s35 = sphi 0, %s34
      %s51 = sphi 0, %s35
      %s55 = sphi 0, %s55
      %s57 = sphi 0, %s55
      %s58 = sphi 0, %s57
      %s72 = sphi 0, %s58
      %s76 = sphi 0, %s76
      %s78 = sphi 0, %s76
      %s79 = sphi 0, %s78
      %s93 = sphi 0, %s79
      %s97 = sphi 0, %s97
      %s99 = sphi 0, %s97
      %s100 = sphi 0, %s99
      %s114 = sphi 0, %s100
      %s118 = sphi 0, %s118
      %s120 = sphi 0, %s118
      %s121 = sphi 0, %s120
      %s135 = sphi 0, %s121
      %s139 = sphi 0, %s139
      %s141 = sphi 0, %s139
      %s142 = sphi 0, %s141
      %s156 = sphi 0, %s142
      %s160 = sphi 0, %s160
      %s162 = sphi 0, %s160
      %s163 = sphi 0, %s162
      %s177 = sphi 0, %s163
      %s181 = sphi 0, %s181
      %s183 = sphi 0, %s181
      %s184 = sphi 0, %s183
      %s198 = sphi 0, %s184
      %s202 = sphi 0, %s202
      %s204 = sphi 0, %s202
      %s205 = sphi 0, %s204
      %s219 = sphi 0, %s205
      %s223 = sphi 0, %s223
      %s225 = sphi 0, %s223
      %s226 = sphi 0, %s225
      %s240 = sphi 0, %s226
      %s244 = sphi 0, %s244
      %s246 = sphi 0, %s244
      %s247 = sphi 0, %s246
      %s261 = sphi 0, %s247
      %s265 = sphi 0, %s265
      %s267 = sphi 0, %s265
      %s268 = sphi 0, %s267
      %s282 = sphi 0, %s268
      %s288 = sphi 0, %s290
      %s291 = sphi 0, %s288
      %s292 = sphi 0, %s291
      %s308 = sphi 0, %s292
    $region4: #{patchwise_detector_with_freq.1} parent=1 // loop_header_branch
      %24 = sbr.rel (%p22) target = $region8
    $region5: #{patchwise_detector_with_freq.1} parent=1 // loop_body
      %s26 = ssub.s32 %s21, 1
      %s27 = ssub.s32 %s21, 2
      %s28 = sadd.s32 %s21, 1
      %s29 = ssub.s32 %s21, %s28
      %p30 = scmp.eq.s32.totalorder %s29, 0
      %s32 = sadd.s32 %s31, 1
      %s33 = scalar_select %p30, %s31, %s32
      %p36 = pneg %p30
      %p37 = scmp.eq.s32.totalorder %s21, 1
      %p38 = por %p36, %p37
      %p39 = scmp.ne.s32.totalorder %s31, %s34
      %p40 = scmp.eq.s32.totalorder %s21, 0
      %p41 = por %p39, %p40
      %p42 = scmp.ne.s32.totalorder %s31, %s34
      %p43 = scmp.eq.s32.totalorder %s26, 1
      %p44 = por %p42, %p43
      %p45 = scmp.ne.s32.totalorder %s34, %s35
      %p46 = scmp.eq.s32.totalorder %s26, 0
      %p47 = por %p45, %p46
      %p48 = scmp.ne.s32.totalorder %s34, %s35
      %p49 = scmp.eq.s32.totalorder %s27, 1
      %p50 = por %p48, %p49
      %p52 = scmp.ne.s32.totalorder %s35, %s51
      %p53 = scmp.eq.s32.totalorder %s27, 0
      %p54 = por %p52, %p53
      %s56 = sadd.s32 %s55, 1
      %p59 = scmp.eq.s32.totalorder %s21, 1
      %p60 = scmp.ne.s32.totalorder %s55, %s57
      %p61 = scmp.eq.s32.totalorder %s21, 0
      %p62 = por %p60, %p61
      %p63 = scmp.ne.s32.totalorder %s55, %s57
      %p64 = scmp.eq.s32.totalorder %s26, 1
      %p65 = por %p63, %p64
      %p66 = scmp.ne.s32.totalorder %s57, %s58
      %p67 = scmp.eq.s32.totalorder %s26, 0
      %p68 = por %p66, %p67
      %p69 = scmp.ne.s32.totalorder %s57, %s58
      %p70 = scmp.eq.s32.totalorder %s27, 1
      %p71 = por %p69, %p70
      %p73 = scmp.ne.s32.totalorder %s58, %s72
      %p74 = scmp.eq.s32.totalorder %s27, 0
      %p75 = por %p73, %p74
      %s77 = sadd.s32 %s76, 1
      %p80 = scmp.eq.s32.totalorder %s21, 1
      %p81 = scmp.ne.s32.totalorder %s76, %s78
      %p82 = scmp.eq.s32.totalorder %s21, 0
      %p83 = por %p81, %p82
      %p84 = scmp.ne.s32.totalorder %s76, %s78
      %p85 = scmp.eq.s32.totalorder %s26, 1
      %p86 = por %p84, %p85
      %p87 = scmp.ne.s32.totalorder %s78, %s79
      %p88 = scmp.eq.s32.totalorder %s26, 0
      %p89 = por %p87, %p88
      %p90 = scmp.ne.s32.totalorder %s78, %s79
      %p91 = scmp.eq.s32.totalorder %s27, 1
      %p92 = por %p90, %p91
      %p94 = scmp.ne.s32.totalorder %s79, %s93
      %p95 = scmp.eq.s32.totalorder %s27, 0
      %p96 = por %p94, %p95
      %s98 = sadd.s32 %s97, 1
      %p101 = scmp.eq.s32.totalorder %s21, 1
      %p102 = scmp.ne.s32.totalorder %s97, %s99
      %p103 = scmp.eq.s32.totalorder %s21, 0
      %p104 = por %p102, %p103
      %p105 = scmp.ne.s32.totalorder %s97, %s99
      %p106 = scmp.eq.s32.totalorder %s26, 1
      %p107 = por %p105, %p106
      %p108 = scmp.ne.s32.totalorder %s99, %s100
      %p109 = scmp.eq.s32.totalorder %s26, 0
      %p110 = por %p108, %p109
      %p111 = scmp.ne.s32.totalorder %s99, %s100
      %p112 = scmp.eq.s32.totalorder %s27, 1
      %p113 = por %p111, %p112
      %p115 = scmp.ne.s32.totalorder %s100, %s114
      %p116 = scmp.eq.s32.totalorder %s27, 0
      %p117 = por %p115, %p116
      %s119 = sadd.s32 %s118, 1
      %p122 = scmp.eq.s32.totalorder %s21, 1
      %p123 = scmp.ne.s32.totalorder %s118, %s120
      %p124 = scmp.eq.s32.totalorder %s21, 0
      %p125 = por %p123, %p124
      %p126 = scmp.ne.s32.totalorder %s118, %s120
      %p127 = scmp.eq.s32.totalorder %s26, 1
      %p128 = por %p126, %p127
      %p129 = scmp.ne.s32.totalorder %s120, %s121
      %p130 = scmp.eq.s32.totalorder %s26, 0
      %p131 = por %p129, %p130
      %p132 = scmp.ne.s32.totalorder %s120, %s121
      %p133 = scmp.eq.s32.totalorder %s27, 1
      %p134 = por %p132, %p133
      %p136 = scmp.ne.s32.totalorder %s121, %s135
      %p137 = scmp.eq.s32.totalorder %s27, 0
      %p138 = por %p136, %p137
      %s140 = sadd.s32 %s139, 1
      %p143 = scmp.eq.s32.totalorder %s21, 1
      %p144 = scmp.ne.s32.totalorder %s139, %s141
      %p145 = scmp.eq.s32.totalorder %s21, 0
      %p146 = por %p144, %p145
      %p147 = scmp.ne.s32.totalorder %s139, %s141
      %p148 = scmp.eq.s32.totalorder %s26, 1
      %p149 = por %p147, %p148
      %p150 = scmp.ne.s32.totalorder %s141, %s142
      %p151 = scmp.eq.s32.totalorder %s26, 0
      %p152 = por %p150, %p151
      %p153 = scmp.ne.s32.totalorder %s141, %s142
      %p154 = scmp.eq.s32.totalorder %s27, 1
      %p155 = por %p153, %p154
      %p157 = scmp.ne.s32.totalorder %s142, %s156
      %p158 = scmp.eq.s32.totalorder %s27, 0
      %p159 = por %p157, %p158
      %s161 = sadd.s32 %s160, 1
      %p164 = scmp.eq.s32.totalorder %s21, 1
      %p165 = scmp.ne.s32.totalorder %s160, %s162
      %p166 = scmp.eq.s32.totalorder %s21, 0
      %p167 = por %p165, %p166
      %p168 = scmp.ne.s32.totalorder %s160, %s162
      %p169 = scmp.eq.s32.totalorder %s26, 1
      %p170 = por %p168, %p169
      %p171 = scmp.ne.s32.totalorder %s162, %s163
      %p172 = scmp.eq.s32.totalorder %s26, 0
      %p173 = por %p171, %p172
      %p174 = scmp.ne.s32.totalorder %s162, %s163
      %p175 = scmp.eq.s32.totalorder %s27, 1
      %p176 = por %p174, %p175
      %p178 = scmp.ne.s32.totalorder %s163, %s177
      %p179 = scmp.eq.s32.totalorder %s27, 0
      %p180 = por %p178, %p179
      %s182 = sadd.s32 %s181, 1
      %p185 = scmp.eq.s32.totalorder %s21, 1
      %p186 = scmp.ne.s32.totalorder %s181, %s183
      %p187 = scmp.eq.s32.totalorder %s21, 0
      %p188 = por %p186, %p187
      %p189 = scmp.ne.s32.totalorder %s181, %s183
      %p190 = scmp.eq.s32.totalorder %s26, 1
      %p191 = por %p189, %p190
      %p192 = scmp.ne.s32.totalorder %s183, %s184
      %p193 = scmp.eq.s32.totalorder %s26, 0
      %p194 = por %p192, %p193
      %p195 = scmp.ne.s32.totalorder %s183, %s184
      %p196 = scmp.eq.s32.totalorder %s27, 1
      %p197 = por %p195, %p196
      %p199 = scmp.ne.s32.totalorder %s184, %s198
      %p200 = scmp.eq.s32.totalorder %s27, 0
      %p201 = por %p199, %p200
      %s203 = sadd.s32 %s202, 1
      %p206 = scmp.eq.s32.totalorder %s21, 1
      %p207 = scmp.ne.s32.totalorder %s202, %s204
      %p208 = scmp.eq.s32.totalorder %s21, 0
      %p209 = por %p207, %p208
      %p210 = scmp.ne.s32.totalorder %s202, %s204
      %p211 = scmp.eq.s32.totalorder %s26, 1
      %p212 = por %p210, %p211
      %p213 = scmp.ne.s32.totalorder %s204, %s205
      %p214 = scmp.eq.s32.totalorder %s26, 0
      %p215 = por %p213, %p214
      %p216 = scmp.ne.s32.totalorder %s204, %s205
      %p217 = scmp.eq.s32.totalorder %s27, 1
      %p218 = por %p216, %p217
      %p220 = scmp.ne.s32.totalorder %s205, %s219
      %p221 = scmp.eq.s32.totalorder %s27, 0
      %p222 = por %p220, %p221
      %s224 = sadd.s32 %s223, 1
      %p227 = scmp.eq.s32.totalorder %s21, 1
      %p228 = scmp.ne.s32.totalorder %s223, %s225
      %p229 = scmp.eq.s32.totalorder %s21, 0
      %p230 = por %p228, %p229
      %p231 = scmp.ne.s32.totalorder %s223, %s225
      %p232 = scmp.eq.s32.totalorder %s26, 1
      %p233 = por %p231, %p232
      %p234 = scmp.ne.s32.totalorder %s225, %s226
      %p235 = scmp.eq.s32.totalorder %s26, 0
      %p236 = por %p234, %p235
      %p237 = scmp.ne.s32.totalorder %s225, %s226
      %p238 = scmp.eq.s32.totalorder %s27, 1
      %p239 = por %p237, %p238
      %p241 = scmp.ne.s32.totalorder %s226, %s240
      %p242 = scmp.eq.s32.totalorder %s27, 0
      %p243 = por %p241, %p242
      %s245 = sadd.s32 %s244, 1
      %p248 = scmp.eq.s32.totalorder %s21, 1
      %p249 = scmp.ne.s32.totalorder %s244, %s246
      %p250 = scmp.eq.s32.totalorder %s21, 0
      %p251 = por %p249, %p250
      %p252 = scmp.ne.s32.totalorder %s244, %s246
      %p253 = scmp.eq.s32.totalorder %s26, 1
      %p254 = por %p252, %p253
      %p255 = scmp.ne.s32.totalorder %s246, %s247
      %p256 = scmp.eq.s32.totalorder %s26, 0
      %p257 = por %p255, %p256
      %p258 = scmp.ne.s32.totalorder %s246, %s247
      %p259 = scmp.eq.s32.totalorder %s27, 1
      %p260 = por %p258, %p259
      %p262 = scmp.ne.s32.totalorder %s247, %s261
      %p263 = scmp.eq.s32.totalorder %s27, 0
      %p264 = por %p262, %p263
      %s266 = sadd.s32 %s265, 1
      %p269 = scmp.eq.s32.totalorder %s21, 1
      %p270 = scmp.ne.s32.totalorder %s265, %s267
      %p271 = scmp.eq.s32.totalorder %s21, 0
      %p272 = por %p270, %p271
      %p273 = scmp.ne.s32.totalorder %s265, %s267
      %p274 = scmp.eq.s32.totalorder %s26, 1
      %p275 = por %p273, %p274
      %p276 = scmp.ne.s32.totalorder %s267, %s268
      %p277 = scmp.eq.s32.totalorder %s26, 0
      %p278 = por %p276, %p277
      %p279 = scmp.ne.s32.totalorder %s267, %s268
      %p280 = scmp.eq.s32.totalorder %s27, 1
      %p281 = por %p279, %p280
      %p283 = scmp.ne.s32.totalorder %s268, %s282
      %p284 = scmp.eq.s32.totalorder %s27, 0
      %p285 = por %p283, %p284
      %s286 = ssub.s32 %s21, %s28
      %p287 = scmp.eq.s32.totalorder %s286, 0
      %s289 = sadd.s32 %s288, 1
      %s290 = scalar_select %p287, %s288, %s289
      %p293 = pneg %p287
      %p294 = scmp.eq.s32.totalorder %s21, 1
      %p295 = por %p293, %p294
      %p296 = scmp.ne.s32.totalorder %s288, %s291
      %p297 = scmp.eq.s32.totalorder %s21, 0
      %p298 = por %p296, %p297
      %p299 = scmp.ne.s32.totalorder %s288, %s291
      %p300 = scmp.eq.s32.totalorder %s26, 1
      %p301 = por %p299, %p300
      %p302 = scmp.ne.s32.totalorder %s291, %s292
      %p303 = scmp.eq.s32.totalorder %s26, 0
      %p304 = por %p302, %p303
      %p305 = scmp.ne.s32.totalorder %s291, %s292
      %p306 = scmp.eq.s32.totalorder %s27, 1
      %p307 = por %p305, %p306
      %p309 = scmp.ne.s32.totalorder %s292, %s308
      %p310 = scmp.eq.s32.totalorder %s27, 0
      %p311 = por %p309, %p310
      %p312 = scmp.le.s32.totalorder 1, %s21
      %p313 = scmp.lt.s32.totalorder %s21, 3
      %p314 = pnand %p312, %p313
      %p315 = pneg %p314
      // Predicated region
      $region9: #{patchwise_detector_with_freq.1} parent=5 // pred_check
        _
      $region10: #{patchwise_detector_with_freq.1} parent=5 // pred_check_branch
        %317 = sbr.rel (%p314) target = $region12
      $region11: #{patchwise_detector_with_freq.1} parent=5 // pred_region
        %s318 = ssub.s32 %s21, 1
        // Predicated region
        $region13: #{patchwise_detector_with_freq.1} parent=11 // pred_check
          %p319 = pneg %p68
        $region14: #{patchwise_detector_with_freq.1} parent=11 // pred_check_branch
          %321 = sbr.rel (%p319) target = $region16
        $region15: #{patchwise_detector_with_freq.1} parent=11 // pred_region
          _
        $region16: #{patchwise_detector_with_freq.1} parent=11 // pred_fallthru
          _
        // Predicated region
        $region17: #{patchwise_detector_with_freq.1} parent=11 // pred_check
          %p322 = pneg %p89
        $region18: #{patchwise_detector_with_freq.1} parent=11 // pred_check_branch
          %324 = sbr.rel (%p322) target = $region20
        $region19: #{patchwise_detector_with_freq.1} parent=11 // pred_region
          _
        $region20: #{patchwise_detector_with_freq.1} parent=11 // pred_fallthru
          _
        // Predicated region
        $region21: #{patchwise_detector_with_freq.1} parent=11 // pred_check
          %p325 = pneg %p110
        $region22: #{patchwise_detector_with_freq.1} parent=11 // pred_check_branch
          %327 = sbr.rel (%p325) target = $region24
        $region23: #{patchwise_detector_with_freq.1} parent=11 // pred_region
          _
        $region24: #{patchwise_detector_with_freq.1} parent=11 // pred_fallthru
          _
        // Predicated region
        $region25: #{patchwise_detector_with_freq.1} parent=11 // pred_check
          %p328 = pneg %p131
        $region26: #{patchwise_detector_with_freq.1} parent=11 // pred_check_branch
          %330 = sbr.rel (%p328) target = $region28
        $region27: #{patchwise_detector_with_freq.1} parent=11 // pred_region
          _
        $region28: #{patchwise_detector_with_freq.1} parent=11 // pred_fallthru
          _
        // Predicated region
        $region29: #{patchwise_detector_with_freq.1} parent=11 // pred_check
          %p331 = pneg %p152
        $region30: #{patchwise_detector_with_freq.1} parent=11 // pred_check_branch
          %333 = sbr.rel (%p331) target = $region32
        $region31: #{patchwise_detector_with_freq.1} parent=11 // pred_region
          _
        $region32: #{patchwise_detector_with_freq.1} parent=11 // pred_fallthru
          _
        // Predicated region
        $region33: #{patchwise_detector_with_freq.1} parent=11 // pred_check
          %p334 = pneg %p173
        $region34: #{patchwise_detector_with_freq.1} parent=11 // pred_check_branch
          %336 = sbr.rel (%p334) target = $region36
        $region35: #{patchwise_detector_with_freq.1} parent=11 // pred_region
          _
        $region36: #{patchwise_detector_with_freq.1} parent=11 // pred_fallthru
          _
        // Predicated region
        $region37: #{patchwise_detector_with_freq.1} parent=11 // pred_check
          %p337 = pneg %p194
        $region38: #{patchwise_detector_with_freq.1} parent=11 // pred_check_branch
          %339 = sbr.rel (%p337) target = $region40
        $region39: #{patchwise_detector_with_freq.1} parent=11 // pred_region
          _
        $region40: #{patchwise_detector_with_freq.1} parent=11 // pred_fallthru
          _
        // Predicated region
        $region41: #{patchwise_detector_with_freq.1} parent=11 // pred_check
          %p340 = pneg %p215
        $region42: #{patchwise_detector_with_freq.1} parent=11 // pred_check_branch
          %342 = sbr.rel (%p340) target = $region44
        $region43: #{patchwise_detector_with_freq.1} parent=11 // pred_region
          _
        $region44: #{patchwise_detector_with_freq.1} parent=11 // pred_fallthru
          _
        // Predicated region
        $region45: #{patchwise_detector_with_freq.1} parent=11 // pred_check
          %p343 = pneg %p236
        $region46: #{patchwise_detector_with_freq.1} parent=11 // pred_check_branch
          %345 = sbr.rel (%p343) target = $region48
        $region47: #{patchwise_detector_with_freq.1} parent=11 // pred_region
          _
        $region48: #{patchwise_detector_with_freq.1} parent=11 // pred_fallthru
          _
        // Predicated region
        $region49: #{patchwise_detector_with_freq.1} parent=11 // pred_check
          %p346 = pneg %p257
        $region50: #{patchwise_detector_with_freq.1} parent=11 // pred_check_branch
          %348 = sbr.rel (%p346) target = $region52
        $region51: #{patchwise_detector_with_freq.1} parent=11 // pred_region
          _
        $region52: #{patchwise_detector_with_freq.1} parent=11 // pred_fallthru
          _
        // Predicated region
        $region53: #{patchwise_detector_with_freq.1} parent=11 // pred_check
          %p349 = pneg %p278
        $region54: #{patchwise_detector_with_freq.1} parent=11 // pred_check_branch
          %351 = sbr.rel (%p349) target = $region56
        $region55: #{patchwise_detector_with_freq.1} parent=11 // pred_region
          _
        $region56: #{patchwise_detector_with_freq.1} parent=11 // pred_fallthru
          _
      $region12: #{patchwise_detector_with_freq.1} parent=5 // pred_fallthru
        _
      %p352 = scmp.lt.s32.totalorder %s21, 2
      // Predicated region
      $region57: #{patchwise_detector_with_freq.1} parent=5 // pred_check
        %p353 = pneg %p352
      $region58: #{patchwise_detector_with_freq.1} parent=5 // pred_check_branch
        %355 = sbr.rel (%p353) target = $region60
      $region59: #{patchwise_detector_with_freq.1} parent=5 // pred_region
        // Predicated region
        $region61: #{patchwise_detector_with_freq.1} parent=59 // pred_check
          %p356 = pneg %p41
        $region62: #{patchwise_detector_with_freq.1} parent=59 // pred_check_branch
          %358 = sbr.rel (%p356) target = $region64
        $region63: #{patchwise_detector_with_freq.1} parent=59 // pred_region
          %p359 = scmp.lt.s32.totalorder %s21, 1
          %s360 = scalar_select %p359, %s21, 1
          %s361 = smul.addr %s360, 6
          %s362 = smul.addr %s361, 8
          %s363 = scalar_lea.vmem %s0, %s362
        $region64: #{patchwise_detector_with_freq.1} parent=59 // pred_fallthru
          _
      $region60: #{patchwise_detector_with_freq.1} parent=5 // pred_fallthru
        _
      %p364 = scmp.le.s32.totalorder 1, %s21
      %p365 = scmp.lt.s32.totalorder %s21, 3
      %p366 = pnand %p364, %p365
      %p367 = pneg %p366
      // Predicated region
      $region65: #{patchwise_detector_with_freq.1} parent=5 // pred_check
        _
      $region66: #{patchwise_detector_with_freq.1} parent=5 // pred_check_branch
        %369 = sbr.rel (%p366) target = $region68
      $region67: #{patchwise_detector_with_freq.1} parent=5 // pred_region
        %s370 = ssub.s32 %s21, 1
        %p371 = scmp.lt.s32.totalorder %s26, 1
        %s372 = scalar_select %p371, %s26, 1
        %s373 = smul.addr %s372, 6
        %s374 = smul.addr %s373, 8
        %s375 = scalar_lea.vmem %s0, %s374
        %p376 = pneg %p47
        %p377 = pneg %p44
        %p378 = pneg %p68
        %p379 = pneg %p65
        %p380 = pneg %p89
        %p381 = pneg %p86
        %p382 = pneg %p110
        %p383 = pneg %p107
        %p384 = pneg %p131
        %p385 = pneg %p128
        %p386 = pneg %p152
        %p387 = pneg %p149
        %p388 = pneg %p173
        %p389 = pneg %p170
        %p390 = pneg %p194
        %p391 = pneg %p191
        %p392 = pneg %p215
        %p393 = pneg %p212
        %p394 = pneg %p236
        %p395 = pneg %p233
        %p396 = pneg %p257
        %p397 = pneg %p254
        %p398 = pneg %p278
        %p399 = pneg %p275
        %p400 = pneg %p304
        %p401 = pneg %p301
        %s402 = sand.u32 %s291, 1
        %s403 = scalar_lea.sflag [#allocation3], %s402
        %s404 = sand.u32 %s291, 1
        %s405 = smul.addr %s404, 8
        %s406 = scalar_lea.vmem [#allocation2], %s405
        %p407 = scmp.lt.s32.totalorder %s26, 1
        %s408 = scalar_select %p407, %s26, 1
        %s409 = smul.addr %s408, 6
        %s410 = smul.addr %s409, 8
        %s411 = scalar_lea.vmem %s0, %s410
        %v412 = vld [vmem:[%s411] sm:$0xff]
        %v413 = vld [vmem:[%s411 + $0x8] sm:$0xff]
        %v414 = vld [vmem:[%s411 + $0x10] sm:$0xff]
        %v415 = vld [vmem:[%s411 + $0x18] sm:$0xff]
        %v416 = vld [vmem:[%s411 + $0x20] sm:$0xff]
        %v417 = vld [vmem:[%s411 + $0x28] sm:$0xff]
        %v418 = vld [vmem:[%s1] sm:$0xff]
        %v419 = vld [vmem:[%s1 + $0x8] sm:$0xff]
        %v420 = vld [vmem:[%s1 + $0x10] sm:$0xff]
        %v421 = vld [vmem:[%s1 + $0x18] sm:$0xff]
        %v422 = vld [vmem:[%s1 + $0x20] sm:$0xff]
        %v423 = vld [vmem:[%s1 + $0x28] sm:$0xff]
        %v424 = vld [vmem:[%s1 + $0x30] sm:$0xff]
        %v425 = vld [vmem:[%s1 + $0x38] sm:$0xff]
        %v426 = vld [vmem:[%s1 + $0x40] sm:$0xff]
        %v427 = vld [vmem:[%s1 + $0x48] sm:$0xff]
        %v428 = vld [vmem:[%s1 + $0x50] sm:$0xff]
        %v429 = vld [vmem:[%s1 + $0x58] sm:$0xff]
        %v430 = vld [vmem:[%s1 + $0x60] sm:$0xff]
        %v431 = vld [vmem:[%s1 + $0x68] sm:$0xff]
        %v432 = vld [vmem:[%s1 + $0x70] sm:$0xff]
        %v433 = vld [vmem:[%s1 + $0x78] sm:$0xff]
        %v434 = vld [vmem:[%s1 + $0x80] sm:$0xff]
        %v435 = vld [vmem:[%s1 + $0x88] sm:$0xff]
        %v436 = vld [vmem:[%s1 + $0x90] sm:$0xff]
        %v437 = vld [vmem:[%s1 + $0x98] sm:$0xff]
        %v438 = vld [vmem:[%s1 + $0xa0] sm:$0xff]
        %v439 = vld [vmem:[%s1 + $0xa8] sm:$0xff]
        %v440 = vld [vmem:[%s1 + $0xb0] sm:$0xff]
        %v441 = vld [vmem:[%s1 + $0xb8] sm:$0xff]
        %v442 = vld [vmem:[%s1 + $0xc0] sm:$0xff]
        %v443 = vld [vmem:[%s1 + $0xc8] sm:$0xff]
        %v444 = vld [vmem:[%s1 + $0xd0] sm:$0xff]
        %v445 = vld [vmem:[%s1 + $0xd8] sm:$0xff]
        %v446 = vld [vmem:[%s1 + $0xe0] sm:$0xff]
        %v447 = vld [vmem:[%s1 + $0xe8] sm:$0xff]
        %v448 = vld [vmem:[%s1 + $0xf0] sm:$0xff]
        %v449 = vld [vmem:[%s1 + $0xf8] sm:$0xff]
        %v450 = vld [vmem:[%s1 + $0x100] sm:$0xff]
        %v451 = vld [vmem:[%s1 + $0x108] sm:$0xff]
        %v452 = vld [vmem:[%s1 + $0x110] sm:$0xff]
        %v453 = vld [vmem:[%s1 + $0x118] sm:$0xff]
        %v454 = vld [vmem:[%s1 + $0x120] sm:$0xff]
        %v455 = vld [vmem:[%s1 + $0x128] sm:$0xff]
        %v456 = vld [vmem:[%s1 + $0x130] sm:$0xff]
        %v457 = vld [vmem:[%s1 + $0x138] sm:$0xff]
        %v458 = vld [vmem:[%s1 + $0x140] sm:$0xff]
        %v459 = vld [vmem:[%s1 + $0x148] sm:$0xff]
        %v460 = vld [vmem:[%s1 + $0x150] sm:$0xff]
        %v461 = vld [vmem:[%s1 + $0x158] sm:$0xff]
        %v462 = vld [vmem:[%s1 + $0x160] sm:$0xff]
        %v463 = vld [vmem:[%s1 + $0x168] sm:$0xff]
        %v464 = vld [vmem:[%s1 + $0x170] sm:$0xff]
        %v465 = vld [vmem:[%s1 + $0x178] sm:$0xff]
        %v466 = vld [vmem:[%s1 + $0x180] sm:$0xff]
        %v467 = vld [vmem:[%s1 + $0x188] sm:$0xff]
        %v468 = vld [vmem:[%s1 + $0x190] sm:$0xff]
        %v469 = vld [vmem:[%s1 + $0x198] sm:$0xff]
        %v470 = vld [vmem:[%s1 + $0x1a0] sm:$0xff]
        %v471 = vld [vmem:[%s1 + $0x1a8] sm:$0xff]
        %v472 = vld [vmem:[%s1 + $0x1b0] sm:$0xff]
        %v473 = vld [vmem:[%s1 + $0x1b8] sm:$0xff]
        %v474 = vld [vmem:[%s1 + $0x1c0] sm:$0xff]
        %v475 = vld [vmem:[%s1 + $0x1c8] sm:$0xff]
        %v476 = vld [vmem:[%s1 + $0x1d0] sm:$0xff]
        %v477 = vld [vmem:[%s1 + $0x1d8] sm:$0xff]
        %v478 = vld [vmem:[%s1 + $0x1e0] sm:$0xff]
        %v479 = vld [vmem:[%s1 + $0x1e8] sm:$0xff]
        %v480 = vld [vmem:[%s1 + $0x1f0] sm:$0xff]
        %v481 = vld [vmem:[%s1 + $0x1f8] sm:$0xff]
        %v482 = vld [vmem:[%s1 + $0x200] sm:$0xff]
        %v483 = vld [vmem:[%s1 + $0x208] sm:$0xff]
        %v484 = vld [vmem:[%s1 + $0x210] sm:$0xff]
        %v485 = vld [vmem:[%s1 + $0x218] sm:$0xff]
        %v486 = vld [vmem:[%s1 + $0x220] sm:$0xff]
        %v487 = vld [vmem:[%s1 + $0x228] sm:$0xff]
        %v488 = vld [vmem:[%s1 + $0x230] sm:$0xff]
        %v489 = vld [vmem:[%s1 + $0x238] sm:$0xff]
        %v490 = vld [vmem:[%s1 + $0x240] sm:$0xff]
        %v491 = vld [vmem:[%s1 + $0x248] sm:$0xff]
        %v492 = vld [vmem:[%s1 + $0x250] sm:$0xff]
        %v493 = vld [vmem:[%s1 + $0x258] sm:$0xff]
        %v494 = vld [vmem:[%s1 + $0x260] sm:$0xff]
        %v495 = vld [vmem:[%s1 + $0x268] sm:$0xff]
        %v496 = vld [vmem:[%s1 + $0x270] sm:$0xff]
        %v497 = vld [vmem:[%s1 + $0x278] sm:$0xff]
        %v498 = vld [vmem:[%s1 + $0x280] sm:$0xff]
        %v499 = vld [vmem:[%s1 + $0x288] sm:$0xff]
        %v500 = vld [vmem:[%s1 + $0x290] sm:$0xff]
        %v501 = vld [vmem:[%s1 + $0x298] sm:$0xff]
        %v502 = vld [vmem:[%s1 + $0x2a0] sm:$0xff]
        %v503 = vld [vmem:[%s1 + $0x2a8] sm:$0xff]
        %v504 = vld [vmem:[%s1 + $0x2b0] sm:$0xff]
        %v505 = vld [vmem:[%s1 + $0x2b8] sm:$0xff]
        %v506 = vld [vmem:[%s1 + $0x2c0] sm:$0xff]
        %v507 = vld [vmem:[%s1 + $0x2c8] sm:$0xff]
        %v508 = vld [vmem:[%s1 + $0x2d0] sm:$0xff]
        %v509 = vld [vmem:[%s1 + $0x2d8] sm:$0xff]
        %v510 = vld [vmem:[%s1 + $0x2e0] sm:$0xff]
        %v511 = vld [vmem:[%s1 + $0x2e8] sm:$0xff]
        %v512 = vld [vmem:[%s1 + $0x2f0] sm:$0xff]
        %v513 = vld [vmem:[%s1 + $0x2f8] sm:$0xff]
        %v514 = vld [vmem:[%s1 + $0x300] sm:$0xff]
        %v515 = vld [vmem:[%s1 + $0x308] sm:$0xff]
        %v516 = vld [vmem:[%s1 + $0x310] sm:$0xff]
        %v517 = vld [vmem:[%s1 + $0x318] sm:$0xff]
        %v518 = vld [vmem:[%s1 + $0x320] sm:$0xff]
        %v519 = vld [vmem:[%s1 + $0x328] sm:$0xff]
        %v520 = vld [vmem:[%s1 + $0x330] sm:$0xff]
        %v521 = vld [vmem:[%s1 + $0x338] sm:$0xff]
        %v522 = vld [vmem:[%s1 + $0x340] sm:$0xff]
        %v523 = vld [vmem:[%s1 + $0x348] sm:$0xff]
        %v524 = vld [vmem:[%s1 + $0x350] sm:$0xff]
        %v525 = vld [vmem:[%s1 + $0x358] sm:$0xff]
        %v526 = vld [vmem:[%s1 + $0x360] sm:$0xff]
        %v527 = vld [vmem:[%s1 + $0x368] sm:$0xff]
        %v528 = vld [vmem:[%s1 + $0x370] sm:$0xff]
        %v529 = vld [vmem:[%s1 + $0x378] sm:$0xff]
        %v530 = vld [vmem:[%s1 + $0x380] sm:$0xff]
        %v531 = vld [vmem:[%s1 + $0x388] sm:$0xff]
        %v532 = vld [vmem:[%s1 + $0x390] sm:$0xff]
        %v533 = vld [vmem:[%s1 + $0x398] sm:$0xff]
        %v534 = vld [vmem:[%s1 + $0x3a0] sm:$0xff]
        %v535 = vld [vmem:[%s1 + $0x3a8] sm:$0xff]
        %v536 = vld [vmem:[%s1 + $0x3b0] sm:$0xff]
        %v537 = vld [vmem:[%s1 + $0x3b8] sm:$0xff]
        %v538 = vld [vmem:[%s1 + $0x3c0] sm:$0xff]
        %v539 = vld [vmem:[%s1 + $0x3c8] sm:$0xff]
        %v540 = vld [vmem:[%s1 + $0x3d0] sm:$0xff]
        %v541 = vld [vmem:[%s1 + $0x3d8] sm:$0xff]
        %v542 = vld [vmem:[%s1 + $0x3e0] sm:$0xff]
        %v543 = vld [vmem:[%s1 + $0x3e8] sm:$0xff]
        %v544 = vld [vmem:[%s1 + $0x3f0] sm:$0xff]
        %v545 = vld [vmem:[%s1 + $0x3f8] sm:$0xff]
        %v546 = vld [vmem:[%s1 + $0x400] sm:$0xff]
        %v547 = vld [vmem:[%s1 + $0x408] sm:$0xff]
        %v548 = vld [vmem:[%s1 + $0x410] sm:$0xff]
        %v549 = vld [vmem:[%s1 + $0x418] sm:$0xff]
        %v550 = vld [vmem:[%s1 + $0x420] sm:$0xff]
        %v551 = vld [vmem:[%s1 + $0x428] sm:$0xff]
        %v552 = vld [vmem:[%s1 + $0x430] sm:$0xff]
        %v553 = vld [vmem:[%s1 + $0x438] sm:$0xff]
        %v554 = vld [vmem:[%s1 + $0x440] sm:$0xff]
        %v555 = vld [vmem:[%s1 + $0x448] sm:$0xff]
        %v556 = vld [vmem:[%s1 + $0x450] sm:$0xff]
        %v557 = vld [vmem:[%s1 + $0x458] sm:$0xff]
        %v558 = vld [vmem:[%s1 + $0x460] sm:$0xff]
        %v559 = vld [vmem:[%s1 + $0x468] sm:$0xff]
        %v560 = vld [vmem:[%s1 + $0x470] sm:$0xff]
        %v561 = vld [vmem:[%s1 + $0x478] sm:$0xff]
        %v562 = vld [vmem:[%s1 + $0x480] sm:$0xff]
        %v563 = vld [vmem:[%s1 + $0x488] sm:$0xff]
        %v564 = vld [vmem:[%s1 + $0x490] sm:$0xff]
        %v565 = vld [vmem:[%s1 + $0x498] sm:$0xff]
        %v566 = vld [vmem:[%s1 + $0x4a0] sm:$0xff]
        %v567 = vld [vmem:[%s1 + $0x4a8] sm:$0xff]
        %v568 = vld [vmem:[%s1 + $0x4b0] sm:$0xff]
        %v569 = vld [vmem:[%s1 + $0x4b8] sm:$0xff]
        %v570 = vld [vmem:[%s1 + $0x4c0] sm:$0xff]
        %v571 = vld [vmem:[%s1 + $0x4c8] sm:$0xff]
        %v572 = vld [vmem:[%s1 + $0x4d0] sm:$0xff]
        %v573 = vld [vmem:[%s1 + $0x4d8] sm:$0xff]
        %v574 = vld [vmem:[%s1 + $0x4e0] sm:$0xff]
        %v575 = vld [vmem:[%s1 + $0x4e8] sm:$0xff]
        %v576 = vld [vmem:[%s1 + $0x4f0] sm:$0xff]
        %v577 = vld [vmem:[%s1 + $0x4f8] sm:$0xff]
        %v578 = vld [vmem:[%s1 + $0x500] sm:$0xff]
        %v579 = vld [vmem:[%s1 + $0x508] sm:$0xff]
        %v580 = vld [vmem:[%s1 + $0x510] sm:$0xff]
        %v581 = vld [vmem:[%s1 + $0x518] sm:$0xff]
        %v582 = vld [vmem:[%s1 + $0x520] sm:$0xff]
        %v583 = vld [vmem:[%s1 + $0x528] sm:$0xff]
        %v584 = vld [vmem:[%s1 + $0x530] sm:$0xff]
        %v585 = vld [vmem:[%s1 + $0x538] sm:$0xff]
        %v586 = vld [vmem:[%s1 + $0x540] sm:$0xff]
        %v587 = vld [vmem:[%s1 + $0x548] sm:$0xff]
        %v588 = vld [vmem:[%s1 + $0x550] sm:$0xff]
        %v589 = vld [vmem:[%s1 + $0x558] sm:$0xff]
        %v590 = vld [vmem:[%s1 + $0x560] sm:$0xff]
        %v591 = vld [vmem:[%s1 + $0x568] sm:$0xff]
        %v592 = vld [vmem:[%s1 + $0x570] sm:$0xff]
        %v593 = vld [vmem:[%s1 + $0x578] sm:$0xff]
        %v594 = vld [vmem:[%s1 + $0x580] sm:$0xff]
        %v595 = vld [vmem:[%s1 + $0x588] sm:$0xff]
        %v596 = vld [vmem:[%s1 + $0x590] sm:$0xff]
        %v597 = vld [vmem:[%s1 + $0x598] sm:$0xff]
        %v598 = vld [vmem:[%s1 + $0x5a0] sm:$0xff]
        %v599 = vld [vmem:[%s1 + $0x5a8] sm:$0xff]
        %v600 = vld [vmem:[%s1 + $0x5b0] sm:$0xff]
        %v601 = vld [vmem:[%s1 + $0x5b8] sm:$0xff]
        %v602 = vld [vmem:[%s1 + $0x5c0] sm:$0xff]
        %v603 = vld [vmem:[%s1 + $0x5c8] sm:$0xff]
        %v604 = vld [vmem:[%s1 + $0x5d0] sm:$0xff]
        %v605 = vld [vmem:[%s1 + $0x5d8] sm:$0xff]
        %v606 = vld [vmem:[%s1 + $0x5e0] sm:$0xff]
        %v607 = vld [vmem:[%s1 + $0x5e8] sm:$0xff]
        %v608 = vld [vmem:[%s1 + $0x5f0] sm:$0xff]
        %v609 = vld [vmem:[%s1 + $0x5f8] sm:$0xff]
        %v610 = vld [vmem:[%s1 + $0x600] sm:$0xff]
        %v611 = vld [vmem:[%s1 + $0x608] sm:$0xff]
        %v612 = vld [vmem:[%s1 + $0x610] sm:$0xff]
        %v613 = vld [vmem:[%s1 + $0x618] sm:$0xff]
        %v614 = vld [vmem:[%s1 + $0x620] sm:$0xff]
        %v615 = vld [vmem:[%s1 + $0x628] sm:$0xff]
        %v616 = vld [vmem:[%s1 + $0x630] sm:$0xff]
        %v617 = vld [vmem:[%s1 + $0x638] sm:$0xff]
        %v618 = vld [vmem:[%s1 + $0x640] sm:$0xff]
        %v619 = vld [vmem:[%s1 + $0x648] sm:$0xff]
        %v620 = vld [vmem:[%s1 + $0x650] sm:$0xff]
        %v621 = vld [vmem:[%s1 + $0x658] sm:$0xff]
        %v622 = vld [vmem:[%s1 + $0x660] sm:$0xff]
        %v623 = vld [vmem:[%s1 + $0x668] sm:$0xff]
        %v624 = vld [vmem:[%s1 + $0x670] sm:$0xff]
        %v625 = vld [vmem:[%s1 + $0x678] sm:$0xff]
        %v626 = vld [vmem:[%s1 + $0x680] sm:$0xff]
        %v627 = vld [vmem:[%s1 + $0x688] sm:$0xff]
        %v628 = vld [vmem:[%s1 + $0x690] sm:$0xff]
        %v629 = vld [vmem:[%s1 + $0x698] sm:$0xff]
        %v630 = vld [vmem:[%s1 + $0x6a0] sm:$0xff]
        %v631 = vld [vmem:[%s1 + $0x6a8] sm:$0xff]
        %v632 = vld [vmem:[%s1 + $0x6b0] sm:$0xff]
        %v633 = vld [vmem:[%s1 + $0x6b8] sm:$0xff]
        %v634 = vld [vmem:[%s1 + $0x6c0] sm:$0xff]
        %v635 = vld [vmem:[%s1 + $0x6c8] sm:$0xff]
        %v636 = vld [vmem:[%s1 + $0x6d0] sm:$0xff]
        %v637 = vld [vmem:[%s1 + $0x6d8] sm:$0xff]
        %v638 = vld [vmem:[%s1 + $0x6e0] sm:$0xff]
        %v639 = vld [vmem:[%s1 + $0x6e8] sm:$0xff]
        %v640 = vld [vmem:[%s1 + $0x6f0] sm:$0xff]
        %v641 = vld [vmem:[%s1 + $0x6f8] sm:$0xff]
        %v642 = vld [vmem:[%s1 + $0x700] sm:$0xff]
        %v643 = vld [vmem:[%s1 + $0x708] sm:$0xff]
        %v644 = vld [vmem:[%s1 + $0x710] sm:$0xff]
        %v645 = vld [vmem:[%s1 + $0x718] sm:$0xff]
        %v646 = vld [vmem:[%s1 + $0x720] sm:$0xff]
        %v647 = vld [vmem:[%s1 + $0x728] sm:$0xff]
        %v648 = vld [vmem:[%s1 + $0x730] sm:$0xff]
        %v649 = vld [vmem:[%s1 + $0x738] sm:$0xff]
        %v650 = vld [vmem:[%s1 + $0x740] sm:$0xff]
        %v651 = vld [vmem:[%s1 + $0x748] sm:$0xff]
        %v652 = vld [vmem:[%s1 + $0x750] sm:$0xff]
        %v653 = vld [vmem:[%s1 + $0x758] sm:$0xff]
        %v654 = vld [vmem:[%s1 + $0x760] sm:$0xff]
        %v655 = vld [vmem:[%s1 + $0x768] sm:$0xff]
        %v656 = vld [vmem:[%s1 + $0x770] sm:$0xff]
        %v657 = vld [vmem:[%s1 + $0x778] sm:$0xff]
        %v658 = vld [vmem:[%s1 + $0x780] sm:$0xff]
        %v659 = vld [vmem:[%s1 + $0x788] sm:$0xff]
        %v660 = vld [vmem:[%s1 + $0x790] sm:$0xff]
        %v661 = vld [vmem:[%s1 + $0x798] sm:$0xff]
        %v662 = vld [vmem:[%s1 + $0x7a0] sm:$0xff]
        %v663 = vld [vmem:[%s1 + $0x7a8] sm:$0xff]
        %v664 = vld [vmem:[%s1 + $0x7b0] sm:$0xff]
        %v665 = vld [vmem:[%s1 + $0x7b8] sm:$0xff]
        %v666 = vld [vmem:[%s1 + $0x7c0] sm:$0xff]
        %v667 = vld [vmem:[%s1 + $0x7c8] sm:$0xff]
        %v668 = vld [vmem:[%s1 + $0x7d0] sm:$0xff]
        %v669 = vld [vmem:[%s1 + $0x7d8] sm:$0xff]
        %v670 = vld [vmem:[%s1 + $0x7e0] sm:$0xff]
        %v671 = vld [vmem:[%s1 + $0x7e8] sm:$0xff]
        %v672 = vld [vmem:[%s1 + $0x7f0] sm:$0xff]
        %v673 = vld [vmem:[%s1 + $0x7f8] sm:$0xff]
        %v674 = vld [vmem:[%s1 + $0x800] sm:$0xff]
        %v675 = vld [vmem:[%s1 + $0x808] sm:$0xff]
        %v676 = vld [vmem:[%s1 + $0x810] sm:$0xff]
        %v677 = vld [vmem:[%s1 + $0x818] sm:$0xff]
        %v678 = vld [vmem:[%s1 + $0x820] sm:$0xff]
        %v679 = vld [vmem:[%s1 + $0x828] sm:$0xff]
        %v680 = vld [vmem:[%s1 + $0x830] sm:$0xff]
        %v681 = vld [vmem:[%s1 + $0x838] sm:$0xff]
        %v682 = vld [vmem:[%s1 + $0x840] sm:$0xff]
        %v683 = vld [vmem:[%s1 + $0x848] sm:$0xff]
        %v684 = vld [vmem:[%s1 + $0x850] sm:$0xff]
        %v685 = vld [vmem:[%s1 + $0x858] sm:$0xff]
        %v686 = vld [vmem:[%s1 + $0x860] sm:$0xff]
        %v687 = vld [vmem:[%s1 + $0x868] sm:$0xff]
        %v688 = vld [vmem:[%s1 + $0x870] sm:$0xff]
        %v689 = vld [vmem:[%s1 + $0x878] sm:$0xff]
        %v690 = vld [vmem:[%s1 + $0x880] sm:$0xff]
        %v691 = vld [vmem:[%s1 + $0x888] sm:$0xff]
        %v692 = vld [vmem:[%s1 + $0x890] sm:$0xff]
        %v693 = vld [vmem:[%s1 + $0x898] sm:$0xff]
        %v694 = vld [vmem:[%s1 + $0x8a0] sm:$0xff]
        %v695 = vld [vmem:[%s1 + $0x8a8] sm:$0xff]
        %v696 = vld [vmem:[%s1 + $0x8b0] sm:$0xff]
        %v697 = vld [vmem:[%s1 + $0x8b8] sm:$0xff]
        %v698 = vld [vmem:[%s1 + $0x8c0] sm:$0xff]
        %v699 = vld [vmem:[%s1 + $0x8c8] sm:$0xff]
        %v700 = vld [vmem:[%s1 + $0x8d0] sm:$0xff]
        %v701 = vld [vmem:[%s1 + $0x8d8] sm:$0xff]
        %v702 = vld [vmem:[%s1 + $0x8e0] sm:$0xff]
        %v703 = vld [vmem:[%s1 + $0x8e8] sm:$0xff]
        %v704 = vld [vmem:[%s1 + $0x8f0] sm:$0xff]
        %v705 = vld [vmem:[%s1 + $0x8f8] sm:$0xff]
        %v706 = vld [vmem:[%s1 + $0x900] sm:$0xff]
        %v707 = vld [vmem:[%s1 + $0x908] sm:$0xff]
        %v708 = vld [vmem:[%s1 + $0x910] sm:$0xff]
        %v709 = vld [vmem:[%s1 + $0x918] sm:$0xff]
        %v710 = vld [vmem:[%s1 + $0x920] sm:$0xff]
        %v711 = vld [vmem:[%s1 + $0x928] sm:$0xff]
        %v712 = vld [vmem:[%s1 + $0x930] sm:$0xff]
        %v713 = vld [vmem:[%s1 + $0x938] sm:$0xff]
        %v714 = vld [vmem:[%s1 + $0x940] sm:$0xff]
        %v715 = vld [vmem:[%s1 + $0x948] sm:$0xff]
        %v716 = vld [vmem:[%s1 + $0x950] sm:$0xff]
        %v717 = vld [vmem:[%s1 + $0x958] sm:$0xff]
        %v718 = vld [vmem:[%s1 + $0x960] sm:$0xff]
        %v719 = vld [vmem:[%s1 + $0x968] sm:$0xff]
        %v720 = vld [vmem:[%s1 + $0x970] sm:$0xff]
        %v721 = vld [vmem:[%s1 + $0x978] sm:$0xff]
        %v722 = vld [vmem:[%s1 + $0x980] sm:$0xff]
        %v723 = vld [vmem:[%s1 + $0x988] sm:$0xff]
        %v724 = vld [vmem:[%s1 + $0x990] sm:$0xff]
        %v725 = vld [vmem:[%s1 + $0x998] sm:$0xff]
        %v726 = vld [vmem:[%s1 + $0x9a0] sm:$0xff]
        %v727 = vld [vmem:[%s1 + $0x9a8] sm:$0xff]
        %v728 = vld [vmem:[%s1 + $0x9b0] sm:$0xff]
        %v729 = vld [vmem:[%s1 + $0x9b8] sm:$0xff]
        %v730 = vld [vmem:[%s1 + $0x9c0] sm:$0xff]
        %v731 = vld [vmem:[%s1 + $0x9c8] sm:$0xff]
        %v732 = vld [vmem:[%s1 + $0x9d0] sm:$0xff]
        %v733 = vld [vmem:[%s1 + $0x9d8] sm:$0xff]
        %v734 = vld [vmem:[%s1 + $0x9e0] sm:$0xff]
        %v735 = vld [vmem:[%s1 + $0x9e8] sm:$0xff]
        %v736 = vld [vmem:[%s1 + $0x9f0] sm:$0xff]
        %v737 = vld [vmem:[%s1 + $0x9f8] sm:$0xff]
        %v738 = vld [vmem:[%s1 + $0xa00] sm:$0xff]
        %v739 = vld [vmem:[%s1 + $0xa08] sm:$0xff]
        %v740 = vld [vmem:[%s1 + $0xa10] sm:$0xff]
        %v741 = vld [vmem:[%s1 + $0xa18] sm:$0xff]
        %v742 = vld [vmem:[%s1 + $0xa20] sm:$0xff]
        %v743 = vld [vmem:[%s1 + $0xa28] sm:$0xff]
        %v744 = vld [vmem:[%s1 + $0xa30] sm:$0xff]
        %v745 = vld [vmem:[%s1 + $0xa38] sm:$0xff]
        %v746 = vld [vmem:[%s1 + $0xa40] sm:$0xff]
        %v747 = vld [vmem:[%s1 + $0xa48] sm:$0xff]
        %v748 = vld [vmem:[%s1 + $0xa50] sm:$0xff]
        %v749 = vld [vmem:[%s1 + $0xa58] sm:$0xff]
        %v750 = vld [vmem:[%s1 + $0xa60] sm:$0xff]
        %v751 = vld [vmem:[%s1 + $0xa68] sm:$0xff]
        %v752 = vld [vmem:[%s1 + $0xa70] sm:$0xff]
        %v753 = vld [vmem:[%s1 + $0xa78] sm:$0xff]
        %v754 = vld [vmem:[%s1 + $0xa80] sm:$0xff]
        %v755 = vld [vmem:[%s1 + $0xa88] sm:$0xff]
        %v756 = vld [vmem:[%s1 + $0xa90] sm:$0xff]
        %v757 = vld [vmem:[%s1 + $0xa98] sm:$0xff]
        %v758 = vld [vmem:[%s1 + $0xaa0] sm:$0xff]
        %v759 = vld [vmem:[%s1 + $0xaa8] sm:$0xff]
        %v760 = vld [vmem:[%s1 + $0xab0] sm:$0xff]
        %v761 = vld [vmem:[%s1 + $0xab8] sm:$0xff]
        %v762 = vld [vmem:[%s1 + $0xac0] sm:$0xff]
        %v763 = vld [vmem:[%s1 + $0xac8] sm:$0xff]
        %v764 = vld [vmem:[%s1 + $0xad0] sm:$0xff]
        %v765 = vld [vmem:[%s1 + $0xad8] sm:$0xff]
        %v766 = vld [vmem:[%s1 + $0xae0] sm:$0xff]
        %v767 = vld [vmem:[%s1 + $0xae8] sm:$0xff]
        %v768 = vld [vmem:[%s1 + $0xaf0] sm:$0xff]
        %v769 = vld [vmem:[%s1 + $0xaf8] sm:$0xff]
        %v770 = vld [vmem:[%s1 + $0xb00] sm:$0xff]
        %v771 = vld [vmem:[%s1 + $0xb08] sm:$0xff]
        %v772 = vld [vmem:[%s1 + $0xb10] sm:$0xff]
        %v773 = vld [vmem:[%s1 + $0xb18] sm:$0xff]
        %v774 = vld [vmem:[%s1 + $0xb20] sm:$0xff]
        %v775 = vld [vmem:[%s1 + $0xb28] sm:$0xff]
        %v776 = vld [vmem:[%s1 + $0xb30] sm:$0xff]
        %v777 = vld [vmem:[%s1 + $0xb38] sm:$0xff]
        %v778 = vld [vmem:[%s1 + $0xb40] sm:$0xff]
        %v779 = vld [vmem:[%s1 + $0xb48] sm:$0xff]
        %v780 = vld [vmem:[%s1 + $0xb50] sm:$0xff]
        %v781 = vld [vmem:[%s1 + $0xb58] sm:$0xff]
        %v782 = vld [vmem:[%s1 + $0xb60] sm:$0xff]
        %v783 = vld [vmem:[%s1 + $0xb68] sm:$0xff]
        %v784 = vld [vmem:[%s1 + $0xb70] sm:$0xff]
        %v785 = vld [vmem:[%s1 + $0xb78] sm:$0xff]
        %v786 = vld [vmem:[%s1 + $0xb80] sm:$0xff]
        %v787 = vld [vmem:[%s1 + $0xb88] sm:$0xff]
        %v788 = vld [vmem:[%s1 + $0xb90] sm:$0xff]
        %v789 = vld [vmem:[%s1 + $0xb98] sm:$0xff]
        %v790 = vld [vmem:[%s1 + $0xba0] sm:$0xff]
        %v791 = vld [vmem:[%s1 + $0xba8] sm:$0xff]
        %v792 = vld [vmem:[%s1 + $0xbb0] sm:$0xff]
        %v793 = vld [vmem:[%s1 + $0xbb8] sm:$0xff]
        %v794 = vld [vmem:[%s1 + $0xbc0] sm:$0xff]
        %v795 = vld [vmem:[%s1 + $0xbc8] sm:$0xff]
        %v796 = vld [vmem:[%s1 + $0xbd0] sm:$0xff]
        %v797 = vld [vmem:[%s1 + $0xbd8] sm:$0xff]
        %v798 = vld [vmem:[%s1 + $0xbe0] sm:$0xff]
        %v799 = vld [vmem:[%s1 + $0xbe8] sm:$0xff]
        %v800 = vld [vmem:[%s1 + $0xbf0] sm:$0xff]
        %v801 = vld [vmem:[%s1 + $0xbf8] sm:$0xff]
        %802 = vmatprep.subr.mxu0 %v419
        %803 = vmatpush1.msra.mxu0 %v418
        %804 = vmatprep.subr.mxu0 %v423
        %805 = vmatpush1.msra.mxu0 %v422
        %806 = vmatprep.subr.mxu0 %v427
        %807 = vmatpush1.msra.mxu0 %v426
        %808 = vmatprep.subr.mxu0 %v431
        %809 = vmatpush1.msra.mxu0 %v430
        %810 = vmatprep.subr.mxu0 %v435
        %811 = vmatpush1.msra.mxu0 %v434
        %812 = vmatprep.subr.mxu0 %v439
        %813 = vmatpush1.msra.mxu0 %v438
        %814 = vmatprep.subr.mxu0 %v443
        %815 = vmatpush1.msra.mxu0 %v442
        %816 = vmatprep.subr.mxu0 %v447
        %817 = vmatpush1.msra.mxu0 %v446
        %818 = vmatprep.subr.mxu0 %v451
        %819 = vmatpush1.msra.mxu0 %v450
        %820 = vmatprep.subr.mxu0 %v455
        %821 = vmatpush1.msra.mxu0 %v454
        %822 = vmatprep.subr.mxu0 %v459
        %823 = vmatpush1.msra.mxu0 %v458
        %824 = vmatprep.subr.mxu0 %v463
        %825 = vmatpush1.msra.mxu0 %v462
        %826 = vmatprep.subr.mxu0 %v467
        %827 = vmatpush1.msra.mxu0 %v466
        %828 = vmatprep.subr.mxu0 %v471
        %829 = vmatpush1.msra.mxu0 %v470
        %830 = vmatprep.subr.mxu0 %v475
        %831 = vmatpush1.msra.mxu0 %v474
        %832 = vmatprep.subr.mxu0 %v479
        %833 = vmatpush1.msra.mxu0 %v478
        %834 = vmatprep.subr.mxu0 %v483
        %835 = vmatpush1.msra.mxu0 %v482
        %836 = vmatprep.subr.mxu0 %v487
        %837 = vmatpush1.msra.mxu0 %v486
        %838 = vmatprep.subr.mxu0 %v491
        %839 = vmatpush1.msra.mxu0 %v490
        %840 = vmatprep.subr.mxu0 %v495
        %841 = vmatpush1.msra.mxu0 %v494
        %842 = vmatprep.subr.mxu0 %v499
        %843 = vmatpush1.msra.mxu0 %v498
        %844 = vmatprep.subr.mxu0 %v503
        %845 = vmatpush1.msra.mxu0 %v502
        %846 = vmatprep.subr.mxu0 %v507
        %847 = vmatpush1.msra.mxu0 %v506
        %848 = vmatprep.subr.mxu0 %v511
        %849 = vmatpush1.msra.mxu0 %v510
        %850 = vmatprep.subr.mxu0 %v515
        %851 = vmatpush1.msra.mxu0 %v514
        %852 = vmatprep.subr.mxu0 %v519
        %853 = vmatpush1.msra.mxu0 %v518
        %854 = vmatprep.subr.mxu0 %v523
        %855 = vmatpush1.msra.mxu0 %v522
        %856 = vmatprep.subr.mxu0 %v527
        %857 = vmatpush1.msra.mxu0 %v526
        %858 = vmatprep.subr.mxu0 %v531
        %859 = vmatpush1.msra.mxu0 %v530
        %860 = vmatprep.subr.mxu0 %v535
        %861 = vmatpush1.msra.mxu0 %v534
        %862 = vmatprep.subr.mxu0 %v539
        %863 = vmatpush1.msra.mxu0 %v538
        %864 = vmatprep.subr.mxu0 %v543
        %865 = vmatpush1.msra.mxu0 %v542
        %866 = vmatprep.mubr.f32.mxu0 %v413
        %867 = vmatmul.mubr.f32.gmra.mrb[0].mxu0 %v412
        %v868 = vpop.f32.mrb[0].mxu0
        %v869 = vadd.f32 0.0, %v868
        %v870 = vpop.f32.mrb[0].mxu0
        %v871 = vadd.f32 0.0, %v870
        %872 = vdwg.mxu0
        %873 = vmatprep.subr.mxu0 %v547
        %874 = vmatpush1.msra.mxu0 %v546
        %875 = vmatprep.subr.mxu0 %v551
        %876 = vmatpush1.msra.mxu0 %v550
        %877 = vmatprep.subr.mxu0 %v555
        %878 = vmatpush1.msra.mxu0 %v554
        %879 = vmatprep.subr.mxu0 %v559
        %880 = vmatpush1.msra.mxu0 %v558
        %881 = vmatprep.subr.mxu0 %v563
        %882 = vmatpush1.msra.mxu0 %v562
        %883 = vmatprep.subr.mxu0 %v567
        %884 = vmatpush1.msra.mxu0 %v566
        %885 = vmatprep.subr.mxu0 %v571
        %886 = vmatpush1.msra.mxu0 %v570
        %887 = vmatprep.subr.mxu0 %v575
        %888 = vmatpush1.msra.mxu0 %v574
        %889 = vmatprep.subr.mxu0 %v579
        %890 = vmatpush1.msra.mxu0 %v578
        %891 = vmatprep.subr.mxu0 %v583
        %892 = vmatpush1.msra.mxu0 %v582
        %893 = vmatprep.subr.mxu0 %v587
        %894 = vmatpush1.msra.mxu0 %v586
        %895 = vmatprep.subr.mxu0 %v591
        %896 = vmatpush1.msra.mxu0 %v590
        %897 = vmatprep.subr.mxu0 %v595
        %898 = vmatpush1.msra.mxu0 %v594
        %899 = vmatprep.subr.mxu0 %v599
        %900 = vmatpush1.msra.mxu0 %v598
        %901 = vmatprep.subr.mxu0 %v603
        %902 = vmatpush1.msra.mxu0 %v602
        %903 = vmatprep.subr.mxu0 %v607
        %904 = vmatpush1.msra.mxu0 %v606
        %905 = vmatprep.subr.mxu0 %v611
        %906 = vmatpush1.msra.mxu0 %v610
        %907 = vmatprep.subr.mxu0 %v615
        %908 = vmatpush1.msra.mxu0 %v614
        %909 = vmatprep.subr.mxu0 %v619
        %910 = vmatpush1.msra.mxu0 %v618
        %911 = vmatprep.subr.mxu0 %v623
        %912 = vmatpush1.msra.mxu0 %v622
        %913 = vmatprep.subr.mxu0 %v627
        %914 = vmatpush1.msra.mxu0 %v626
        %915 = vmatprep.subr.mxu0 %v631
        %916 = vmatpush1.msra.mxu0 %v630
        %917 = vmatprep.subr.mxu0 %v635
        %918 = vmatpush1.msra.mxu0 %v634
        %919 = vmatprep.subr.mxu0 %v639
        %920 = vmatpush1.msra.mxu0 %v638
        %921 = vmatprep.subr.mxu0 %v643
        %922 = vmatpush1.msra.mxu0 %v642
        %923 = vmatprep.subr.mxu0 %v647
        %924 = vmatpush1.msra.mxu0 %v646
        %925 = vmatprep.subr.mxu0 %v651
        %926 = vmatpush1.msra.mxu0 %v650
        %927 = vmatprep.subr.mxu0 %v655
        %928 = vmatpush1.msra.mxu0 %v654
        %929 = vmatprep.subr.mxu0 %v659
        %930 = vmatpush1.msra.mxu0 %v658
        %931 = vmatprep.subr.mxu0 %v663
        %932 = vmatpush1.msra.mxu0 %v662
        %933 = vmatprep.subr.mxu0 %v667
        %934 = vmatpush1.msra.mxu0 %v666
        %935 = vmatprep.subr.mxu0 %v671
        %936 = vmatpush1.msra.mxu0 %v670
        %937 = vmatprep.mubr.f32.mxu0 %v415
        %938 = vmatmul.mubr.f32.gmra.mrb[0].mxu0 %v414
        %v939 = vpop.f32.mrb[0].mxu0
        %v940 = vadd.f32 %v869, %v939
        %v941 = vpop.f32.mrb[0].mxu0
        %v942 = vadd.f32 %v871, %v941
        %943 = vdwg.mxu0
        %944 = vmatprep.subr.mxu0 %v675
        %945 = vmatpush1.msra.mxu0 %v674
        %946 = vmatprep.subr.mxu0 %v679
        %947 = vmatpush1.msra.mxu0 %v678
        %948 = vmatprep.subr.mxu0 %v683
        %949 = vmatpush1.msra.mxu0 %v682
        %950 = vmatprep.subr.mxu0 %v687
        %951 = vmatpush1.msra.mxu0 %v686
        %952 = vmatprep.subr.mxu0 %v691
        %953 = vmatpush1.msra.mxu0 %v690
        %954 = vmatprep.subr.mxu0 %v695
        %955 = vmatpush1.msra.mxu0 %v694
        %956 = vmatprep.subr.mxu0 %v699
        %957 = vmatpush1.msra.mxu0 %v698
        %958 = vmatprep.subr.mxu0 %v703
        %959 = vmatpush1.msra.mxu0 %v702
        %960 = vmatprep.subr.mxu0 %v707
        %961 = vmatpush1.msra.mxu0 %v706
        %962 = vmatprep.subr.mxu0 %v711
        %963 = vmatpush1.msra.mxu0 %v710
        %964 = vmatprep.subr.mxu0 %v715
        %965 = vmatpush1.msra.mxu0 %v714
        %966 = vmatprep.subr.mxu0 %v719
        %967 = vmatpush1.msra.mxu0 %v718
        %968 = vmatprep.subr.mxu0 %v723
        %969 = vmatpush1.msra.mxu0 %v722
        %970 = vmatprep.subr.mxu0 %v727
        %971 = vmatpush1.msra.mxu0 %v726
        %972 = vmatprep.subr.mxu0 %v731
        %973 = vmatpush1.msra.mxu0 %v730
        %974 = vmatprep.subr.mxu0 %v735
        %975 = vmatpush1.msra.mxu0 %v734
        %976 = vmatprep.subr.mxu0 %v739
        %977 = vmatpush1.msra.mxu0 %v738
        %978 = vmatprep.subr.mxu0 %v743
        %979 = vmatpush1.msra.mxu0 %v742
        %980 = vmatprep.subr.mxu0 %v747
        %981 = vmatpush1.msra.mxu0 %v746
        %982 = vmatprep.subr.mxu0 %v751
        %983 = vmatpush1.msra.mxu0 %v750
        %984 = vmatprep.subr.mxu0 %v755
        %985 = vmatpush1.msra.mxu0 %v754
        %986 = vmatprep.subr.mxu0 %v759
        %987 = vmatpush1.msra.mxu0 %v758
        %988 = vmatprep.subr.mxu0 %v763
        %989 = vmatpush1.msra.mxu0 %v762
        %990 = vmatprep.subr.mxu0 %v767
        %991 = vmatpush1.msra.mxu0 %v766
        %992 = vmatprep.subr.mxu0 %v771
        %993 = vmatpush1.msra.mxu0 %v770
        %994 = vmatprep.subr.mxu0 %v775
        %995 = vmatpush1.msra.mxu0 %v774
        %996 = vmatprep.subr.mxu0 %v779
        %997 = vmatpush1.msra.mxu0 %v778
        %998 = vmatprep.subr.mxu0 %v783
        %999 = vmatpush1.msra.mxu0 %v782
        %1000 = vmatprep.subr.mxu0 %v787
        %1001 = vmatpush1.msra.mxu0 %v786
        %1002 = vmatprep.subr.mxu0 %v791
        %1003 = vmatpush1.msra.mxu0 %v790
        %1004 = vmatprep.subr.mxu0 %v795
        %1005 = vmatpush1.msra.mxu0 %v794
        %1006 = vmatprep.subr.mxu0 %v799
        %1007 = vmatpush1.msra.mxu0 %v798
        %1008 = vmatprep.mubr.f32.mxu0 %v417
        %1009 = vmatmul.mubr.f32.gmra.mrb[0].mxu0 %v416
        %v1010 = vpop.f32.mrb[0].mxu0
        %v1011 = vadd.f32 %v940, %v1010
        %v1012 = vpop.f32.mrb[0].mxu0
        %v1013 = vadd.f32 %v942, %v1012
        %1014 = vdwg.mxu0
        %1015 = vmatprep.subr.mxu0 %v421
        %1016 = vmatpush1.msra.mxu0 %v420
        %1017 = vmatprep.subr.mxu0 %v425
        %1018 = vmatpush1.msra.mxu0 %v424
        %1019 = vmatprep.subr.mxu0 %v429
        %1020 = vmatpush1.msra.mxu0 %v428
        %1021 = vmatprep.subr.mxu0 %v433
        %1022 = vmatpush1.msra.mxu0 %v432
        %1023 = vmatprep.subr.mxu0 %v437
        %1024 = vmatpush1.msra.mxu0 %v436
        %1025 = vmatprep.subr.mxu0 %v441
        %1026 = vmatpush1.msra.mxu0 %v440
        %1027 = vmatprep.subr.mxu0 %v445
        %1028 = vmatpush1.msra.mxu0 %v444
        %1029 = vmatprep.subr.mxu0 %v449
        %1030 = vmatpush1.msra.mxu0 %v448
        %1031 = vmatprep.subr.mxu0 %v453
        %1032 = vmatpush1.msra.mxu0 %v452
        %1033 = vmatprep.subr.mxu0 %v457
        %1034 = vmatpush1.msra.mxu0 %v456
        %1035 = vmatprep.subr.mxu0 %v461
        %1036 = vmatpush1.msra.mxu0 %v460
        %1037 = vmatprep.subr.mxu0 %v465
        %1038 = vmatpush1.msra.mxu0 %v464
        %1039 = vmatprep.subr.mxu0 %v469
        %1040 = vmatpush1.msra.mxu0 %v468
        %1041 = vmatprep.subr.mxu0 %v473
        %1042 = vmatpush1.msra.mxu0 %v472
        %1043 = vmatprep.subr.mxu0 %v477
        %1044 = vmatpush1.msra.mxu0 %v476
        %1045 = vmatprep.subr.mxu0 %v481
        %1046 = vmatpush1.msra.mxu0 %v480
        %1047 = vmatprep.subr.mxu0 %v485
        %1048 = vmatpush1.msra.mxu0 %v484
        %1049 = vmatprep.subr.mxu0 %v489
        %1050 = vmatpush1.msra.mxu0 %v488
        %1051 = vmatprep.subr.mxu0 %v493
        %1052 = vmatpush1.msra.mxu0 %v492
        %1053 = vmatprep.subr.mxu0 %v497
        %1054 = vmatpush1.msra.mxu0 %v496
        %1055 = vmatprep.subr.mxu0 %v501
        %1056 = vmatpush1.msra.mxu0 %v500
        %1057 = vmatprep.subr.mxu0 %v505
        %1058 = vmatpush1.msra.mxu0 %v504
        %1059 = vmatprep.subr.mxu0 %v509
        %1060 = vmatpush1.msra.mxu0 %v508
        %1061 = vmatprep.subr.mxu0 %v513
        %1062 = vmatpush1.msra.mxu0 %v512
        %1063 = vmatprep.subr.mxu0 %v517
        %1064 = vmatpush1.msra.mxu0 %v516
        %1065 = vmatprep.subr.mxu0 %v521
        %1066 = vmatpush1.msra.mxu0 %v520
        %1067 = vmatprep.subr.mxu0 %v525
        %1068 = vmatpush1.msra.mxu0 %v524
        %1069 = vmatprep.subr.mxu0 %v529
        %1070 = vmatpush1.msra.mxu0 %v528
        %1071 = vmatprep.subr.mxu0 %v533
        %1072 = vmatpush1.msra.mxu0 %v532
        %1073 = vmatprep.subr.mxu0 %v537
        %1074 = vmatpush1.msra.mxu0 %v536
        %1075 = vmatprep.subr.mxu0 %v541
        %1076 = vmatpush1.msra.mxu0 %v540
        %1077 = vmatprep.subr.mxu0 %v545
        %1078 = vmatpush1.msra.mxu0 %v544
        %1079 = vmatprep.mubr.f32.mxu0 %v413
        %1080 = vmatmul.mubr.f32.gmra.mrb[0].mxu0 %v412
        %v1081 = vpop.f32.mrb[0].mxu0
        %v1082 = vadd.f32 0.0, %v1081
        %v1083 = vpop.f32.mrb[0].mxu0
        %v1084 = vadd.f32 0.0, %v1083
        %1085 = vdwg.mxu0
        %1086 = vmatprep.subr.mxu0 %v549
        %1087 = vmatpush1.msra.mxu0 %v548
        %1088 = vmatprep.subr.mxu0 %v553
        %1089 = vmatpush1.msra.mxu0 %v552
        %1090 = vmatprep.subr.mxu0 %v557
        %1091 = vmatpush1.msra.mxu0 %v556
        %1092 = vmatprep.subr.mxu0 %v561
        %1093 = vmatpush1.msra.mxu0 %v560
        %1094 = vmatprep.subr.mxu0 %v565
        %1095 = vmatpush1.msra.mxu0 %v564
        %1096 = vmatprep.subr.mxu0 %v569
        %1097 = vmatpush1.msra.mxu0 %v568
        %1098 = vmatprep.subr.mxu0 %v573
        %1099 = vmatpush1.msra.mxu0 %v572
        %1100 = vmatprep.subr.mxu0 %v577
        %1101 = vmatpush1.msra.mxu0 %v576
        %1102 = vmatprep.subr.mxu0 %v581
        %1103 = vmatpush1.msra.mxu0 %v580
        %1104 = vmatprep.subr.mxu0 %v585
        %1105 = vmatpush1.msra.mxu0 %v584
        %1106 = vmatprep.subr.mxu0 %v589
        %1107 = vmatpush1.msra.mxu0 %v588
        %1108 = vmatprep.subr.mxu0 %v593
        %1109 = vmatpush1.msra.mxu0 %v592
        %1110 = vmatprep.subr.mxu0 %v597
        %1111 = vmatpush1.msra.mxu0 %v596
        %1112 = vmatprep.subr.mxu0 %v601
        %1113 = vmatpush1.msra.mxu0 %v600
        %1114 = vmatprep.subr.mxu0 %v605
        %1115 = vmatpush1.msra.mxu0 %v604
        %1116 = vmatprep.subr.mxu0 %v609
        %1117 = vmatpush1.msra.mxu0 %v608
        %1118 = vmatprep.subr.mxu0 %v613
        %1119 = vmatpush1.msra.mxu0 %v612
        %1120 = vmatprep.subr.mxu0 %v617
        %1121 = vmatpush1.msra.mxu0 %v616
        %1122 = vmatprep.subr.mxu0 %v621
        %1123 = vmatpush1.msra.mxu0 %v620
        %1124 = vmatprep.subr.mxu0 %v625
        %1125 = vmatpush1.msra.mxu0 %v624
        %1126 = vmatprep.subr.mxu0 %v629
        %1127 = vmatpush1.msra.mxu0 %v628
        %1128 = vmatprep.subr.mxu0 %v633
        %1129 = vmatpush1.msra.mxu0 %v632
        %1130 = vmatprep.subr.mxu0 %v637
        %1131 = vmatpush1.msra.mxu0 %v636
        %1132 = vmatprep.subr.mxu0 %v641
        %1133 = vmatpush1.msra.mxu0 %v640
        %1134 = vmatprep.subr.mxu0 %v645
        %1135 = vmatpush1.msra.mxu0 %v644
        %1136 = vmatprep.subr.mxu0 %v649
        %1137 = vmatpush1.msra.mxu0 %v648
        %1138 = vmatprep.subr.mxu0 %v653
        %1139 = vmatpush1.msra.mxu0 %v652
        %1140 = vmatprep.subr.mxu0 %v657
        %1141 = vmatpush1.msra.mxu0 %v656
        %1142 = vmatprep.subr.mxu0 %v661
        %1143 = vmatpush1.msra.mxu0 %v660
        %1144 = vmatprep.subr.mxu0 %v665
        %1145 = vmatpush1.msra.mxu0 %v664
        %1146 = vmatprep.subr.mxu0 %v669
        %1147 = vmatpush1.msra.mxu0 %v668
        %1148 = vmatprep.subr.mxu0 %v673
        %1149 = vmatpush1.msra.mxu0 %v672
        %1150 = vmatprep.mubr.f32.mxu0 %v415
        %1151 = vmatmul.mubr.f32.gmra.mrb[0].mxu0 %v414
        %v1152 = vpop.f32.mrb[0].mxu0
        %v1153 = vadd.f32 %v1082, %v1152
        %v1154 = vpop.f32.mrb[0].mxu0
        %v1155 = vadd.f32 %v1084, %v1154
        %1156 = vdwg.mxu0
        %1157 = vmatprep.subr.mxu0 %v677
        %1158 = vmatpush1.msra.mxu0 %v676
        %1159 = vmatprep.subr.mxu0 %v681
        %1160 = vmatpush1.msra.mxu0 %v680
        %1161 = vmatprep.subr.mxu0 %v685
        %1162 = vmatpush1.msra.mxu0 %v684
        %1163 = vmatprep.subr.mxu0 %v689
        %1164 = vmatpush1.msra.mxu0 %v688
        %1165 = vmatprep.subr.mxu0 %v693
        %1166 = vmatpush1.msra.mxu0 %v692
        %1167 = vmatprep.subr.mxu0 %v697
        %1168 = vmatpush1.msra.mxu0 %v696
        %1169 = vmatprep.subr.mxu0 %v701
        %1170 = vmatpush1.msra.mxu0 %v700
        %1171 = vmatprep.subr.mxu0 %v705
        %1172 = vmatpush1.msra.mxu0 %v704
        %1173 = vmatprep.subr.mxu0 %v709
        %1174 = vmatpush1.msra.mxu0 %v708
        %1175 = vmatprep.subr.mxu0 %v713
        %1176 = vmatpush1.msra.mxu0 %v712
        %1177 = vmatprep.subr.mxu0 %v717
        %1178 = vmatpush1.msra.mxu0 %v716
        %1179 = vmatprep.subr.mxu0 %v721
        %1180 = vmatpush1.msra.mxu0 %v720
        %1181 = vmatprep.subr.mxu0 %v725
        %1182 = vmatpush1.msra.mxu0 %v724
        %1183 = vmatprep.subr.mxu0 %v729
        %1184 = vmatpush1.msra.mxu0 %v728
        %1185 = vmatprep.subr.mxu0 %v733
        %1186 = vmatpush1.msra.mxu0 %v732
        %1187 = vmatprep.subr.mxu0 %v737
        %1188 = vmatpush1.msra.mxu0 %v736
        %1189 = vmatprep.subr.mxu0 %v741
        %1190 = vmatpush1.msra.mxu0 %v740
        %1191 = vmatprep.subr.mxu0 %v745
        %1192 = vmatpush1.msra.mxu0 %v744
        %1193 = vmatprep.subr.mxu0 %v749
        %1194 = vmatpush1.msra.mxu0 %v748
        %1195 = vmatprep.subr.mxu0 %v753
        %1196 = vmatpush1.msra.mxu0 %v752
        %1197 = vmatprep.subr.mxu0 %v757
        %1198 = vmatpush1.msra.mxu0 %v756
        %1199 = vmatprep.subr.mxu0 %v761
        %1200 = vmatpush1.msra.mxu0 %v760
        %1201 = vmatprep.subr.mxu0 %v765
        %1202 = vmatpush1.msra.mxu0 %v764
        %1203 = vmatprep.subr.mxu0 %v769
        %1204 = vmatpush1.msra.mxu0 %v768
        %1205 = vmatprep.subr.mxu0 %v773
        %1206 = vmatpush1.msra.mxu0 %v772
        %1207 = vmatprep.subr.mxu0 %v777
        %1208 = vmatpush1.msra.mxu0 %v776
        %1209 = vmatprep.subr.mxu0 %v781
        %1210 = vmatpush1.msra.mxu0 %v780
        %1211 = vmatprep.subr.mxu0 %v785
        %1212 = vmatpush1.msra.mxu0 %v784
        %1213 = vmatprep.subr.mxu0 %v789
        %1214 = vmatpush1.msra.mxu0 %v788
        %1215 = vmatprep.subr.mxu0 %v793
        %1216 = vmatpush1.msra.mxu0 %v792
        %1217 = vmatprep.subr.mxu0 %v797
        %1218 = vmatpush1.msra.mxu0 %v796
        %1219 = vmatprep.subr.mxu0 %v801
        %1220 = vmatpush1.msra.mxu0 %v800
        %1221 = vmatprep.mubr.f32.mxu0 %v417
        %1222 = vmatmul.mubr.f32.gmra.mrb[0].mxu0 %v416
        %v1223 = vpop.f32.mrb[0].mxu0
        %v1224 = vadd.f32 %v1153, %v1223
        %v1225 = vpop.f32.mrb[0].mxu0
        %v1226 = vadd.f32 %v1155, %v1225
        %1227 = vdwg.mxu0
        %v1228 = vld [vmem:[%s2] sm:$0xff]
        %v1229 = vld [vmem:[%s2 + $0x8] sm:$0xff]
        %v1230 = vld [vmem:[%s2 + $0x10] sm:$0xff]
        %v1231 = vld [vmem:[%s2 + $0x18] sm:$0xff]
        %v1232 = vld [vmem:[%s2 + $0x20] sm:$0xff]
        %v1233 = vld [vmem:[%s2 + $0x28] sm:$0xff]
        %v1234 = vld [vmem:[%s2 + $0x30] sm:$0xff]
        %v1235 = vld [vmem:[%s2 + $0x38] sm:$0xff]
        %v1236 = vld [vmem:[%s2 + $0x40] sm:$0xff]
        %v1237 = vld [vmem:[%s2 + $0x48] sm:$0xff]
        %v1238 = vld [vmem:[%s2 + $0x50] sm:$0xff]
        %v1239 = vld [vmem:[%s2 + $0x58] sm:$0xff]
        %v1240 = vld [vmem:[%s2 + $0x60] sm:$0xff]
        %v1241 = vld [vmem:[%s2 + $0x68] sm:$0xff]
        %v1242 = vld [vmem:[%s2 + $0x70] sm:$0xff]
        %v1243 = vld [vmem:[%s2 + $0x78] sm:$0xff]
        %v1244 = vld [vmem:[%s2 + $0x80] sm:$0xff]
        %v1245 = vld [vmem:[%s2 + $0x88] sm:$0xff]
        %v1246 = vld [vmem:[%s2 + $0x90] sm:$0xff]
        %v1247 = vld [vmem:[%s2 + $0x98] sm:$0xff]
        %v1248 = vld [vmem:[%s2 + $0xa0] sm:$0xff]
        %v1249 = vld [vmem:[%s2 + $0xa8] sm:$0xff]
        %v1250 = vld [vmem:[%s2 + $0xb0] sm:$0xff]
        %v1251 = vld [vmem:[%s2 + $0xb8] sm:$0xff]
        %v1252 = vld [vmem:[%s2 + $0xc0] sm:$0xff]
        %v1253 = vld [vmem:[%s2 + $0xc8] sm:$0xff]
        %v1254 = vld [vmem:[%s2 + $0xd0] sm:$0xff]
        %v1255 = vld [vmem:[%s2 + $0xd8] sm:$0xff]
        %v1256 = vld [vmem:[%s2 + $0xe0] sm:$0xff]
        %v1257 = vld [vmem:[%s2 + $0xe8] sm:$0xff]
        %v1258 = vld [vmem:[%s2 + $0xf0] sm:$0xff]
        %v1259 = vld [vmem:[%s2 + $0xf8] sm:$0xff]
        %v1260 = vld [vmem:[%s2 + $0x100] sm:$0xff]
        %v1261 = vld [vmem:[%s2 + $0x108] sm:$0xff]
        %v1262 = vld [vmem:[%s2 + $0x110] sm:$0xff]
        %v1263 = vld [vmem:[%s2 + $0x118] sm:$0xff]
        %v1264 = vld [vmem:[%s2 + $0x120] sm:$0xff]
        %v1265 = vld [vmem:[%s2 + $0x128] sm:$0xff]
        %v1266 = vld [vmem:[%s2 + $0x130] sm:$0xff]
        %v1267 = vld [vmem:[%s2 + $0x138] sm:$0xff]
        %v1268 = vld [vmem:[%s2 + $0x140] sm:$0xff]
        %v1269 = vld [vmem:[%s2 + $0x148] sm:$0xff]
        %v1270 = vld [vmem:[%s2 + $0x150] sm:$0xff]
        %v1271 = vld [vmem:[%s2 + $0x158] sm:$0xff]
        %v1272 = vld [vmem:[%s2 + $0x160] sm:$0xff]
        %v1273 = vld [vmem:[%s2 + $0x168] sm:$0xff]
        %v1274 = vld [vmem:[%s2 + $0x170] sm:$0xff]
        %v1275 = vld [vmem:[%s2 + $0x178] sm:$0xff]
        %v1276 = vld [vmem:[%s2 + $0x180] sm:$0xff]
        %v1277 = vld [vmem:[%s2 + $0x188] sm:$0xff]
        %v1278 = vld [vmem:[%s2 + $0x190] sm:$0xff]
        %v1279 = vld [vmem:[%s2 + $0x198] sm:$0xff]
        %v1280 = vld [vmem:[%s2 + $0x1a0] sm:$0xff]
        %v1281 = vld [vmem:[%s2 + $0x1a8] sm:$0xff]
        %v1282 = vld [vmem:[%s2 + $0x1b0] sm:$0xff]
        %v1283 = vld [vmem:[%s2 + $0x1b8] sm:$0xff]
        %v1284 = vld [vmem:[%s2 + $0x1c0] sm:$0xff]
        %v1285 = vld [vmem:[%s2 + $0x1c8] sm:$0xff]
        %v1286 = vld [vmem:[%s2 + $0x1d0] sm:$0xff]
        %v1287 = vld [vmem:[%s2 + $0x1d8] sm:$0xff]
        %v1288 = vld [vmem:[%s2 + $0x1e0] sm:$0xff]
        %v1289 = vld [vmem:[%s2 + $0x1e8] sm:$0xff]
        %v1290 = vld [vmem:[%s2 + $0x1f0] sm:$0xff]
        %v1291 = vld [vmem:[%s2 + $0x1f8] sm:$0xff]
        %v1292 = vld [vmem:[%s2 + $0x200] sm:$0xff]
        %v1293 = vld [vmem:[%s2 + $0x208] sm:$0xff]
        %v1294 = vld [vmem:[%s2 + $0x210] sm:$0xff]
        %v1295 = vld [vmem:[%s2 + $0x218] sm:$0xff]
        %v1296 = vld [vmem:[%s2 + $0x220] sm:$0xff]
        %v1297 = vld [vmem:[%s2 + $0x228] sm:$0xff]
        %v1298 = vld [vmem:[%s2 + $0x230] sm:$0xff]
        %v1299 = vld [vmem:[%s2 + $0x238] sm:$0xff]
        %v1300 = vld [vmem:[%s2 + $0x240] sm:$0xff]
        %v1301 = vld [vmem:[%s2 + $0x248] sm:$0xff]
        %v1302 = vld [vmem:[%s2 + $0x250] sm:$0xff]
        %v1303 = vld [vmem:[%s2 + $0x258] sm:$0xff]
        %v1304 = vld [vmem:[%s2 + $0x260] sm:$0xff]
        %v1305 = vld [vmem:[%s2 + $0x268] sm:$0xff]
        %v1306 = vld [vmem:[%s2 + $0x270] sm:$0xff]
        %v1307 = vld [vmem:[%s2 + $0x278] sm:$0xff]
        %v1308 = vld [vmem:[%s2 + $0x280] sm:$0xff]
        %v1309 = vld [vmem:[%s2 + $0x288] sm:$0xff]
        %v1310 = vld [vmem:[%s2 + $0x290] sm:$0xff]
        %v1311 = vld [vmem:[%s2 + $0x298] sm:$0xff]
        %v1312 = vld [vmem:[%s2 + $0x2a0] sm:$0xff]
        %v1313 = vld [vmem:[%s2 + $0x2a8] sm:$0xff]
        %v1314 = vld [vmem:[%s2 + $0x2b0] sm:$0xff]
        %v1315 = vld [vmem:[%s2 + $0x2b8] sm:$0xff]
        %v1316 = vld [vmem:[%s2 + $0x2c0] sm:$0xff]
        %v1317 = vld [vmem:[%s2 + $0x2c8] sm:$0xff]
        %v1318 = vld [vmem:[%s2 + $0x2d0] sm:$0xff]
        %v1319 = vld [vmem:[%s2 + $0x2d8] sm:$0xff]
        %v1320 = vld [vmem:[%s2 + $0x2e0] sm:$0xff]
        %v1321 = vld [vmem:[%s2 + $0x2e8] sm:$0xff]
        %v1322 = vld [vmem:[%s2 + $0x2f0] sm:$0xff]
        %v1323 = vld [vmem:[%s2 + $0x2f8] sm:$0xff]
        %v1324 = vld [vmem:[%s2 + $0x300] sm:$0xff]
        %v1325 = vld [vmem:[%s2 + $0x308] sm:$0xff]
        %v1326 = vld [vmem:[%s2 + $0x310] sm:$0xff]
        %v1327 = vld [vmem:[%s2 + $0x318] sm:$0xff]
        %v1328 = vld [vmem:[%s2 + $0x320] sm:$0xff]
        %v1329 = vld [vmem:[%s2 + $0x328] sm:$0xff]
        %v1330 = vld [vmem:[%s2 + $0x330] sm:$0xff]
        %v1331 = vld [vmem:[%s2 + $0x338] sm:$0xff]
        %v1332 = vld [vmem:[%s2 + $0x340] sm:$0xff]
        %v1333 = vld [vmem:[%s2 + $0x348] sm:$0xff]
        %v1334 = vld [vmem:[%s2 + $0x350] sm:$0xff]
        %v1335 = vld [vmem:[%s2 + $0x358] sm:$0xff]
        %v1336 = vld [vmem:[%s2 + $0x360] sm:$0xff]
        %v1337 = vld [vmem:[%s2 + $0x368] sm:$0xff]
        %v1338 = vld [vmem:[%s2 + $0x370] sm:$0xff]
        %v1339 = vld [vmem:[%s2 + $0x378] sm:$0xff]
        %v1340 = vld [vmem:[%s2 + $0x380] sm:$0xff]
        %v1341 = vld [vmem:[%s2 + $0x388] sm:$0xff]
        %v1342 = vld [vmem:[%s2 + $0x390] sm:$0xff]
        %v1343 = vld [vmem:[%s2 + $0x398] sm:$0xff]
        %v1344 = vld [vmem:[%s2 + $0x3a0] sm:$0xff]
        %v1345 = vld [vmem:[%s2 + $0x3a8] sm:$0xff]
        %v1346 = vld [vmem:[%s2 + $0x3b0] sm:$0xff]
        %v1347 = vld [vmem:[%s2 + $0x3b8] sm:$0xff]
        %v1348 = vld [vmem:[%s2 + $0x3c0] sm:$0xff]
        %v1349 = vld [vmem:[%s2 + $0x3c8] sm:$0xff]
        %v1350 = vld [vmem:[%s2 + $0x3d0] sm:$0xff]
        %v1351 = vld [vmem:[%s2 + $0x3d8] sm:$0xff]
        %v1352 = vld [vmem:[%s2 + $0x3e0] sm:$0xff]
        %v1353 = vld [vmem:[%s2 + $0x3e8] sm:$0xff]
        %v1354 = vld [vmem:[%s2 + $0x3f0] sm:$0xff]
        %v1355 = vld [vmem:[%s2 + $0x3f8] sm:$0xff]
        %v1356 = vld [vmem:[%s2 + $0x400] sm:$0xff]
        %v1357 = vld [vmem:[%s2 + $0x408] sm:$0xff]
        %v1358 = vld [vmem:[%s2 + $0x410] sm:$0xff]
        %v1359 = vld [vmem:[%s2 + $0x418] sm:$0xff]
        %v1360 = vld [vmem:[%s2 + $0x420] sm:$0xff]
        %v1361 = vld [vmem:[%s2 + $0x428] sm:$0xff]
        %v1362 = vld [vmem:[%s2 + $0x430] sm:$0xff]
        %v1363 = vld [vmem:[%s2 + $0x438] sm:$0xff]
        %v1364 = vld [vmem:[%s2 + $0x440] sm:$0xff]
        %v1365 = vld [vmem:[%s2 + $0x448] sm:$0xff]
        %v1366 = vld [vmem:[%s2 + $0x450] sm:$0xff]
        %v1367 = vld [vmem:[%s2 + $0x458] sm:$0xff]
        %v1368 = vld [vmem:[%s2 + $0x460] sm:$0xff]
        %v1369 = vld [vmem:[%s2 + $0x468] sm:$0xff]
        %v1370 = vld [vmem:[%s2 + $0x470] sm:$0xff]
        %v1371 = vld [vmem:[%s2 + $0x478] sm:$0xff]
        %v1372 = vld [vmem:[%s2 + $0x480] sm:$0xff]
        %v1373 = vld [vmem:[%s2 + $0x488] sm:$0xff]
        %v1374 = vld [vmem:[%s2 + $0x490] sm:$0xff]
        %v1375 = vld [vmem:[%s2 + $0x498] sm:$0xff]
        %v1376 = vld [vmem:[%s2 + $0x4a0] sm:$0xff]
        %v1377 = vld [vmem:[%s2 + $0x4a8] sm:$0xff]
        %v1378 = vld [vmem:[%s2 + $0x4b0] sm:$0xff]
        %v1379 = vld [vmem:[%s2 + $0x4b8] sm:$0xff]
        %v1380 = vld [vmem:[%s2 + $0x4c0] sm:$0xff]
        %v1381 = vld [vmem:[%s2 + $0x4c8] sm:$0xff]
        %v1382 = vld [vmem:[%s2 + $0x4d0] sm:$0xff]
        %v1383 = vld [vmem:[%s2 + $0x4d8] sm:$0xff]
        %v1384 = vld [vmem:[%s2 + $0x4e0] sm:$0xff]
        %v1385 = vld [vmem:[%s2 + $0x4e8] sm:$0xff]
        %v1386 = vld [vmem:[%s2 + $0x4f0] sm:$0xff]
        %v1387 = vld [vmem:[%s2 + $0x4f8] sm:$0xff]
        %v1388 = vld [vmem:[%s2 + $0x500] sm:$0xff]
        %v1389 = vld [vmem:[%s2 + $0x508] sm:$0xff]
        %v1390 = vld [vmem:[%s2 + $0x510] sm:$0xff]
        %v1391 = vld [vmem:[%s2 + $0x518] sm:$0xff]
        %v1392 = vld [vmem:[%s2 + $0x520] sm:$0xff]
        %v1393 = vld [vmem:[%s2 + $0x528] sm:$0xff]
        %v1394 = vld [vmem:[%s2 + $0x530] sm:$0xff]
        %v1395 = vld [vmem:[%s2 + $0x538] sm:$0xff]
        %v1396 = vld [vmem:[%s2 + $0x540] sm:$0xff]
        %v1397 = vld [vmem:[%s2 + $0x548] sm:$0xff]
        %v1398 = vld [vmem:[%s2 + $0x550] sm:$0xff]
        %v1399 = vld [vmem:[%s2 + $0x558] sm:$0xff]
        %v1400 = vld [vmem:[%s2 + $0x560] sm:$0xff]
        %v1401 = vld [vmem:[%s2 + $0x568] sm:$0xff]
        %v1402 = vld [vmem:[%s2 + $0x570] sm:$0xff]
        %v1403 = vld [vmem:[%s2 + $0x578] sm:$0xff]
        %v1404 = vld [vmem:[%s2 + $0x580] sm:$0xff]
        %v1405 = vld [vmem:[%s2 + $0x588] sm:$0xff]
        %v1406 = vld [vmem:[%s2 + $0x590] sm:$0xff]
        %v1407 = vld [vmem:[%s2 + $0x598] sm:$0xff]
        %v1408 = vld [vmem:[%s2 + $0x5a0] sm:$0xff]
        %v1409 = vld [vmem:[%s2 + $0x5a8] sm:$0xff]
        %v1410 = vld [vmem:[%s2 + $0x5b0] sm:$0xff]
        %v1411 = vld [vmem:[%s2 + $0x5b8] sm:$0xff]
        %v1412 = vld [vmem:[%s2 + $0x5c0] sm:$0xff]
        %v1413 = vld [vmem:[%s2 + $0x5c8] sm:$0xff]
        %v1414 = vld [vmem:[%s2 + $0x5d0] sm:$0xff]
        %v1415 = vld [vmem:[%s2 + $0x5d8] sm:$0xff]
        %v1416 = vld [vmem:[%s2 + $0x5e0] sm:$0xff]
        %v1417 = vld [vmem:[%s2 + $0x5e8] sm:$0xff]
        %v1418 = vld [vmem:[%s2 + $0x5f0] sm:$0xff]
        %v1419 = vld [vmem:[%s2 + $0x5f8] sm:$0xff]
        %v1420 = vld [vmem:[%s2 + $0x600] sm:$0xff]
        %v1421 = vld [vmem:[%s2 + $0x608] sm:$0xff]
        %v1422 = vld [vmem:[%s2 + $0x610] sm:$0xff]
        %v1423 = vld [vmem:[%s2 + $0x618] sm:$0xff]
        %v1424 = vld [vmem:[%s2 + $0x620] sm:$0xff]
        %v1425 = vld [vmem:[%s2 + $0x628] sm:$0xff]
        %v1426 = vld [vmem:[%s2 + $0x630] sm:$0xff]
        %v1427 = vld [vmem:[%s2 + $0x638] sm:$0xff]
        %v1428 = vld [vmem:[%s2 + $0x640] sm:$0xff]
        %v1429 = vld [vmem:[%s2 + $0x648] sm:$0xff]
        %v1430 = vld [vmem:[%s2 + $0x650] sm:$0xff]
        %v1431 = vld [vmem:[%s2 + $0x658] sm:$0xff]
        %v1432 = vld [vmem:[%s2 + $0x660] sm:$0xff]
        %v1433 = vld [vmem:[%s2 + $0x668] sm:$0xff]
        %v1434 = vld [vmem:[%s2 + $0x670] sm:$0xff]
        %v1435 = vld [vmem:[%s2 + $0x678] sm:$0xff]
        %v1436 = vld [vmem:[%s2 + $0x680] sm:$0xff]
        %v1437 = vld [vmem:[%s2 + $0x688] sm:$0xff]
        %v1438 = vld [vmem:[%s2 + $0x690] sm:$0xff]
        %v1439 = vld [vmem:[%s2 + $0x698] sm:$0xff]
        %v1440 = vld [vmem:[%s2 + $0x6a0] sm:$0xff]
        %v1441 = vld [vmem:[%s2 + $0x6a8] sm:$0xff]
        %v1442 = vld [vmem:[%s2 + $0x6b0] sm:$0xff]
        %v1443 = vld [vmem:[%s2 + $0x6b8] sm:$0xff]
        %v1444 = vld [vmem:[%s2 + $0x6c0] sm:$0xff]
        %v1445 = vld [vmem:[%s2 + $0x6c8] sm:$0xff]
        %v1446 = vld [vmem:[%s2 + $0x6d0] sm:$0xff]
        %v1447 = vld [vmem:[%s2 + $0x6d8] sm:$0xff]
        %v1448 = vld [vmem:[%s2 + $0x6e0] sm:$0xff]
        %v1449 = vld [vmem:[%s2 + $0x6e8] sm:$0xff]
        %v1450 = vld [vmem:[%s2 + $0x6f0] sm:$0xff]
        %v1451 = vld [vmem:[%s2 + $0x6f8] sm:$0xff]
        %v1452 = vld [vmem:[%s2 + $0x700] sm:$0xff]
        %v1453 = vld [vmem:[%s2 + $0x708] sm:$0xff]
        %v1454 = vld [vmem:[%s2 + $0x710] sm:$0xff]
        %v1455 = vld [vmem:[%s2 + $0x718] sm:$0xff]
        %v1456 = vld [vmem:[%s2 + $0x720] sm:$0xff]
        %v1457 = vld [vmem:[%s2 + $0x728] sm:$0xff]
        %v1458 = vld [vmem:[%s2 + $0x730] sm:$0xff]
        %v1459 = vld [vmem:[%s2 + $0x738] sm:$0xff]
        %v1460 = vld [vmem:[%s2 + $0x740] sm:$0xff]
        %v1461 = vld [vmem:[%s2 + $0x748] sm:$0xff]
        %v1462 = vld [vmem:[%s2 + $0x750] sm:$0xff]
        %v1463 = vld [vmem:[%s2 + $0x758] sm:$0xff]
        %v1464 = vld [vmem:[%s2 + $0x760] sm:$0xff]
        %v1465 = vld [vmem:[%s2 + $0x768] sm:$0xff]
        %v1466 = vld [vmem:[%s2 + $0x770] sm:$0xff]
        %v1467 = vld [vmem:[%s2 + $0x778] sm:$0xff]
        %v1468 = vld [vmem:[%s2 + $0x780] sm:$0xff]
        %v1469 = vld [vmem:[%s2 + $0x788] sm:$0xff]
        %v1470 = vld [vmem:[%s2 + $0x790] sm:$0xff]
        %v1471 = vld [vmem:[%s2 + $0x798] sm:$0xff]
        %v1472 = vld [vmem:[%s2 + $0x7a0] sm:$0xff]
        %v1473 = vld [vmem:[%s2 + $0x7a8] sm:$0xff]
        %v1474 = vld [vmem:[%s2 + $0x7b0] sm:$0xff]
        %v1475 = vld [vmem:[%s2 + $0x7b8] sm:$0xff]
        %v1476 = vld [vmem:[%s2 + $0x7c0] sm:$0xff]
        %v1477 = vld [vmem:[%s2 + $0x7c8] sm:$0xff]
        %v1478 = vld [vmem:[%s2 + $0x7d0] sm:$0xff]
        %v1479 = vld [vmem:[%s2 + $0x7d8] sm:$0xff]
        %v1480 = vld [vmem:[%s2 + $0x7e0] sm:$0xff]
        %v1481 = vld [vmem:[%s2 + $0x7e8] sm:$0xff]
        %v1482 = vld [vmem:[%s2 + $0x7f0] sm:$0xff]
        %v1483 = vld [vmem:[%s2 + $0x7f8] sm:$0xff]
        %v1484 = vld [vmem:[%s2 + $0x800] sm:$0xff]
        %v1485 = vld [vmem:[%s2 + $0x808] sm:$0xff]
        %v1486 = vld [vmem:[%s2 + $0x810] sm:$0xff]
        %v1487 = vld [vmem:[%s2 + $0x818] sm:$0xff]
        %v1488 = vld [vmem:[%s2 + $0x820] sm:$0xff]
        %v1489 = vld [vmem:[%s2 + $0x828] sm:$0xff]
        %v1490 = vld [vmem:[%s2 + $0x830] sm:$0xff]
        %v1491 = vld [vmem:[%s2 + $0x838] sm:$0xff]
        %v1492 = vld [vmem:[%s2 + $0x840] sm:$0xff]
        %v1493 = vld [vmem:[%s2 + $0x848] sm:$0xff]
        %v1494 = vld [vmem:[%s2 + $0x850] sm:$0xff]
        %v1495 = vld [vmem:[%s2 + $0x858] sm:$0xff]
        %v1496 = vld [vmem:[%s2 + $0x860] sm:$0xff]
        %v1497 = vld [vmem:[%s2 + $0x868] sm:$0xff]
        %v1498 = vld [vmem:[%s2 + $0x870] sm:$0xff]
        %v1499 = vld [vmem:[%s2 + $0x878] sm:$0xff]
        %v1500 = vld [vmem:[%s2 + $0x880] sm:$0xff]
        %v1501 = vld [vmem:[%s2 + $0x888] sm:$0xff]
        %v1502 = vld [vmem:[%s2 + $0x890] sm:$0xff]
        %v1503 = vld [vmem:[%s2 + $0x898] sm:$0xff]
        %v1504 = vld [vmem:[%s2 + $0x8a0] sm:$0xff]
        %v1505 = vld [vmem:[%s2 + $0x8a8] sm:$0xff]
        %v1506 = vld [vmem:[%s2 + $0x8b0] sm:$0xff]
        %v1507 = vld [vmem:[%s2 + $0x8b8] sm:$0xff]
        %v1508 = vld [vmem:[%s2 + $0x8c0] sm:$0xff]
        %v1509 = vld [vmem:[%s2 + $0x8c8] sm:$0xff]
        %v1510 = vld [vmem:[%s2 + $0x8d0] sm:$0xff]
        %v1511 = vld [vmem:[%s2 + $0x8d8] sm:$0xff]
        %v1512 = vld [vmem:[%s2 + $0x8e0] sm:$0xff]
        %v1513 = vld [vmem:[%s2 + $0x8e8] sm:$0xff]
        %v1514 = vld [vmem:[%s2 + $0x8f0] sm:$0xff]
        %v1515 = vld [vmem:[%s2 + $0x8f8] sm:$0xff]
        %v1516 = vld [vmem:[%s2 + $0x900] sm:$0xff]
        %v1517 = vld [vmem:[%s2 + $0x908] sm:$0xff]
        %v1518 = vld [vmem:[%s2 + $0x910] sm:$0xff]
        %v1519 = vld [vmem:[%s2 + $0x918] sm:$0xff]
        %v1520 = vld [vmem:[%s2 + $0x920] sm:$0xff]
        %v1521 = vld [vmem:[%s2 + $0x928] sm:$0xff]
        %v1522 = vld [vmem:[%s2 + $0x930] sm:$0xff]
        %v1523 = vld [vmem:[%s2 + $0x938] sm:$0xff]
        %v1524 = vld [vmem:[%s2 + $0x940] sm:$0xff]
        %v1525 = vld [vmem:[%s2 + $0x948] sm:$0xff]
        %v1526 = vld [vmem:[%s2 + $0x950] sm:$0xff]
        %v1527 = vld [vmem:[%s2 + $0x958] sm:$0xff]
        %v1528 = vld [vmem:[%s2 + $0x960] sm:$0xff]
        %v1529 = vld [vmem:[%s2 + $0x968] sm:$0xff]
        %v1530 = vld [vmem:[%s2 + $0x970] sm:$0xff]
        %v1531 = vld [vmem:[%s2 + $0x978] sm:$0xff]
        %v1532 = vld [vmem:[%s2 + $0x980] sm:$0xff]
        %v1533 = vld [vmem:[%s2 + $0x988] sm:$0xff]
        %v1534 = vld [vmem:[%s2 + $0x990] sm:$0xff]
        %v1535 = vld [vmem:[%s2 + $0x998] sm:$0xff]
        %v1536 = vld [vmem:[%s2 + $0x9a0] sm:$0xff]
        %v1537 = vld [vmem:[%s2 + $0x9a8] sm:$0xff]
        %v1538 = vld [vmem:[%s2 + $0x9b0] sm:$0xff]
        %v1539 = vld [vmem:[%s2 + $0x9b8] sm:$0xff]
        %v1540 = vld [vmem:[%s2 + $0x9c0] sm:$0xff]
        %v1541 = vld [vmem:[%s2 + $0x9c8] sm:$0xff]
        %v1542 = vld [vmem:[%s2 + $0x9d0] sm:$0xff]
        %v1543 = vld [vmem:[%s2 + $0x9d8] sm:$0xff]
        %v1544 = vld [vmem:[%s2 + $0x9e0] sm:$0xff]
        %v1545 = vld [vmem:[%s2 + $0x9e8] sm:$0xff]
        %v1546 = vld [vmem:[%s2 + $0x9f0] sm:$0xff]
        %v1547 = vld [vmem:[%s2 + $0x9f8] sm:$0xff]
        %v1548 = vld [vmem:[%s2 + $0xa00] sm:$0xff]
        %v1549 = vld [vmem:[%s2 + $0xa08] sm:$0xff]
        %v1550 = vld [vmem:[%s2 + $0xa10] sm:$0xff]
        %v1551 = vld [vmem:[%s2 + $0xa18] sm:$0xff]
        %v1552 = vld [vmem:[%s2 + $0xa20] sm:$0xff]
        %v1553 = vld [vmem:[%s2 + $0xa28] sm:$0xff]
        %v1554 = vld [vmem:[%s2 + $0xa30] sm:$0xff]
        %v1555 = vld [vmem:[%s2 + $0xa38] sm:$0xff]
        %v1556 = vld [vmem:[%s2 + $0xa40] sm:$0xff]
        %v1557 = vld [vmem:[%s2 + $0xa48] sm:$0xff]
        %v1558 = vld [vmem:[%s2 + $0xa50] sm:$0xff]
        %v1559 = vld [vmem:[%s2 + $0xa58] sm:$0xff]
        %v1560 = vld [vmem:[%s2 + $0xa60] sm:$0xff]
        %v1561 = vld [vmem:[%s2 + $0xa68] sm:$0xff]
        %v1562 = vld [vmem:[%s2 + $0xa70] sm:$0xff]
        %v1563 = vld [vmem:[%s2 + $0xa78] sm:$0xff]
        %v1564 = vld [vmem:[%s2 + $0xa80] sm:$0xff]
        %v1565 = vld [vmem:[%s2 + $0xa88] sm:$0xff]
        %v1566 = vld [vmem:[%s2 + $0xa90] sm:$0xff]
        %v1567 = vld [vmem:[%s2 + $0xa98] sm:$0xff]
        %v1568 = vld [vmem:[%s2 + $0xaa0] sm:$0xff]
        %v1569 = vld [vmem:[%s2 + $0xaa8] sm:$0xff]
        %v1570 = vld [vmem:[%s2 + $0xab0] sm:$0xff]
        %v1571 = vld [vmem:[%s2 + $0xab8] sm:$0xff]
        %v1572 = vld [vmem:[%s2 + $0xac0] sm:$0xff]
        %v1573 = vld [vmem:[%s2 + $0xac8] sm:$0xff]
        %v1574 = vld [vmem:[%s2 + $0xad0] sm:$0xff]
        %v1575 = vld [vmem:[%s2 + $0xad8] sm:$0xff]
        %v1576 = vld [vmem:[%s2 + $0xae0] sm:$0xff]
        %v1577 = vld [vmem:[%s2 + $0xae8] sm:$0xff]
        %v1578 = vld [vmem:[%s2 + $0xaf0] sm:$0xff]
        %v1579 = vld [vmem:[%s2 + $0xaf8] sm:$0xff]
        %v1580 = vld [vmem:[%s2 + $0xb00] sm:$0xff]
        %v1581 = vld [vmem:[%s2 + $0xb08] sm:$0xff]
        %v1582 = vld [vmem:[%s2 + $0xb10] sm:$0xff]
        %v1583 = vld [vmem:[%s2 + $0xb18] sm:$0xff]
        %v1584 = vld [vmem:[%s2 + $0xb20] sm:$0xff]
        %v1585 = vld [vmem:[%s2 + $0xb28] sm:$0xff]
        %v1586 = vld [vmem:[%s2 + $0xb30] sm:$0xff]
        %v1587 = vld [vmem:[%s2 + $0xb38] sm:$0xff]
        %v1588 = vld [vmem:[%s2 + $0xb40] sm:$0xff]
        %v1589 = vld [vmem:[%s2 + $0xb48] sm:$0xff]
        %v1590 = vld [vmem:[%s2 + $0xb50] sm:$0xff]
        %v1591 = vld [vmem:[%s2 + $0xb58] sm:$0xff]
        %v1592 = vld [vmem:[%s2 + $0xb60] sm:$0xff]
        %v1593 = vld [vmem:[%s2 + $0xb68] sm:$0xff]
        %v1594 = vld [vmem:[%s2 + $0xb70] sm:$0xff]
        %v1595 = vld [vmem:[%s2 + $0xb78] sm:$0xff]
        %v1596 = vld [vmem:[%s2 + $0xb80] sm:$0xff]
        %v1597 = vld [vmem:[%s2 + $0xb88] sm:$0xff]
        %v1598 = vld [vmem:[%s2 + $0xb90] sm:$0xff]
        %v1599 = vld [vmem:[%s2 + $0xb98] sm:$0xff]
        %v1600 = vld [vmem:[%s2 + $0xba0] sm:$0xff]
        %v1601 = vld [vmem:[%s2 + $0xba8] sm:$0xff]
        %v1602 = vld [vmem:[%s2 + $0xbb0] sm:$0xff]
        %v1603 = vld [vmem:[%s2 + $0xbb8] sm:$0xff]
        %v1604 = vld [vmem:[%s2 + $0xbc0] sm:$0xff]
        %v1605 = vld [vmem:[%s2 + $0xbc8] sm:$0xff]
        %v1606 = vld [vmem:[%s2 + $0xbd0] sm:$0xff]
        %v1607 = vld [vmem:[%s2 + $0xbd8] sm:$0xff]
        %v1608 = vld [vmem:[%s2 + $0xbe0] sm:$0xff]
        %v1609 = vld [vmem:[%s2 + $0xbe8] sm:$0xff]
        %v1610 = vld [vmem:[%s2 + $0xbf0] sm:$0xff]
        %v1611 = vld [vmem:[%s2 + $0xbf8] sm:$0xff]
        %1612 = vmatprep.subr.mxu0 %v1229
        %1613 = vmatpush1.msra.mxu0 %v1228
        %1614 = vmatprep.subr.mxu0 %v1233
        %1615 = vmatpush1.msra.mxu0 %v1232
        %1616 = vmatprep.subr.mxu0 %v1237
        %1617 = vmatpush1.msra.mxu0 %v1236
        %1618 = vmatprep.subr.mxu0 %v1241
        %1619 = vmatpush1.msra.mxu0 %v1240
        %1620 = vmatprep.subr.mxu0 %v1245
        %1621 = vmatpush1.msra.mxu0 %v1244
        %1622 = vmatprep.subr.mxu0 %v1249
        %1623 = vmatpush1.msra.mxu0 %v1248
        %1624 = vmatprep.subr.mxu0 %v1253
        %1625 = vmatpush1.msra.mxu0 %v1252
        %1626 = vmatprep.subr.mxu0 %v1257
        %1627 = vmatpush1.msra.mxu0 %v1256
        %1628 = vmatprep.subr.mxu0 %v1261
        %1629 = vmatpush1.msra.mxu0 %v1260
        %1630 = vmatprep.subr.mxu0 %v1265
        %1631 = vmatpush1.msra.mxu0 %v1264
        %1632 = vmatprep.subr.mxu0 %v1269
        %1633 = vmatpush1.msra.mxu0 %v1268
        %1634 = vmatprep.subr.mxu0 %v1273
        %1635 = vmatpush1.msra.mxu0 %v1272
        %1636 = vmatprep.subr.mxu0 %v1277
        %1637 = vmatpush1.msra.mxu0 %v1276
        %1638 = vmatprep.subr.mxu0 %v1281
        %1639 = vmatpush1.msra.mxu0 %v1280
        %1640 = vmatprep.subr.mxu0 %v1285
        %1641 = vmatpush1.msra.mxu0 %v1284
        %1642 = vmatprep.subr.mxu0 %v1289
        %1643 = vmatpush1.msra.mxu0 %v1288
        %1644 = vmatprep.subr.mxu0 %v1293
        %1645 = vmatpush1.msra.mxu0 %v1292
        %1646 = vmatprep.subr.mxu0 %v1297
        %1647 = vmatpush1.msra.mxu0 %v1296
        %1648 = vmatprep.subr.mxu0 %v1301
        %1649 = vmatpush1.msra.mxu0 %v1300
        %1650 = vmatprep.subr.mxu0 %v1305
        %1651 = vmatpush1.msra.mxu0 %v1304
        %1652 = vmatprep.subr.mxu0 %v1309
        %1653 = vmatpush1.msra.mxu0 %v1308
        %1654 = vmatprep.subr.mxu0 %v1313
        %1655 = vmatpush1.msra.mxu0 %v1312
        %1656 = vmatprep.subr.mxu0 %v1317
        %1657 = vmatpush1.msra.mxu0 %v1316
        %1658 = vmatprep.subr.mxu0 %v1321
        %1659 = vmatpush1.msra.mxu0 %v1320
        %1660 = vmatprep.subr.mxu0 %v1325
        %1661 = vmatpush1.msra.mxu0 %v1324
        %1662 = vmatprep.subr.mxu0 %v1329
        %1663 = vmatpush1.msra.mxu0 %v1328
        %1664 = vmatprep.subr.mxu0 %v1333
        %1665 = vmatpush1.msra.mxu0 %v1332
        %1666 = vmatprep.subr.mxu0 %v1337
        %1667 = vmatpush1.msra.mxu0 %v1336
        %1668 = vmatprep.subr.mxu0 %v1341
        %1669 = vmatpush1.msra.mxu0 %v1340
        %1670 = vmatprep.subr.mxu0 %v1345
        %1671 = vmatpush1.msra.mxu0 %v1344
        %1672 = vmatprep.subr.mxu0 %v1349
        %1673 = vmatpush1.msra.mxu0 %v1348
        %1674 = vmatprep.subr.mxu0 %v1353
        %1675 = vmatpush1.msra.mxu0 %v1352
        %1676 = vmatprep.mubr.f32.mxu0 %v413
        %1677 = vmatmul.mubr.f32.gmra.mrb[0].mxu0 %v412
        %v1678 = vpop.f32.mrb[0].mxu0
        %v1679 = vadd.f32 0.0, %v1678
        %v1680 = vpop.f32.mrb[0].mxu0
        %v1681 = vadd.f32 0.0, %v1680
        %1682 = vdwg.mxu0
        %1683 = vmatprep.subr.mxu0 %v1357
        %1684 = vmatpush1.msra.mxu0 %v1356
        %1685 = vmatprep.subr.mxu0 %v1361
        %1686 = vmatpush1.msra.mxu0 %v1360
        %1687 = vmatprep.subr.mxu0 %v1365
        %1688 = vmatpush1.msra.mxu0 %v1364
        %1689 = vmatprep.subr.mxu0 %v1369
        %1690 = vmatpush1.msra.mxu0 %v1368
        %1691 = vmatprep.subr.mxu0 %v1373
        %1692 = vmatpush1.msra.mxu0 %v1372
        %1693 = vmatprep.subr.mxu0 %v1377
        %1694 = vmatpush1.msra.mxu0 %v1376
        %1695 = vmatprep.subr.mxu0 %v1381
        %1696 = vmatpush1.msra.mxu0 %v1380
        %1697 = vmatprep.subr.mxu0 %v1385
        %1698 = vmatpush1.msra.mxu0 %v1384
        %1699 = vmatprep.subr.mxu0 %v1389
        %1700 = vmatpush1.msra.mxu0 %v1388
        %1701 = vmatprep.subr.mxu0 %v1393
        %1702 = vmatpush1.msra.mxu0 %v1392
        %1703 = vmatprep.subr.mxu0 %v1397
        %1704 = vmatpush1.msra.mxu0 %v1396
        %1705 = vmatprep.subr.mxu0 %v1401
        %1706 = vmatpush1.msra.mxu0 %v1400
        %1707 = vmatprep.subr.mxu0 %v1405
        %1708 = vmatpush1.msra.mxu0 %v1404
        %1709 = vmatprep.subr.mxu0 %v1409
        %1710 = vmatpush1.msra.mxu0 %v1408
        %1711 = vmatprep.subr.mxu0 %v1413
        %1712 = vmatpush1.msra.mxu0 %v1412
        %1713 = vmatprep.subr.mxu0 %v1417
        %1714 = vmatpush1.msra.mxu0 %v1416
        %1715 = vmatprep.subr.mxu0 %v1421
        %1716 = vmatpush1.msra.mxu0 %v1420
        %1717 = vmatprep.subr.mxu0 %v1425
        %1718 = vmatpush1.msra.mxu0 %v1424
        %1719 = vmatprep.subr.mxu0 %v1429
        %1720 = vmatpush1.msra.mxu0 %v1428
        %1721 = vmatprep.subr.mxu0 %v1433
        %1722 = vmatpush1.msra.mxu0 %v1432
        %1723 = vmatprep.subr.mxu0 %v1437
        %1724 = vmatpush1.msra.mxu0 %v1436
        %1725 = vmatprep.subr.mxu0 %v1441
        %1726 = vmatpush1.msra.mxu0 %v1440
        %1727 = vmatprep.subr.mxu0 %v1445
        %1728 = vmatpush1.msra.mxu0 %v1444
        %1729 = vmatprep.subr.mxu0 %v1449
        %1730 = vmatpush1.msra.mxu0 %v1448
        %1731 = vmatprep.subr.mxu0 %v1453
        %1732 = vmatpush1.msra.mxu0 %v1452
        %1733 = vmatprep.subr.mxu0 %v1457
        %1734 = vmatpush1.msra.mxu0 %v1456
        %1735 = vmatprep.subr.mxu0 %v1461
        %1736 = vmatpush1.msra.mxu0 %v1460
        %1737 = vmatprep.subr.mxu0 %v1465
        %1738 = vmatpush1.msra.mxu0 %v1464
        %1739 = vmatprep.subr.mxu0 %v1469
        %1740 = vmatpush1.msra.mxu0 %v1468
        %1741 = vmatprep.subr.mxu0 %v1473
        %1742 = vmatpush1.msra.mxu0 %v1472
        %1743 = vmatprep.subr.mxu0 %v1477
        %1744 = vmatpush1.msra.mxu0 %v1476
        %1745 = vmatprep.subr.mxu0 %v1481
        %1746 = vmatpush1.msra.mxu0 %v1480
        %1747 = vmatprep.mubr.f32.mxu0 %v415
        %1748 = vmatmul.mubr.f32.gmra.mrb[0].mxu0 %v414
        %v1749 = vpop.f32.mrb[0].mxu0
        %v1750 = vadd.f32 %v1679, %v1749
        %v1751 = vpop.f32.mrb[0].mxu0
        %v1752 = vadd.f32 %v1681, %v1751
        %1753 = vdwg.mxu0
        %1754 = vmatprep.subr.mxu0 %v1485
        %1755 = vmatpush1.msra.mxu0 %v1484
        %1756 = vmatprep.subr.mxu0 %v1489
        %1757 = vmatpush1.msra.mxu0 %v1488
        %1758 = vmatprep.subr.mxu0 %v1493
        %1759 = vmatpush1.msra.mxu0 %v1492
        %1760 = vmatprep.subr.mxu0 %v1497
        %1761 = vmatpush1.msra.mxu0 %v1496
        %1762 = vmatprep.subr.mxu0 %v1501
        %1763 = vmatpush1.msra.mxu0 %v1500
        %1764 = vmatprep.subr.mxu0 %v1505
        %1765 = vmatpush1.msra.mxu0 %v1504
        %1766 = vmatprep.subr.mxu0 %v1509
        %1767 = vmatpush1.msra.mxu0 %v1508
        %1768 = vmatprep.subr.mxu0 %v1513
        %1769 = vmatpush1.msra.mxu0 %v1512
        %1770 = vmatprep.subr.mxu0 %v1517
        %1771 = vmatpush1.msra.mxu0 %v1516
        %1772 = vmatprep.subr.mxu0 %v1521
        %1773 = vmatpush1.msra.mxu0 %v1520
        %1774 = vmatprep.subr.mxu0 %v1525
        %1775 = vmatpush1.msra.mxu0 %v1524
        %1776 = vmatprep.subr.mxu0 %v1529
        %1777 = vmatpush1.msra.mxu0 %v1528
        %1778 = vmatprep.subr.mxu0 %v1533
        %1779 = vmatpush1.msra.mxu0 %v1532
        %1780 = vmatprep.subr.mxu0 %v1537
        %1781 = vmatpush1.msra.mxu0 %v1536
        %1782 = vmatprep.subr.mxu0 %v1541
        %1783 = vmatpush1.msra.mxu0 %v1540
        %1784 = vmatprep.subr.mxu0 %v1545
        %1785 = vmatpush1.msra.mxu0 %v1544
        %1786 = vmatprep.subr.mxu0 %v1549
        %1787 = vmatpush1.msra.mxu0 %v1548
        %1788 = vmatprep.subr.mxu0 %v1553
        %1789 = vmatpush1.msra.mxu0 %v1552
        %1790 = vmatprep.subr.mxu0 %v1557
        %1791 = vmatpush1.msra.mxu0 %v1556
        %1792 = vmatprep.subr.mxu0 %v1561
        %1793 = vmatpush1.msra.mxu0 %v1560
        %1794 = vmatprep.subr.mxu0 %v1565
        %1795 = vmatpush1.msra.mxu0 %v1564
        %1796 = vmatprep.subr.mxu0 %v1569
        %1797 = vmatpush1.msra.mxu0 %v1568
        %1798 = vmatprep.subr.mxu0 %v1573
        %1799 = vmatpush1.msra.mxu0 %v1572
        %1800 = vmatprep.subr.mxu0 %v1577
        %1801 = vmatpush1.msra.mxu0 %v1576
        %1802 = vmatprep.subr.mxu0 %v1581
        %1803 = vmatpush1.msra.mxu0 %v1580
        %1804 = vmatprep.subr.mxu0 %v1585
        %1805 = vmatpush1.msra.mxu0 %v1584
        %1806 = vmatprep.subr.mxu0 %v1589
        %1807 = vmatpush1.msra.mxu0 %v1588
        %1808 = vmatprep.subr.mxu0 %v1593
        %1809 = vmatpush1.msra.mxu0 %v1592
        %1810 = vmatprep.subr.mxu0 %v1597
        %1811 = vmatpush1.msra.mxu0 %v1596
        %1812 = vmatprep.subr.mxu0 %v1601
        %1813 = vmatpush1.msra.mxu0 %v1600
        %1814 = vmatprep.subr.mxu0 %v1605
        %1815 = vmatpush1.msra.mxu0 %v1604
        %1816 = vmatprep.subr.mxu0 %v1609
        %1817 = vmatpush1.msra.mxu0 %v1608
        %1818 = vmatprep.mubr.f32.mxu0 %v417
        %1819 = vmatmul.mubr.f32.gmra.mrb[0].mxu0 %v416
        %v1820 = vpop.f32.mrb[0].mxu0
        %v1821 = vadd.f32 %v1750, %v1820
        %v1822 = vpop.f32.mrb[0].mxu0
        %v1823 = vadd.f32 %v1752, %v1822
        %1824 = vdwg.mxu0
        %1825 = vmatprep.subr.mxu0 %v1231
        %1826 = vmatpush1.msra.mxu0 %v1230
        %1827 = vmatprep.subr.mxu0 %v1235
        %1828 = vmatpush1.msra.mxu0 %v1234
        %1829 = vmatprep.subr.mxu0 %v1239
        %1830 = vmatpush1.msra.mxu0 %v1238
        %1831 = vmatprep.subr.mxu0 %v1243
        %1832 = vmatpush1.msra.mxu0 %v1242
        %1833 = vmatprep.subr.mxu0 %v1247
        %1834 = vmatpush1.msra.mxu0 %v1246
        %1835 = vmatprep.subr.mxu0 %v1251
        %1836 = vmatpush1.msra.mxu0 %v1250
        %1837 = vmatprep.subr.mxu0 %v1255
        %1838 = vmatpush1.msra.mxu0 %v1254
        %1839 = vmatprep.subr.mxu0 %v1259
        %1840 = vmatpush1.msra.mxu0 %v1258
        %1841 = vmatprep.subr.mxu0 %v1263
        %1842 = vmatpush1.msra.mxu0 %v1262
        %1843 = vmatprep.subr.mxu0 %v1267
        %1844 = vmatpush1.msra.mxu0 %v1266
        %1845 = vmatprep.subr.mxu0 %v1271
        %1846 = vmatpush1.msra.mxu0 %v1270
        %1847 = vmatprep.subr.mxu0 %v1275
        %1848 = vmatpush1.msra.mxu0 %v1274
        %1849 = vmatprep.subr.mxu0 %v1279
        %1850 = vmatpush1.msra.mxu0 %v1278
        %1851 = vmatprep.subr.mxu0 %v1283
        %1852 = vmatpush1.msra.mxu0 %v1282
        %1853 = vmatprep.subr.mxu0 %v1287
        %1854 = vmatpush1.msra.mxu0 %v1286
        %1855 = vmatprep.subr.mxu0 %v1291
        %1856 = vmatpush1.msra.mxu0 %v1290
        %1857 = vmatprep.subr.mxu0 %v1295
        %1858 = vmatpush1.msra.mxu0 %v1294
        %1859 = vmatprep.subr.mxu0 %v1299
        %1860 = vmatpush1.msra.mxu0 %v1298
        %1861 = vmatprep.subr.mxu0 %v1303
        %1862 = vmatpush1.msra.mxu0 %v1302
        %1863 = vmatprep.subr.mxu0 %v1307
        %1864 = vmatpush1.msra.mxu0 %v1306
        %1865 = vmatprep.subr.mxu0 %v1311
        %1866 = vmatpush1.msra.mxu0 %v1310
        %1867 = vmatprep.subr.mxu0 %v1315
        %1868 = vmatpush1.msra.mxu0 %v1314
        %1869 = vmatprep.subr.mxu0 %v1319
        %1870 = vmatpush1.msra.mxu0 %v1318
        %1871 = vmatprep.subr.mxu0 %v1323
        %1872 = vmatpush1.msra.mxu0 %v1322
        %1873 = vmatprep.subr.mxu0 %v1327
        %1874 = vmatpush1.msra.mxu0 %v1326
        %1875 = vmatprep.subr.mxu0 %v1331
        %1876 = vmatpush1.msra.mxu0 %v1330
        %1877 = vmatprep.subr.mxu0 %v1335
        %1878 = vmatpush1.msra.mxu0 %v1334
        %1879 = vmatprep.subr.mxu0 %v1339
        %1880 = vmatpush1.msra.mxu0 %v1338
        %1881 = vmatprep.subr.mxu0 %v1343
        %1882 = vmatpush1.msra.mxu0 %v1342
        %1883 = vmatprep.subr.mxu0 %v1347
        %1884 = vmatpush1.msra.mxu0 %v1346
        %1885 = vmatprep.subr.mxu0 %v1351
        %1886 = vmatpush1.msra.mxu0 %v1350
        %1887 = vmatprep.subr.mxu0 %v1355
        %1888 = vmatpush1.msra.mxu0 %v1354
        %1889 = vmatprep.mubr.f32.mxu0 %v413
        %1890 = vmatmul.mubr.f32.gmra.mrb[0].mxu0 %v412
        %v1891 = vpop.f32.mrb[0].mxu0
        %v1892 = vadd.f32 0.0, %v1891
        %v1893 = vpop.f32.mrb[0].mxu0
        %v1894 = vadd.f32 0.0, %v1893
        %1895 = vdwg.mxu0
        %1896 = vmatprep.subr.mxu0 %v1359
        %1897 = vmatpush1.msra.mxu0 %v1358
        %1898 = vmatprep.subr.mxu0 %v1363
        %1899 = vmatpush1.msra.mxu0 %v1362
        %1900 = vmatprep.subr.mxu0 %v1367
        %1901 = vmatpush1.msra.mxu0 %v1366
        %1902 = vmatprep.subr.mxu0 %v1371
        %1903 = vmatpush1.msra.mxu0 %v1370
        %1904 = vmatprep.subr.mxu0 %v1375
        %1905 = vmatpush1.msra.mxu0 %v1374
        %1906 = vmatprep.subr.mxu0 %v1379
        %1907 = vmatpush1.msra.mxu0 %v1378
        %1908 = vmatprep.subr.mxu0 %v1383
        %1909 = vmatpush1.msra.mxu0 %v1382
        %1910 = vmatprep.subr.mxu0 %v1387
        %1911 = vmatpush1.msra.mxu0 %v1386
        %1912 = vmatprep.subr.mxu0 %v1391
        %1913 = vmatpush1.msra.mxu0 %v1390
        %1914 = vmatprep.subr.mxu0 %v1395
        %1915 = vmatpush1.msra.mxu0 %v1394
        %1916 = vmatprep.subr.mxu0 %v1399
        %1917 = vmatpush1.msra.mxu0 %v1398
        %1918 = vmatprep.subr.mxu0 %v1403
        %1919 = vmatpush1.msra.mxu0 %v1402
        %1920 = vmatprep.subr.mxu0 %v1407
        %1921 = vmatpush1.msra.mxu0 %v1406
        %1922 = vmatprep.subr.mxu0 %v1411
        %1923 = vmatpush1.msra.mxu0 %v1410
        %1924 = vmatprep.subr.mxu0 %v1415
        %1925 = vmatpush1.msra.mxu0 %v1414
        %1926 = vmatprep.subr.mxu0 %v1419
        %1927 = vmatpush1.msra.mxu0 %v1418
        %1928 = vmatprep.subr.mxu0 %v1423
        %1929 = vmatpush1.msra.mxu0 %v1422
        %1930 = vmatprep.subr.mxu0 %v1427
        %1931 = vmatpush1.msra.mxu0 %v1426
        %1932 = vmatprep.subr.mxu0 %v1431
        %1933 = vmatpush1.msra.mxu0 %v1430
        %1934 = vmatprep.subr.mxu0 %v1435
        %1935 = vmatpush1.msra.mxu0 %v1434
        %1936 = vmatprep.subr.mxu0 %v1439
        %1937 = vmatpush1.msra.mxu0 %v1438
        %1938 = vmatprep.subr.mxu0 %v1443
        %1939 = vmatpush1.msra.mxu0 %v1442
        %1940 = vmatprep.subr.mxu0 %v1447
        %1941 = vmatpush1.msra.mxu0 %v1446
        %1942 = vmatprep.subr.mxu0 %v1451
        %1943 = vmatpush1.msra.mxu0 %v1450
        %1944 = vmatprep.subr.mxu0 %v1455
        %1945 = vmatpush1.msra.mxu0 %v1454
        %1946 = vmatprep.subr.mxu0 %v1459
        %1947 = vmatpush1.msra.mxu0 %v1458
        %1948 = vmatprep.subr.mxu0 %v1463
        %1949 = vmatpush1.msra.mxu0 %v1462
        %1950 = vmatprep.subr.mxu0 %v1467
        %1951 = vmatpush1.msra.mxu0 %v1466
        %1952 = vmatprep.subr.mxu0 %v1471
        %1953 = vmatpush1.msra.mxu0 %v1470
        %1954 = vmatprep.subr.mxu0 %v1475
        %1955 = vmatpush1.msra.mxu0 %v1474
        %1956 = vmatprep.subr.mxu0 %v1479
        %1957 = vmatpush1.msra.mxu0 %v1478
        %1958 = vmatprep.subr.mxu0 %v1483
        %1959 = vmatpush1.msra.mxu0 %v1482
        %1960 = vmatprep.mubr.f32.mxu0 %v415
        %1961 = vmatmul.mubr.f32.gmra.mrb[0].mxu0 %v414
        %v1962 = vpop.f32.mrb[0].mxu0
        %v1963 = vadd.f32 %v1892, %v1962
        %v1964 = vpop.f32.mrb[0].mxu0
        %v1965 = vadd.f32 %v1894, %v1964
        %1966 = vdwg.mxu0
        %1967 = vmatprep.subr.mxu0 %v1487
        %1968 = vmatpush1.msra.mxu0 %v1486
        %1969 = vmatprep.subr.mxu0 %v1491
        %1970 = vmatpush1.msra.mxu0 %v1490
        %1971 = vmatprep.subr.mxu0 %v1495
        %1972 = vmatpush1.msra.mxu0 %v1494
        %1973 = vmatprep.subr.mxu0 %v1499
        %1974 = vmatpush1.msra.mxu0 %v1498
        %1975 = vmatprep.subr.mxu0 %v1503
        %1976 = vmatpush1.msra.mxu0 %v1502
        %1977 = vmatprep.subr.mxu0 %v1507
        %1978 = vmatpush1.msra.mxu0 %v1506
        %1979 = vmatprep.subr.mxu0 %v1511
        %1980 = vmatpush1.msra.mxu0 %v1510
        %1981 = vmatprep.subr.mxu0 %v1515
        %1982 = vmatpush1.msra.mxu0 %v1514
        %1983 = vmatprep.subr.mxu0 %v1519
        %1984 = vmatpush1.msra.mxu0 %v1518
        %1985 = vmatprep.subr.mxu0 %v1523
        %1986 = vmatpush1.msra.mxu0 %v1522
        %1987 = vmatprep.subr.mxu0 %v1527
        %1988 = vmatpush1.msra.mxu0 %v1526
        %1989 = vmatprep.subr.mxu0 %v1531
        %1990 = vmatpush1.msra.mxu0 %v1530
        %1991 = vmatprep.subr.mxu0 %v1535
        %1992 = vmatpush1.msra.mxu0 %v1534
        %1993 = vmatprep.subr.mxu0 %v1539
        %1994 = vmatpush1.msra.mxu0 %v1538
        %1995 = vmatprep.subr.mxu0 %v1543
        %1996 = vmatpush1.msra.mxu0 %v1542
        %1997 = vmatprep.subr.mxu0 %v1547
        %1998 = vmatpush1.msra.mxu0 %v1546
        %1999 = vmatprep.subr.mxu0 %v1551
        %2000 = vmatpush1.msra.mxu0 %v1550
        %2001 = vmatprep.subr.mxu0 %v1555
        %2002 = vmatpush1.msra.mxu0 %v1554
        %2003 = vmatprep.subr.mxu0 %v1559
        %2004 = vmatpush1.msra.mxu0 %v1558
        %2005 = vmatprep.subr.mxu0 %v1563
        %2006 = vmatpush1.msra.mxu0 %v1562
        %2007 = vmatprep.subr.mxu0 %v1567
        %2008 = vmatpush1.msra.mxu0 %v1566
        %2009 = vmatprep.subr.mxu0 %v1571
        %2010 = vmatpush1.msra.mxu0 %v1570
        %2011 = vmatprep.subr.mxu0 %v1575
        %2012 = vmatpush1.msra.mxu0 %v1574
        %2013 = vmatprep.subr.mxu0 %v1579
        %2014 = vmatpush1.msra.mxu0 %v1578
        %2015 = vmatprep.subr.mxu0 %v1583
        %2016 = vmatpush1.msra.mxu0 %v1582
        %2017 = vmatprep.subr.mxu0 %v1587
        %2018 = vmatpush1.msra.mxu0 %v1586
        %2019 = vmatprep.subr.mxu0 %v1591
        %2020 = vmatpush1.msra.mxu0 %v1590
        %2021 = vmatprep.subr.mxu0 %v1595
        %2022 = vmatpush1.msra.mxu0 %v1594
        %2023 = vmatprep.subr.mxu0 %v1599
        %2024 = vmatpush1.msra.mxu0 %v1598
        %2025 = vmatprep.subr.mxu0 %v1603
        %2026 = vmatpush1.msra.mxu0 %v1602
        %2027 = vmatprep.subr.mxu0 %v1607
        %2028 = vmatpush1.msra.mxu0 %v1606
        %2029 = vmatprep.subr.mxu0 %v1611
        %2030 = vmatpush1.msra.mxu0 %v1610
        %2031 = vmatprep.mubr.f32.mxu0 %v417
        %2032 = vmatmul.mubr.f32.gmra.mrb[0].mxu0 %v416
        %v2033 = vpop.f32.mrb[0].mxu0
        %v2034 = vadd.f32 %v1963, %v2033
        %v2035 = vpop.f32.mrb[0].mxu0
        %v2036 = vadd.f32 %v1965, %v2035
        %2037 = vdwg.mxu0
        %v2038 = vmul.f32 %v1011, %v1011
        %v2039 = vmul.f32 %v1013, %v1013
        %v2040 = vmul.f32 %v1224, %v1224
        %v2041 = vmul.f32 %v1226, %v1226
        %v2042 = vmul.f32 %v1821, %v1821
        %v2043 = vmul.f32 %v1823, %v1823
        %v2044 = vmul.f32 %v2034, %v2034
        %v2045 = vmul.f32 %v2036, %v2036
        %v2046 = vadd.f32 %v2038, %v2042
        %v2047 = vadd.f32 %v2039, %v2043
        %v2048 = vadd.f32 %v2040, %v2044
        %v2049 = vadd.f32 %v2041, %v2045
        %v2050 = vrsqrt.pop %v2046
        %v2051 = vmul.f32 %v2046, %v2050
        %vm2052 = vcmp.eq.f32.partialorder %v2046, inf
        %v2053 = vsel %vm2052, %v2046, %v2051
        %vm2054 = vcmp.eq.f32.partialorder %v2046, 0.0
        %v2055 = vand.u32 %v2046, 2147483648
        %v2056 = vsel %vm2054, %v2055, %v2053
        %v2057 = vrsqrt.pop %v2047
        %v2058 = vmul.f32 %v2047, %v2057
        %vm2059 = vcmp.eq.f32.partialorder %v2047, inf
        %v2060 = vsel %vm2059, %v2047, %v2058
        %vm2061 = vcmp.eq.f32.partialorder %v2047, 0.0
        %v2062 = vand.u32 %v2047, 2147483648
        %v2063 = vsel %vm2061, %v2062, %v2060
        %v2064 = vrsqrt.pop %v2048
        %v2065 = vmul.f32 %v2048, %v2064
        %vm2066 = vcmp.eq.f32.partialorder %v2048, inf
        %v2067 = vsel %vm2066, %v2048, %v2065
        %vm2068 = vcmp.eq.f32.partialorder %v2048, 0.0
        %v2069 = vand.u32 %v2048, 2147483648
        %v2070 = vsel %vm2068, %v2069, %v2067
        %v2071 = vrsqrt.pop %v2049
        %v2072 = vmul.f32 %v2049, %v2071
        %vm2073 = vcmp.eq.f32.partialorder %v2049, inf
        %v2074 = vsel %vm2073, %v2049, %v2072
        %vm2075 = vcmp.eq.f32.partialorder %v2049, 0.0
        %v2076 = vand.u32 %v2049, 2147483648
        %v2077 = vsel %vm2075, %v2076, %v2074
        %v2078 = vld [vmem:[%s3] sm:$0xff]
        %v2079 = vld [vmem:[%s3 + $0x8] sm:$0xff]
        %v2080 = vld [vmem:[%s3 + $0x10] sm:$0xff]
        %v2081 = vld [vmem:[%s3 + $0x18] sm:$0xff]
        %v2082 = vld [vmem:[%s3 + $0x20] sm:$0xff]
        %v2083 = vld [vmem:[%s3 + $0x28] sm:$0xff]
        %v2084 = vld [vmem:[%s3 + $0x30] sm:$0xff]
        %v2085 = vld [vmem:[%s3 + $0x38] sm:$0xff]
        %v2086 = vld [vmem:[%s3 + $0x40] sm:$0xff]
        %v2087 = vld [vmem:[%s3 + $0x48] sm:$0xff]
        %v2088 = vld [vmem:[%s3 + $0x50] sm:$0xff]
        %v2089 = vld [vmem:[%s3 + $0x58] sm:$0xff]
        %v2090 = vld [vmem:[%s3 + $0x60] sm:$0xff]
        %v2091 = vld [vmem:[%s3 + $0x68] sm:$0xff]
        %v2092 = vld [vmem:[%s3 + $0x70] sm:$0xff]
        %v2093 = vld [vmem:[%s3 + $0x78] sm:$0xff]
        %v2094 = vld [vmem:[%s3 + $0x80] sm:$0xff]
        %v2095 = vld [vmem:[%s3 + $0x88] sm:$0xff]
        %v2096 = vld [vmem:[%s3 + $0x90] sm:$0xff]
        %v2097 = vld [vmem:[%s3 + $0x98] sm:$0xff]
        %v2098 = vld [vmem:[%s3 + $0xa0] sm:$0xff]
        %v2099 = vld [vmem:[%s3 + $0xa8] sm:$0xff]
        %v2100 = vld [vmem:[%s3 + $0xb0] sm:$0xff]
        %v2101 = vld [vmem:[%s3 + $0xb8] sm:$0xff]
        %v2102 = vld [vmem:[%s3 + $0xc0] sm:$0xff]
        %v2103 = vld [vmem:[%s3 + $0xc8] sm:$0xff]
        %v2104 = vld [vmem:[%s3 + $0xd0] sm:$0xff]
        %v2105 = vld [vmem:[%s3 + $0xd8] sm:$0xff]
        %v2106 = vld [vmem:[%s3 + $0xe0] sm:$0xff]
        %v2107 = vld [vmem:[%s3 + $0xe8] sm:$0xff]
        %v2108 = vld [vmem:[%s3 + $0xf0] sm:$0xff]
        %v2109 = vld [vmem:[%s3 + $0xf8] sm:$0xff]
        %v2110 = vld [vmem:[%s3 + $0x100] sm:$0xff]
        %v2111 = vld [vmem:[%s3 + $0x108] sm:$0xff]
        %v2112 = vld [vmem:[%s3 + $0x110] sm:$0xff]
        %v2113 = vld [vmem:[%s3 + $0x118] sm:$0xff]
        %v2114 = vld [vmem:[%s3 + $0x120] sm:$0xff]
        %v2115 = vld [vmem:[%s3 + $0x128] sm:$0xff]
        %v2116 = vld [vmem:[%s3 + $0x130] sm:$0xff]
        %v2117 = vld [vmem:[%s3 + $0x138] sm:$0xff]
        %v2118 = vld [vmem:[%s3 + $0x140] sm:$0xff]
        %v2119 = vld [vmem:[%s3 + $0x148] sm:$0xff]
        %v2120 = vld [vmem:[%s3 + $0x150] sm:$0xff]
        %v2121 = vld [vmem:[%s3 + $0x158] sm:$0xff]
        %v2122 = vld [vmem:[%s3 + $0x160] sm:$0xff]
        %v2123 = vld [vmem:[%s3 + $0x168] sm:$0xff]
        %v2124 = vld [vmem:[%s3 + $0x170] sm:$0xff]
        %v2125 = vld [vmem:[%s3 + $0x178] sm:$0xff]
        %v2126 = vld [vmem:[%s3 + $0x180] sm:$0xff]
        %v2127 = vld [vmem:[%s3 + $0x188] sm:$0xff]
        %v2128 = vld [vmem:[%s3 + $0x190] sm:$0xff]
        %v2129 = vld [vmem:[%s3 + $0x198] sm:$0xff]
        %v2130 = vld [vmem:[%s3 + $0x1a0] sm:$0xff]
        %v2131 = vld [vmem:[%s3 + $0x1a8] sm:$0xff]
        %v2132 = vld [vmem:[%s3 + $0x1b0] sm:$0xff]
        %v2133 = vld [vmem:[%s3 + $0x1b8] sm:$0xff]
        %v2134 = vld [vmem:[%s3 + $0x1c0] sm:$0xff]
        %v2135 = vld [vmem:[%s3 + $0x1c8] sm:$0xff]
        %v2136 = vld [vmem:[%s3 + $0x1d0] sm:$0xff]
        %v2137 = vld [vmem:[%s3 + $0x1d8] sm:$0xff]
        %v2138 = vld [vmem:[%s3 + $0x1e0] sm:$0xff]
        %v2139 = vld [vmem:[%s3 + $0x1e8] sm:$0xff]
        %v2140 = vld [vmem:[%s3 + $0x1f0] sm:$0xff]
        %v2141 = vld [vmem:[%s3 + $0x1f8] sm:$0xff]
        %v2142 = vld [vmem:[%s3 + $0x200] sm:$0xff]
        %v2143 = vld [vmem:[%s3 + $0x208] sm:$0xff]
        %v2144 = vld [vmem:[%s3 + $0x210] sm:$0xff]
        %v2145 = vld [vmem:[%s3 + $0x218] sm:$0xff]
        %v2146 = vld [vmem:[%s3 + $0x220] sm:$0xff]
        %v2147 = vld [vmem:[%s3 + $0x228] sm:$0xff]
        %v2148 = vld [vmem:[%s3 + $0x230] sm:$0xff]
        %v2149 = vld [vmem:[%s3 + $0x238] sm:$0xff]
        %v2150 = vld [vmem:[%s3 + $0x240] sm:$0xff]
        %v2151 = vld [vmem:[%s3 + $0x248] sm:$0xff]
        %v2152 = vld [vmem:[%s3 + $0x250] sm:$0xff]
        %v2153 = vld [vmem:[%s3 + $0x258] sm:$0xff]
        %v2154 = vld [vmem:[%s3 + $0x260] sm:$0xff]
        %v2155 = vld [vmem:[%s3 + $0x268] sm:$0xff]
        %v2156 = vld [vmem:[%s3 + $0x270] sm:$0xff]
        %v2157 = vld [vmem:[%s3 + $0x278] sm:$0xff]
        %v2158 = vld [vmem:[%s3 + $0x280] sm:$0xff]
        %v2159 = vld [vmem:[%s3 + $0x288] sm:$0xff]
        %v2160 = vld [vmem:[%s3 + $0x290] sm:$0xff]
        %v2161 = vld [vmem:[%s3 + $0x298] sm:$0xff]
        %v2162 = vld [vmem:[%s3 + $0x2a0] sm:$0xff]
        %v2163 = vld [vmem:[%s3 + $0x2a8] sm:$0xff]
        %v2164 = vld [vmem:[%s3 + $0x2b0] sm:$0xff]
        %v2165 = vld [vmem:[%s3 + $0x2b8] sm:$0xff]
        %v2166 = vld [vmem:[%s3 + $0x2c0] sm:$0xff]
        %v2167 = vld [vmem:[%s3 + $0x2c8] sm:$0xff]
        %v2168 = vld [vmem:[%s3 + $0x2d0] sm:$0xff]
        %v2169 = vld [vmem:[%s3 + $0x2d8] sm:$0xff]
        %v2170 = vld [vmem:[%s3 + $0x2e0] sm:$0xff]
        %v2171 = vld [vmem:[%s3 + $0x2e8] sm:$0xff]
        %v2172 = vld [vmem:[%s3 + $0x2f0] sm:$0xff]
        %v2173 = vld [vmem:[%s3 + $0x2f8] sm:$0xff]
        %v2174 = vld [vmem:[%s3 + $0x300] sm:$0xff]
        %v2175 = vld [vmem:[%s3 + $0x308] sm:$0xff]
        %v2176 = vld [vmem:[%s3 + $0x310] sm:$0xff]
        %v2177 = vld [vmem:[%s3 + $0x318] sm:$0xff]
        %v2178 = vld [vmem:[%s3 + $0x320] sm:$0xff]
        %v2179 = vld [vmem:[%s3 + $0x328] sm:$0xff]
        %v2180 = vld [vmem:[%s3 + $0x330] sm:$0xff]
        %v2181 = vld [vmem:[%s3 + $0x338] sm:$0xff]
        %v2182 = vld [vmem:[%s3 + $0x340] sm:$0xff]
        %v2183 = vld [vmem:[%s3 + $0x348] sm:$0xff]
        %v2184 = vld [vmem:[%s3 + $0x350] sm:$0xff]
        %v2185 = vld [vmem:[%s3 + $0x358] sm:$0xff]
        %v2186 = vld [vmem:[%s3 + $0x360] sm:$0xff]
        %v2187 = vld [vmem:[%s3 + $0x368] sm:$0xff]
        %v2188 = vld [vmem:[%s3 + $0x370] sm:$0xff]
        %v2189 = vld [vmem:[%s3 + $0x378] sm:$0xff]
        %v2190 = vld [vmem:[%s3 + $0x380] sm:$0xff]
        %v2191 = vld [vmem:[%s3 + $0x388] sm:$0xff]
        %v2192 = vld [vmem:[%s3 + $0x390] sm:$0xff]
        %v2193 = vld [vmem:[%s3 + $0x398] sm:$0xff]
        %v2194 = vld [vmem:[%s3 + $0x3a0] sm:$0xff]
        %v2195 = vld [vmem:[%s3 + $0x3a8] sm:$0xff]
        %v2196 = vld [vmem:[%s3 + $0x3b0] sm:$0xff]
        %v2197 = vld [vmem:[%s3 + $0x3b8] sm:$0xff]
        %v2198 = vld [vmem:[%s3 + $0x3c0] sm:$0xff]
        %v2199 = vld [vmem:[%s3 + $0x3c8] sm:$0xff]
        %v2200 = vld [vmem:[%s3 + $0x3d0] sm:$0xff]
        %v2201 = vld [vmem:[%s3 + $0x3d8] sm:$0xff]
        %v2202 = vld [vmem:[%s3 + $0x3e0] sm:$0xff]
        %v2203 = vld [vmem:[%s3 + $0x3e8] sm:$0xff]
        %v2204 = vld [vmem:[%s3 + $0x3f0] sm:$0xff]
        %v2205 = vld [vmem:[%s3 + $0x3f8] sm:$0xff]
        %v2206 = vld [vmem:[%s3 + $0x400] sm:$0xff]
        %v2207 = vld [vmem:[%s3 + $0x408] sm:$0xff]
        %v2208 = vld [vmem:[%s3 + $0x410] sm:$0xff]
        %v2209 = vld [vmem:[%s3 + $0x418] sm:$0xff]
        %v2210 = vld [vmem:[%s3 + $0x420] sm:$0xff]
        %v2211 = vld [vmem:[%s3 + $0x428] sm:$0xff]
        %v2212 = vld [vmem:[%s3 + $0x430] sm:$0xff]
        %v2213 = vld [vmem:[%s3 + $0x438] sm:$0xff]
        %v2214 = vld [vmem:[%s3 + $0x440] sm:$0xff]
        %v2215 = vld [vmem:[%s3 + $0x448] sm:$0xff]
        %v2216 = vld [vmem:[%s3 + $0x450] sm:$0xff]
        %v2217 = vld [vmem:[%s3 + $0x458] sm:$0xff]
        %v2218 = vld [vmem:[%s3 + $0x460] sm:$0xff]
        %v2219 = vld [vmem:[%s3 + $0x468] sm:$0xff]
        %v2220 = vld [vmem:[%s3 + $0x470] sm:$0xff]
        %v2221 = vld [vmem:[%s3 + $0x478] sm:$0xff]
        %v2222 = vld [vmem:[%s3 + $0x480] sm:$0xff]
        %v2223 = vld [vmem:[%s3 + $0x488] sm:$0xff]
        %v2224 = vld [vmem:[%s3 + $0x490] sm:$0xff]
        %v2225 = vld [vmem:[%s3 + $0x498] sm:$0xff]
        %v2226 = vld [vmem:[%s3 + $0x4a0] sm:$0xff]
        %v2227 = vld [vmem:[%s3 + $0x4a8] sm:$0xff]
        %v2228 = vld [vmem:[%s3 + $0x4b0] sm:$0xff]
        %v2229 = vld [vmem:[%s3 + $0x4b8] sm:$0xff]
        %v2230 = vld [vmem:[%s3 + $0x4c0] sm:$0xff]
        %v2231 = vld [vmem:[%s3 + $0x4c8] sm:$0xff]
        %v2232 = vld [vmem:[%s3 + $0x4d0] sm:$0xff]
        %v2233 = vld [vmem:[%s3 + $0x4d8] sm:$0xff]
        %v2234 = vld [vmem:[%s3 + $0x4e0] sm:$0xff]
        %v2235 = vld [vmem:[%s3 + $0x4e8] sm:$0xff]
        %v2236 = vld [vmem:[%s3 + $0x4f0] sm:$0xff]
        %v2237 = vld [vmem:[%s3 + $0x4f8] sm:$0xff]
        %v2238 = vld [vmem:[%s3 + $0x500] sm:$0xff]
        %v2239 = vld [vmem:[%s3 + $0x508] sm:$0xff]
        %v2240 = vld [vmem:[%s3 + $0x510] sm:$0xff]
        %v2241 = vld [vmem:[%s3 + $0x518] sm:$0xff]
        %v2242 = vld [vmem:[%s3 + $0x520] sm:$0xff]
        %v2243 = vld [vmem:[%s3 + $0x528] sm:$0xff]
        %v2244 = vld [vmem:[%s3 + $0x530] sm:$0xff]
        %v2245 = vld [vmem:[%s3 + $0x538] sm:$0xff]
        %v2246 = vld [vmem:[%s3 + $0x540] sm:$0xff]
        %v2247 = vld [vmem:[%s3 + $0x548] sm:$0xff]
        %v2248 = vld [vmem:[%s3 + $0x550] sm:$0xff]
        %v2249 = vld [vmem:[%s3 + $0x558] sm:$0xff]
        %v2250 = vld [vmem:[%s3 + $0x560] sm:$0xff]
        %v2251 = vld [vmem:[%s3 + $0x568] sm:$0xff]
        %v2252 = vld [vmem:[%s3 + $0x570] sm:$0xff]
        %v2253 = vld [vmem:[%s3 + $0x578] sm:$0xff]
        %v2254 = vld [vmem:[%s3 + $0x580] sm:$0xff]
        %v2255 = vld [vmem:[%s3 + $0x588] sm:$0xff]
        %v2256 = vld [vmem:[%s3 + $0x590] sm:$0xff]
        %v2257 = vld [vmem:[%s3 + $0x598] sm:$0xff]
        %v2258 = vld [vmem:[%s3 + $0x5a0] sm:$0xff]
        %v2259 = vld [vmem:[%s3 + $0x5a8] sm:$0xff]
        %v2260 = vld [vmem:[%s3 + $0x5b0] sm:$0xff]
        %v2261 = vld [vmem:[%s3 + $0x5b8] sm:$0xff]
        %v2262 = vld [vmem:[%s3 + $0x5c0] sm:$0xff]
        %v2263 = vld [vmem:[%s3 + $0x5c8] sm:$0xff]
        %v2264 = vld [vmem:[%s3 + $0x5d0] sm:$0xff]
        %v2265 = vld [vmem:[%s3 + $0x5d8] sm:$0xff]
        %v2266 = vld [vmem:[%s3 + $0x5e0] sm:$0xff]
        %v2267 = vld [vmem:[%s3 + $0x5e8] sm:$0xff]
        %v2268 = vld [vmem:[%s3 + $0x5f0] sm:$0xff]
        %v2269 = vld [vmem:[%s3 + $0x5f8] sm:$0xff]
        %v2270 = vld [vmem:[%s3 + $0x600] sm:$0xff]
        %v2271 = vld [vmem:[%s3 + $0x608] sm:$0xff]
        %v2272 = vld [vmem:[%s3 + $0x610] sm:$0xff]
        %v2273 = vld [vmem:[%s3 + $0x618] sm:$0xff]
        %v2274 = vld [vmem:[%s3 + $0x620] sm:$0xff]
        %v2275 = vld [vmem:[%s3 + $0x628] sm:$0xff]
        %v2276 = vld [vmem:[%s3 + $0x630] sm:$0xff]
        %v2277 = vld [vmem:[%s3 + $0x638] sm:$0xff]
        %v2278 = vld [vmem:[%s3 + $0x640] sm:$0xff]
        %v2279 = vld [vmem:[%s3 + $0x648] sm:$0xff]
        %v2280 = vld [vmem:[%s3 + $0x650] sm:$0xff]
        %v2281 = vld [vmem:[%s3 + $0x658] sm:$0xff]
        %v2282 = vld [vmem:[%s3 + $0x660] sm:$0xff]
        %v2283 = vld [vmem:[%s3 + $0x668] sm:$0xff]
        %v2284 = vld [vmem:[%s3 + $0x670] sm:$0xff]
        %v2285 = vld [vmem:[%s3 + $0x678] sm:$0xff]
        %v2286 = vld [vmem:[%s3 + $0x680] sm:$0xff]
        %v2287 = vld [vmem:[%s3 + $0x688] sm:$0xff]
        %v2288 = vld [vmem:[%s3 + $0x690] sm:$0xff]
        %v2289 = vld [vmem:[%s3 + $0x698] sm:$0xff]
        %v2290 = vld [vmem:[%s3 + $0x6a0] sm:$0xff]
        %v2291 = vld [vmem:[%s3 + $0x6a8] sm:$0xff]
        %v2292 = vld [vmem:[%s3 + $0x6b0] sm:$0xff]
        %v2293 = vld [vmem:[%s3 + $0x6b8] sm:$0xff]
        %v2294 = vld [vmem:[%s3 + $0x6c0] sm:$0xff]
        %v2295 = vld [vmem:[%s3 + $0x6c8] sm:$0xff]
        %v2296 = vld [vmem:[%s3 + $0x6d0] sm:$0xff]
        %v2297 = vld [vmem:[%s3 + $0x6d8] sm:$0xff]
        %v2298 = vld [vmem:[%s3 + $0x6e0] sm:$0xff]
        %v2299 = vld [vmem:[%s3 + $0x6e8] sm:$0xff]
        %v2300 = vld [vmem:[%s3 + $0x6f0] sm:$0xff]
        %v2301 = vld [vmem:[%s3 + $0x6f8] sm:$0xff]
        %v2302 = vld [vmem:[%s3 + $0x700] sm:$0xff]
        %v2303 = vld [vmem:[%s3 + $0x708] sm:$0xff]
        %v2304 = vld [vmem:[%s3 + $0x710] sm:$0xff]
        %v2305 = vld [vmem:[%s3 + $0x718] sm:$0xff]
        %v2306 = vld [vmem:[%s3 + $0x720] sm:$0xff]
        %v2307 = vld [vmem:[%s3 + $0x728] sm:$0xff]
        %v2308 = vld [vmem:[%s3 + $0x730] sm:$0xff]
        %v2309 = vld [vmem:[%s3 + $0x738] sm:$0xff]
        %v2310 = vld [vmem:[%s3 + $0x740] sm:$0xff]
        %v2311 = vld [vmem:[%s3 + $0x748] sm:$0xff]
        %v2312 = vld [vmem:[%s3 + $0x750] sm:$0xff]
        %v2313 = vld [vmem:[%s3 + $0x758] sm:$0xff]
        %v2314 = vld [vmem:[%s3 + $0x760] sm:$0xff]
        %v2315 = vld [vmem:[%s3 + $0x768] sm:$0xff]
        %v2316 = vld [vmem:[%s3 + $0x770] sm:$0xff]
        %v2317 = vld [vmem:[%s3 + $0x778] sm:$0xff]
        %v2318 = vld [vmem:[%s3 + $0x780] sm:$0xff]
        %v2319 = vld [vmem:[%s3 + $0x788] sm:$0xff]
        %v2320 = vld [vmem:[%s3 + $0x790] sm:$0xff]
        %v2321 = vld [vmem:[%s3 + $0x798] sm:$0xff]
        %v2322 = vld [vmem:[%s3 + $0x7a0] sm:$0xff]
        %v2323 = vld [vmem:[%s3 + $0x7a8] sm:$0xff]
        %v2324 = vld [vmem:[%s3 + $0x7b0] sm:$0xff]
        %v2325 = vld [vmem:[%s3 + $0x7b8] sm:$0xff]
        %v2326 = vld [vmem:[%s3 + $0x7c0] sm:$0xff]
        %v2327 = vld [vmem:[%s3 + $0x7c8] sm:$0xff]
        %v2328 = vld [vmem:[%s3 + $0x7d0] sm:$0xff]
        %v2329 = vld [vmem:[%s3 + $0x7d8] sm:$0xff]
        %v2330 = vld [vmem:[%s3 + $0x7e0] sm:$0xff]
        %v2331 = vld [vmem:[%s3 + $0x7e8] sm:$0xff]
        %v2332 = vld [vmem:[%s3 + $0x7f0] sm:$0xff]
        %v2333 = vld [vmem:[%s3 + $0x7f8] sm:$0xff]
        %v2334 = vld [vmem:[%s3 + $0x800] sm:$0xff]
        %v2335 = vld [vmem:[%s3 + $0x808] sm:$0xff]
        %v2336 = vld [vmem:[%s3 + $0x810] sm:$0xff]
        %v2337 = vld [vmem:[%s3 + $0x818] sm:$0xff]
        %v2338 = vld [vmem:[%s3 + $0x820] sm:$0xff]
        %v2339 = vld [vmem:[%s3 + $0x828] sm:$0xff]
        %v2340 = vld [vmem:[%s3 + $0x830] sm:$0xff]
        %v2341 = vld [vmem:[%s3 + $0x838] sm:$0xff]
        %v2342 = vld [vmem:[%s3 + $0x840] sm:$0xff]
        %v2343 = vld [vmem:[%s3 + $0x848] sm:$0xff]
        %v2344 = vld [vmem:[%s3 + $0x850] sm:$0xff]
        %v2345 = vld [vmem:[%s3 + $0x858] sm:$0xff]
        %v2346 = vld [vmem:[%s3 + $0x860] sm:$0xff]
        %v2347 = vld [vmem:[%s3 + $0x868] sm:$0xff]
        %v2348 = vld [vmem:[%s3 + $0x870] sm:$0xff]
        %v2349 = vld [vmem:[%s3 + $0x878] sm:$0xff]
        %v2350 = vld [vmem:[%s3 + $0x880] sm:$0xff]
        %v2351 = vld [vmem:[%s3 + $0x888] sm:$0xff]
        %v2352 = vld [vmem:[%s3 + $0x890] sm:$0xff]
        %v2353 = vld [vmem:[%s3 + $0x898] sm:$0xff]
        %v2354 = vld [vmem:[%s3 + $0x8a0] sm:$0xff]
        %v2355 = vld [vmem:[%s3 + $0x8a8] sm:$0xff]
        %v2356 = vld [vmem:[%s3 + $0x8b0] sm:$0xff]
        %v2357 = vld [vmem:[%s3 + $0x8b8] sm:$0xff]
        %v2358 = vld [vmem:[%s3 + $0x8c0] sm:$0xff]
        %v2359 = vld [vmem:[%s3 + $0x8c8] sm:$0xff]
        %v2360 = vld [vmem:[%s3 + $0x8d0] sm:$0xff]
        %v2361 = vld [vmem:[%s3 + $0x8d8] sm:$0xff]
        %v2362 = vld [vmem:[%s3 + $0x8e0] sm:$0xff]
        %v2363 = vld [vmem:[%s3 + $0x8e8] sm:$0xff]
        %v2364 = vld [vmem:[%s3 + $0x8f0] sm:$0xff]
        %v2365 = vld [vmem:[%s3 + $0x8f8] sm:$0xff]
        %v2366 = vld [vmem:[%s3 + $0x900] sm:$0xff]
        %v2367 = vld [vmem:[%s3 + $0x908] sm:$0xff]
        %v2368 = vld [vmem:[%s3 + $0x910] sm:$0xff]
        %v2369 = vld [vmem:[%s3 + $0x918] sm:$0xff]
        %v2370 = vld [vmem:[%s3 + $0x920] sm:$0xff]
        %v2371 = vld [vmem:[%s3 + $0x928] sm:$0xff]
        %v2372 = vld [vmem:[%s3 + $0x930] sm:$0xff]
        %v2373 = vld [vmem:[%s3 + $0x938] sm:$0xff]
        %v2374 = vld [vmem:[%s3 + $0x940] sm:$0xff]
        %v2375 = vld [vmem:[%s3 + $0x948] sm:$0xff]
        %v2376 = vld [vmem:[%s3 + $0x950] sm:$0xff]
        %v2377 = vld [vmem:[%s3 + $0x958] sm:$0xff]
        %v2378 = vld [vmem:[%s3 + $0x960] sm:$0xff]
        %v2379 = vld [vmem:[%s3 + $0x968] sm:$0xff]
        %v2380 = vld [vmem:[%s3 + $0x970] sm:$0xff]
        %v2381 = vld [vmem:[%s3 + $0x978] sm:$0xff]
        %v2382 = vld [vmem:[%s3 + $0x980] sm:$0xff]
        %v2383 = vld [vmem:[%s3 + $0x988] sm:$0xff]
        %v2384 = vld [vmem:[%s3 + $0x990] sm:$0xff]
        %v2385 = vld [vmem:[%s3 + $0x998] sm:$0xff]
        %v2386 = vld [vmem:[%s3 + $0x9a0] sm:$0xff]
        %v2387 = vld [vmem:[%s3 + $0x9a8] sm:$0xff]
        %v2388 = vld [vmem:[%s3 + $0x9b0] sm:$0xff]
        %v2389 = vld [vmem:[%s3 + $0x9b8] sm:$0xff]
        %v2390 = vld [vmem:[%s3 + $0x9c0] sm:$0xff]
        %v2391 = vld [vmem:[%s3 + $0x9c8] sm:$0xff]
        %v2392 = vld [vmem:[%s3 + $0x9d0] sm:$0xff]
        %v2393 = vld [vmem:[%s3 + $0x9d8] sm:$0xff]
        %v2394 = vld [vmem:[%s3 + $0x9e0] sm:$0xff]
        %v2395 = vld [vmem:[%s3 + $0x9e8] sm:$0xff]
        %v2396 = vld [vmem:[%s3 + $0x9f0] sm:$0xff]
        %v2397 = vld [vmem:[%s3 + $0x9f8] sm:$0xff]
        %v2398 = vld [vmem:[%s3 + $0xa00] sm:$0xff]
        %v2399 = vld [vmem:[%s3 + $0xa08] sm:$0xff]
        %v2400 = vld [vmem:[%s3 + $0xa10] sm:$0xff]
        %v2401 = vld [vmem:[%s3 + $0xa18] sm:$0xff]
        %v2402 = vld [vmem:[%s3 + $0xa20] sm:$0xff]
        %v2403 = vld [vmem:[%s3 + $0xa28] sm:$0xff]
        %v2404 = vld [vmem:[%s3 + $0xa30] sm:$0xff]
        %v2405 = vld [vmem:[%s3 + $0xa38] sm:$0xff]
        %v2406 = vld [vmem:[%s3 + $0xa40] sm:$0xff]
        %v2407 = vld [vmem:[%s3 + $0xa48] sm:$0xff]
        %v2408 = vld [vmem:[%s3 + $0xa50] sm:$0xff]
        %v2409 = vld [vmem:[%s3 + $0xa58] sm:$0xff]
        %v2410 = vld [vmem:[%s3 + $0xa60] sm:$0xff]
        %v2411 = vld [vmem:[%s3 + $0xa68] sm:$0xff]
        %v2412 = vld [vmem:[%s3 + $0xa70] sm:$0xff]
        %v2413 = vld [vmem:[%s3 + $0xa78] sm:$0xff]
        %v2414 = vld [vmem:[%s3 + $0xa80] sm:$0xff]
        %v2415 = vld [vmem:[%s3 + $0xa88] sm:$0xff]
        %v2416 = vld [vmem:[%s3 + $0xa90] sm:$0xff]
        %v2417 = vld [vmem:[%s3 + $0xa98] sm:$0xff]
        %v2418 = vld [vmem:[%s3 + $0xaa0] sm:$0xff]
        %v2419 = vld [vmem:[%s3 + $0xaa8] sm:$0xff]
        %v2420 = vld [vmem:[%s3 + $0xab0] sm:$0xff]
        %v2421 = vld [vmem:[%s3 + $0xab8] sm:$0xff]
        %v2422 = vld [vmem:[%s3 + $0xac0] sm:$0xff]
        %v2423 = vld [vmem:[%s3 + $0xac8] sm:$0xff]
        %v2424 = vld [vmem:[%s3 + $0xad0] sm:$0xff]
        %v2425 = vld [vmem:[%s3 + $0xad8] sm:$0xff]
        %v2426 = vld [vmem:[%s3 + $0xae0] sm:$0xff]
        %v2427 = vld [vmem:[%s3 + $0xae8] sm:$0xff]
        %v2428 = vld [vmem:[%s3 + $0xaf0] sm:$0xff]
        %v2429 = vld [vmem:[%s3 + $0xaf8] sm:$0xff]
        %v2430 = vld [vmem:[%s3 + $0xb00] sm:$0xff]
        %v2431 = vld [vmem:[%s3 + $0xb08] sm:$0xff]
        %v2432 = vld [vmem:[%s3 + $0xb10] sm:$0xff]
        %v2433 = vld [vmem:[%s3 + $0xb18] sm:$0xff]
        %v2434 = vld [vmem:[%s3 + $0xb20] sm:$0xff]
        %v2435 = vld [vmem:[%s3 + $0xb28] sm:$0xff]
        %v2436 = vld [vmem:[%s3 + $0xb30] sm:$0xff]
        %v2437 = vld [vmem:[%s3 + $0xb38] sm:$0xff]
        %v2438 = vld [vmem:[%s3 + $0xb40] sm:$0xff]
        %v2439 = vld [vmem:[%s3 + $0xb48] sm:$0xff]
        %v2440 = vld [vmem:[%s3 + $0xb50] sm:$0xff]
        %v2441 = vld [vmem:[%s3 + $0xb58] sm:$0xff]
        %v2442 = vld [vmem:[%s3 + $0xb60] sm:$0xff]
        %v2443 = vld [vmem:[%s3 + $0xb68] sm:$0xff]
        %v2444 = vld [vmem:[%s3 + $0xb70] sm:$0xff]
        %v2445 = vld [vmem:[%s3 + $0xb78] sm:$0xff]
        %v2446 = vld [vmem:[%s3 + $0xb80] sm:$0xff]
        %v2447 = vld [vmem:[%s3 + $0xb88] sm:$0xff]
        %v2448 = vld [vmem:[%s3 + $0xb90] sm:$0xff]
        %v2449 = vld [vmem:[%s3 + $0xb98] sm:$0xff]
        %v2450 = vld [vmem:[%s3 + $0xba0] sm:$0xff]
        %v2451 = vld [vmem:[%s3 + $0xba8] sm:$0xff]
        %v2452 = vld [vmem:[%s3 + $0xbb0] sm:$0xff]
        %v2453 = vld [vmem:[%s3 + $0xbb8] sm:$0xff]
        %v2454 = vld [vmem:[%s3 + $0xbc0] sm:$0xff]
        %v2455 = vld [vmem:[%s3 + $0xbc8] sm:$0xff]
        %v2456 = vld [vmem:[%s3 + $0xbd0] sm:$0xff]
        %v2457 = vld [vmem:[%s3 + $0xbd8] sm:$0xff]
        %v2458 = vld [vmem:[%s3 + $0xbe0] sm:$0xff]
        %v2459 = vld [vmem:[%s3 + $0xbe8] sm:$0xff]
        %v2460 = vld [vmem:[%s3 + $0xbf0] sm:$0xff]
        %v2461 = vld [vmem:[%s3 + $0xbf8] sm:$0xff]
        %v2462 = vld [vmem:[%s5] sm:$0xf]
        %v2464 = vlaneseq
        %v2465 = vshrl.u32 %v2464, 7
        %v2466 = vsub.s32 0, %v2465
        %v2467 = vrot.slane %v2462, %v2466
        %v2468 = vlaneseq
        %v2469 = vshrl.u32 %v2468, 7
        %v2470 = vsub.s32 1, %v2469
        %v2471 = vrot.slane %v2462, %v2470
        %v2472 = vlaneseq
        %v2473 = vshrl.u32 %v2472, 7
        %v2474 = vsub.s32 2, %v2473
        %v2475 = vrot.slane %v2462, %v2474
        %v2476 = vlaneseq
        %v2477 = vshrl.u32 %v2476, 7
        %v2478 = vsub.s32 3, %v2477
        %v2479 = vrot.slane %v2462, %v2478
        %2484 = vmatprep.subr.mxu0 %v2079
        %2485 = vmatpush1.msra.mxu0 %v2078
        %2486 = vmatprep.subr.mxu0 %v2083
        %2487 = vmatpush1.msra.mxu0 %v2082
        %2488 = vmatprep.subr.mxu0 %v2087
        %2489 = vmatpush1.msra.mxu0 %v2086
        %2490 = vmatprep.subr.mxu0 %v2091
        %2491 = vmatpush1.msra.mxu0 %v2090
        %2492 = vmatprep.subr.mxu0 %v2095
        %2493 = vmatpush1.msra.mxu0 %v2094
        %2494 = vmatprep.subr.mxu0 %v2099
        %2495 = vmatpush1.msra.mxu0 %v2098
        %2496 = vmatprep.subr.mxu0 %v2103
        %2497 = vmatpush1.msra.mxu0 %v2102
        %2498 = vmatprep.subr.mxu0 %v2107
        %2499 = vmatpush1.msra.mxu0 %v2106
        %2500 = vmatprep.subr.mxu0 %v2111
        %2501 = vmatpush1.msra.mxu0 %v2110
        %2502 = vmatprep.subr.mxu0 %v2115
        %2503 = vmatpush1.msra.mxu0 %v2114
        %2504 = vmatprep.subr.mxu0 %v2119
        %2505 = vmatpush1.msra.mxu0 %v2118
        %2506 = vmatprep.subr.mxu0 %v2123
        %2507 = vmatpush1.msra.mxu0 %v2122
        %2508 = vmatprep.subr.mxu0 %v2127
        %2509 = vmatpush1.msra.mxu0 %v2126
        %2510 = vmatprep.subr.mxu0 %v2131
        %2511 = vmatpush1.msra.mxu0 %v2130
        %2512 = vmatprep.subr.mxu0 %v2135
        %2513 = vmatpush1.msra.mxu0 %v2134
        %2514 = vmatprep.subr.mxu0 %v2139
        %2515 = vmatpush1.msra.mxu0 %v2138
        %2516 = vmatprep.subr.mxu0 %v2143
        %2517 = vmatpush1.msra.mxu0 %v2142
        %2518 = vmatprep.subr.mxu0 %v2147
        %2519 = vmatpush1.msra.mxu0 %v2146
        %2520 = vmatprep.subr.mxu0 %v2151
        %2521 = vmatpush1.msra.mxu0 %v2150
        %2522 = vmatprep.subr.mxu0 %v2155
        %2523 = vmatpush1.msra.mxu0 %v2154
        %2524 = vmatprep.subr.mxu0 %v2159
        %2525 = vmatpush1.msra.mxu0 %v2158
        %2526 = vmatprep.subr.mxu0 %v2163
        %2527 = vmatpush1.msra.mxu0 %v2162
        %2528 = vmatprep.subr.mxu0 %v2167
        %2529 = vmatpush1.msra.mxu0 %v2166
        %2530 = vmatprep.subr.mxu0 %v2171
        %2531 = vmatpush1.msra.mxu0 %v2170
        %2532 = vmatprep.subr.mxu0 %v2175
        %2533 = vmatpush1.msra.mxu0 %v2174
        %2534 = vmatprep.subr.mxu0 %v2179
        %2535 = vmatpush1.msra.mxu0 %v2178
        %2536 = vmatprep.subr.mxu0 %v2183
        %2537 = vmatpush1.msra.mxu0 %v2182
        %2538 = vmatprep.subr.mxu0 %v2187
        %2539 = vmatpush1.msra.mxu0 %v2186
        %2540 = vmatprep.subr.mxu0 %v2191
        %2541 = vmatpush1.msra.mxu0 %v2190
        %2542 = vmatprep.subr.mxu0 %v2195
        %2543 = vmatpush1.msra.mxu0 %v2194
        %2544 = vmatprep.subr.mxu0 %v2199
        %2545 = vmatpush1.msra.mxu0 %v2198
        %2546 = vmatprep.subr.mxu0 %v2203
        %2547 = vmatpush1.msra.mxu0 %v2202
        %2548 = vmatprep.mubr.f32.mxu0 %v413
        %2549 = vmatmul.mubr.f32.gmra.mrb[0].mxu0 %v412
        %v2550 = vpop.f32.mrb[0].mxu0
        %v2551 = vadd.f32 %v2467, %v2550
        %v2552 = vpop.f32.mrb[0].mxu0
        %v2553 = vadd.f32 %v2471, %v2552
        %2554 = vdwg.mxu0
        %2555 = vmatprep.subr.mxu0 %v2207
        %2556 = vmatpush1.msra.mxu0 %v2206
        %2557 = vmatprep.subr.mxu0 %v2211
        %2558 = vmatpush1.msra.mxu0 %v2210
        %2559 = vmatprep.subr.mxu0 %v2215
        %2560 = vmatpush1.msra.mxu0 %v2214
        %2561 = vmatprep.subr.mxu0 %v2219
        %2562 = vmatpush1.msra.mxu0 %v2218
        %2563 = vmatprep.subr.mxu0 %v2223
        %2564 = vmatpush1.msra.mxu0 %v2222
        %2565 = vmatprep.subr.mxu0 %v2227
        %2566 = vmatpush1.msra.mxu0 %v2226
        %2567 = vmatprep.subr.mxu0 %v2231
        %2568 = vmatpush1.msra.mxu0 %v2230
        %2569 = vmatprep.subr.mxu0 %v2235
        %2570 = vmatpush1.msra.mxu0 %v2234
        %2571 = vmatprep.subr.mxu0 %v2239
        %2572 = vmatpush1.msra.mxu0 %v2238
        %2573 = vmatprep.subr.mxu0 %v2243
        %2574 = vmatpush1.msra.mxu0 %v2242
        %2575 = vmatprep.subr.mxu0 %v2247
        %2576 = vmatpush1.msra.mxu0 %v2246
        %2577 = vmatprep.subr.mxu0 %v2251
        %2578 = vmatpush1.msra.mxu0 %v2250
        %2579 = vmatprep.subr.mxu0 %v2255
        %2580 = vmatpush1.msra.mxu0 %v2254
        %2581 = vmatprep.subr.mxu0 %v2259
        %2582 = vmatpush1.msra.mxu0 %v2258
        %2583 = vmatprep.subr.mxu0 %v2263
        %2584 = vmatpush1.msra.mxu0 %v2262
        %2585 = vmatprep.subr.mxu0 %v2267
        %2586 = vmatpush1.msra.mxu0 %v2266
        %2587 = vmatprep.subr.mxu0 %v2271
        %2588 = vmatpush1.msra.mxu0 %v2270
        %2589 = vmatprep.subr.mxu0 %v2275
        %2590 = vmatpush1.msra.mxu0 %v2274
        %2591 = vmatprep.subr.mxu0 %v2279
        %2592 = vmatpush1.msra.mxu0 %v2278
        %2593 = vmatprep.subr.mxu0 %v2283
        %2594 = vmatpush1.msra.mxu0 %v2282
        %2595 = vmatprep.subr.mxu0 %v2287
        %2596 = vmatpush1.msra.mxu0 %v2286
        %2597 = vmatprep.subr.mxu0 %v2291
        %2598 = vmatpush1.msra.mxu0 %v2290
        %2599 = vmatprep.subr.mxu0 %v2295
        %2600 = vmatpush1.msra.mxu0 %v2294
        %2601 = vmatprep.subr.mxu0 %v2299
        %2602 = vmatpush1.msra.mxu0 %v2298
        %2603 = vmatprep.subr.mxu0 %v2303
        %2604 = vmatpush1.msra.mxu0 %v2302
        %2605 = vmatprep.subr.mxu0 %v2307
        %2606 = vmatpush1.msra.mxu0 %v2306
        %2607 = vmatprep.subr.mxu0 %v2311
        %2608 = vmatpush1.msra.mxu0 %v2310
        %2609 = vmatprep.subr.mxu0 %v2315
        %2610 = vmatpush1.msra.mxu0 %v2314
        %2611 = vmatprep.subr.mxu0 %v2319
        %2612 = vmatpush1.msra.mxu0 %v2318
        %2613 = vmatprep.subr.mxu0 %v2323
        %2614 = vmatpush1.msra.mxu0 %v2322
        %2615 = vmatprep.subr.mxu0 %v2327
        %2616 = vmatpush1.msra.mxu0 %v2326
        %2617 = vmatprep.subr.mxu0 %v2331
        %2618 = vmatpush1.msra.mxu0 %v2330
        %2619 = vmatprep.mubr.f32.mxu0 %v415
        %2620 = vmatmul.mubr.f32.gmra.mrb[0].mxu0 %v414
        %v2621 = vpop.f32.mrb[0].mxu0
        %v2622 = vadd.f32 %v2551, %v2621
        %v2623 = vpop.f32.mrb[0].mxu0
        %v2624 = vadd.f32 %v2553, %v2623
        %2625 = vdwg.mxu0
        %2626 = vmatprep.subr.mxu0 %v2335
        %2627 = vmatpush1.msra.mxu0 %v2334
        %2628 = vmatprep.subr.mxu0 %v2339
        %2629 = vmatpush1.msra.mxu0 %v2338
        %2630 = vmatprep.subr.mxu0 %v2343
        %2631 = vmatpush1.msra.mxu0 %v2342
        %2632 = vmatprep.subr.mxu0 %v2347
        %2633 = vmatpush1.msra.mxu0 %v2346
        %2634 = vmatprep.subr.mxu0 %v2351
        %2635 = vmatpush1.msra.mxu0 %v2350
        %2636 = vmatprep.subr.mxu0 %v2355
        %2637 = vmatpush1.msra.mxu0 %v2354
        %2638 = vmatprep.subr.mxu0 %v2359
        %2639 = vmatpush1.msra.mxu0 %v2358
        %2640 = vmatprep.subr.mxu0 %v2363
        %2641 = vmatpush1.msra.mxu0 %v2362
        %2642 = vmatprep.subr.mxu0 %v2367
        %2643 = vmatpush1.msra.mxu0 %v2366
        %2644 = vmatprep.subr.mxu0 %v2371
        %2645 = vmatpush1.msra.mxu0 %v2370
        %2646 = vmatprep.subr.mxu0 %v2375
        %2647 = vmatpush1.msra.mxu0 %v2374
        %2648 = vmatprep.subr.mxu0 %v2379
        %2649 = vmatpush1.msra.mxu0 %v2378
        %2650 = vmatprep.subr.mxu0 %v2383
        %2651 = vmatpush1.msra.mxu0 %v2382
        %2652 = vmatprep.subr.mxu0 %v2387
        %2653 = vmatpush1.msra.mxu0 %v2386
        %2654 = vmatprep.subr.mxu0 %v2391
        %2655 = vmatpush1.msra.mxu0 %v2390
        %2656 = vmatprep.subr.mxu0 %v2395
        %2657 = vmatpush1.msra.mxu0 %v2394
        %2658 = vmatprep.subr.mxu0 %v2399
        %2659 = vmatpush1.msra.mxu0 %v2398
        %2660 = vmatprep.subr.mxu0 %v2403
        %2661 = vmatpush1.msra.mxu0 %v2402
        %2662 = vmatprep.subr.mxu0 %v2407
        %2663 = vmatpush1.msra.mxu0 %v2406
        %2664 = vmatprep.subr.mxu0 %v2411
        %2665 = vmatpush1.msra.mxu0 %v2410
        %2666 = vmatprep.subr.mxu0 %v2415
        %2667 = vmatpush1.msra.mxu0 %v2414
        %2668 = vmatprep.subr.mxu0 %v2419
        %2669 = vmatpush1.msra.mxu0 %v2418
        %2670 = vmatprep.subr.mxu0 %v2423
        %2671 = vmatpush1.msra.mxu0 %v2422
        %2672 = vmatprep.subr.mxu0 %v2427
        %2673 = vmatpush1.msra.mxu0 %v2426
        %2674 = vmatprep.subr.mxu0 %v2431
        %2675 = vmatpush1.msra.mxu0 %v2430
        %2676 = vmatprep.subr.mxu0 %v2435
        %2677 = vmatpush1.msra.mxu0 %v2434
        %2678 = vmatprep.subr.mxu0 %v2439
        %2679 = vmatpush1.msra.mxu0 %v2438
        %2680 = vmatprep.subr.mxu0 %v2443
        %2681 = vmatpush1.msra.mxu0 %v2442
        %2682 = vmatprep.subr.mxu0 %v2447
        %2683 = vmatpush1.msra.mxu0 %v2446
        %2684 = vmatprep.subr.mxu0 %v2451
        %2685 = vmatpush1.msra.mxu0 %v2450
        %2686 = vmatprep.subr.mxu0 %v2455
        %2687 = vmatpush1.msra.mxu0 %v2454
        %2688 = vmatprep.subr.mxu0 %v2459
        %2689 = vmatpush1.msra.mxu0 %v2458
        %2690 = vmatprep.mubr.f32.mxu0 %v417
        %2691 = vmatmul.mubr.f32.gmra.mrb[0].mxu0 %v416
        %v2692 = vpop.f32.mrb[0].mxu0
        %v2693 = vadd.f32 %v2622, %v2692
        %v2694 = vpop.f32.mrb[0].mxu0
        %v2695 = vadd.f32 %v2624, %v2694
        %2696 = vdwg.mxu0
        %2697 = vmatprep.subr.mxu0 %v2081
        %2698 = vmatpush1.msra.mxu0 %v2080
        %2699 = vmatprep.subr.mxu0 %v2085
        %2700 = vmatpush1.msra.mxu0 %v2084
        %2701 = vmatprep.subr.mxu0 %v2089
        %2702 = vmatpush1.msra.mxu0 %v2088
        %2703 = vmatprep.subr.mxu0 %v2093
        %2704 = vmatpush1.msra.mxu0 %v2092
        %2705 = vmatprep.subr.mxu0 %v2097
        %2706 = vmatpush1.msra.mxu0 %v2096
        %2707 = vmatprep.subr.mxu0 %v2101
        %2708 = vmatpush1.msra.mxu0 %v2100
        %2709 = vmatprep.subr.mxu0 %v2105
        %2710 = vmatpush1.msra.mxu0 %v2104
        %2711 = vmatprep.subr.mxu0 %v2109
        %2712 = vmatpush1.msra.mxu0 %v2108
        %2713 = vmatprep.subr.mxu0 %v2113
        %2714 = vmatpush1.msra.mxu0 %v2112
        %2715 = vmatprep.subr.mxu0 %v2117
        %2716 = vmatpush1.msra.mxu0 %v2116
        %2717 = vmatprep.subr.mxu0 %v2121
        %2718 = vmatpush1.msra.mxu0 %v2120
        %2719 = vmatprep.subr.mxu0 %v2125
        %2720 = vmatpush1.msra.mxu0 %v2124
        %2721 = vmatprep.subr.mxu0 %v2129
        %2722 = vmatpush1.msra.mxu0 %v2128
        %2723 = vmatprep.subr.mxu0 %v2133
        %2724 = vmatpush1.msra.mxu0 %v2132
        %2725 = vmatprep.subr.mxu0 %v2137
        %2726 = vmatpush1.msra.mxu0 %v2136
        %2727 = vmatprep.subr.mxu0 %v2141
        %2728 = vmatpush1.msra.mxu0 %v2140
        %2729 = vmatprep.subr.mxu0 %v2145
        %2730 = vmatpush1.msra.mxu0 %v2144
        %2731 = vmatprep.subr.mxu0 %v2149
        %2732 = vmatpush1.msra.mxu0 %v2148
        %2733 = vmatprep.subr.mxu0 %v2153
        %2734 = vmatpush1.msra.mxu0 %v2152
        %2735 = vmatprep.subr.mxu0 %v2157
        %2736 = vmatpush1.msra.mxu0 %v2156
        %2737 = vmatprep.subr.mxu0 %v2161
        %2738 = vmatpush1.msra.mxu0 %v2160
        %2739 = vmatprep.subr.mxu0 %v2165
        %2740 = vmatpush1.msra.mxu0 %v2164
        %2741 = vmatprep.subr.mxu0 %v2169
        %2742 = vmatpush1.msra.mxu0 %v2168
        %2743 = vmatprep.subr.mxu0 %v2173
        %2744 = vmatpush1.msra.mxu0 %v2172
        %2745 = vmatprep.subr.mxu0 %v2177
        %2746 = vmatpush1.msra.mxu0 %v2176
        %2747 = vmatprep.subr.mxu0 %v2181
        %2748 = vmatpush1.msra.mxu0 %v2180
        %2749 = vmatprep.subr.mxu0 %v2185
        %2750 = vmatpush1.msra.mxu0 %v2184
        %2751 = vmatprep.subr.mxu0 %v2189
        %2752 = vmatpush1.msra.mxu0 %v2188
        %2753 = vmatprep.subr.mxu0 %v2193
        %2754 = vmatpush1.msra.mxu0 %v2192
        %2755 = vmatprep.subr.mxu0 %v2197
        %2756 = vmatpush1.msra.mxu0 %v2196
        %2757 = vmatprep.subr.mxu0 %v2201
        %2758 = vmatpush1.msra.mxu0 %v2200
        %2759 = vmatprep.subr.mxu0 %v2205
        %2760 = vmatpush1.msra.mxu0 %v2204
        %2761 = vmatprep.mubr.f32.mxu0 %v413
        %2762 = vmatmul.mubr.f32.gmra.mrb[0].mxu0 %v412
        %v2763 = vpop.f32.mrb[0].mxu0
        %v2764 = vadd.f32 %v2475, %v2763
        %v2765 = vpop.f32.mrb[0].mxu0
        %v2766 = vadd.f32 %v2479, %v2765
        %2767 = vdwg.mxu0
        %2768 = vmatprep.subr.mxu0 %v2209
        %2769 = vmatpush1.msra.mxu0 %v2208
        %2770 = vmatprep.subr.mxu0 %v2213
        %2771 = vmatpush1.msra.mxu0 %v2212
        %2772 = vmatprep.subr.mxu0 %v2217
        %2773 = vmatpush1.msra.mxu0 %v2216
        %2774 = vmatprep.subr.mxu0 %v2221
        %2775 = vmatpush1.msra.mxu0 %v2220
        %2776 = vmatprep.subr.mxu0 %v2225
        %2777 = vmatpush1.msra.mxu0 %v2224
        %2778 = vmatprep.subr.mxu0 %v2229
        %2779 = vmatpush1.msra.mxu0 %v2228
        %2780 = vmatprep.subr.mxu0 %v2233
        %2781 = vmatpush1.msra.mxu0 %v2232
        %2782 = vmatprep.subr.mxu0 %v2237
        %2783 = vmatpush1.msra.mxu0 %v2236
        %2784 = vmatprep.subr.mxu0 %v2241
        %2785 = vmatpush1.msra.mxu0 %v2240
        %2786 = vmatprep.subr.mxu0 %v2245
        %2787 = vmatpush1.msra.mxu0 %v2244
        %2788 = vmatprep.subr.mxu0 %v2249
        %2789 = vmatpush1.msra.mxu0 %v2248
        %2790 = vmatprep.subr.mxu0 %v2253
        %2791 = vmatpush1.msra.mxu0 %v2252
        %2792 = vmatprep.subr.mxu0 %v2257
        %2793 = vmatpush1.msra.mxu0 %v2256
        %2794 = vmatprep.subr.mxu0 %v2261
        %2795 = vmatpush1.msra.mxu0 %v2260
        %2796 = vmatprep.subr.mxu0 %v2265
        %2797 = vmatpush1.msra.mxu0 %v2264
        %2798 = vmatprep.subr.mxu0 %v2269
        %2799 = vmatpush1.msra.mxu0 %v2268
        %2800 = vmatprep.subr.mxu0 %v2273
        %2801 = vmatpush1.msra.mxu0 %v2272
        %2802 = vmatprep.subr.mxu0 %v2277
        %2803 = vmatpush1.msra.mxu0 %v2276
        %2804 = vmatprep.subr.mxu0 %v2281
        %2805 = vmatpush1.msra.mxu0 %v2280
        %2806 = vmatprep.subr.mxu0 %v2285
        %2807 = vmatpush1.msra.mxu0 %v2284
        %2808 = vmatprep.subr.mxu0 %v2289
        %2809 = vmatpush1.msra.mxu0 %v2288
        %2810 = vmatprep.subr.mxu0 %v2293
        %2811 = vmatpush1.msra.mxu0 %v2292
        %2812 = vmatprep.subr.mxu0 %v2297
        %2813 = vmatpush1.msra.mxu0 %v2296
        %2814 = vmatprep.subr.mxu0 %v2301
        %2815 = vmatpush1.msra.mxu0 %v2300
        %2816 = vmatprep.subr.mxu0 %v2305
        %2817 = vmatpush1.msra.mxu0 %v2304
        %2818 = vmatprep.subr.mxu0 %v2309
        %2819 = vmatpush1.msra.mxu0 %v2308
        %2820 = vmatprep.subr.mxu0 %v2313
        %2821 = vmatpush1.msra.mxu0 %v2312
        %2822 = vmatprep.subr.mxu0 %v2317
        %2823 = vmatpush1.msra.mxu0 %v2316
        %2824 = vmatprep.subr.mxu0 %v2321
        %2825 = vmatpush1.msra.mxu0 %v2320
        %2826 = vmatprep.subr.mxu0 %v2325
        %2827 = vmatpush1.msra.mxu0 %v2324
        %2828 = vmatprep.subr.mxu0 %v2329
        %2829 = vmatpush1.msra.mxu0 %v2328
        %2830 = vmatprep.subr.mxu0 %v2333
        %2831 = vmatpush1.msra.mxu0 %v2332
        %2832 = vmatprep.mubr.f32.mxu0 %v415
        %2833 = vmatmul.mubr.f32.gmra.mrb[0].mxu0 %v414
        %v2834 = vpop.f32.mrb[0].mxu0
        %v2835 = vadd.f32 %v2764, %v2834
        %v2836 = vpop.f32.mrb[0].mxu0
        %v2837 = vadd.f32 %v2766, %v2836
        %2838 = vdwg.mxu0
        %2839 = vmatprep.subr.mxu0 %v2337
        %2840 = vmatpush1.msra.mxu0 %v2336
        %2841 = vmatprep.subr.mxu0 %v2341
        %2842 = vmatpush1.msra.mxu0 %v2340
        %2843 = vmatprep.subr.mxu0 %v2345
        %2844 = vmatpush1.msra.mxu0 %v2344
        %2845 = vmatprep.subr.mxu0 %v2349
        %2846 = vmatpush1.msra.mxu0 %v2348
        %2847 = vmatprep.subr.mxu0 %v2353
        %2848 = vmatpush1.msra.mxu0 %v2352
        %2849 = vmatprep.subr.mxu0 %v2357
        %2850 = vmatpush1.msra.mxu0 %v2356
        %2851 = vmatprep.subr.mxu0 %v2361
        %2852 = vmatpush1.msra.mxu0 %v2360
        %2853 = vmatprep.subr.mxu0 %v2365
        %2854 = vmatpush1.msra.mxu0 %v2364
        %2855 = vmatprep.subr.mxu0 %v2369
        %2856 = vmatpush1.msra.mxu0 %v2368
        %2857 = vmatprep.subr.mxu0 %v2373
        %2858 = vmatpush1.msra.mxu0 %v2372
        %2859 = vmatprep.subr.mxu0 %v2377
        %2860 = vmatpush1.msra.mxu0 %v2376
        %2861 = vmatprep.subr.mxu0 %v2381
        %2862 = vmatpush1.msra.mxu0 %v2380
        %2863 = vmatprep.subr.mxu0 %v2385
        %2864 = vmatpush1.msra.mxu0 %v2384
        %2865 = vmatprep.subr.mxu0 %v2389
        %2866 = vmatpush1.msra.mxu0 %v2388
        %2867 = vmatprep.subr.mxu0 %v2393
        %2868 = vmatpush1.msra.mxu0 %v2392
        %2869 = vmatprep.subr.mxu0 %v2397
        %2870 = vmatpush1.msra.mxu0 %v2396
        %2871 = vmatprep.subr.mxu0 %v2401
        %2872 = vmatpush1.msra.mxu0 %v2400
        %2873 = vmatprep.subr.mxu0 %v2405
        %2874 = vmatpush1.msra.mxu0 %v2404
        %2875 = vmatprep.subr.mxu0 %v2409
        %2876 = vmatpush1.msra.mxu0 %v2408
        %2877 = vmatprep.subr.mxu0 %v2413
        %2878 = vmatpush1.msra.mxu0 %v2412
        %2879 = vmatprep.subr.mxu0 %v2417
        %2880 = vmatpush1.msra.mxu0 %v2416
        %2881 = vmatprep.subr.mxu0 %v2421
        %2882 = vmatpush1.msra.mxu0 %v2420
        %2883 = vmatprep.subr.mxu0 %v2425
        %2884 = vmatpush1.msra.mxu0 %v2424
        %2885 = vmatprep.subr.mxu0 %v2429
        %2886 = vmatpush1.msra.mxu0 %v2428
        %2887 = vmatprep.subr.mxu0 %v2433
        %2888 = vmatpush1.msra.mxu0 %v2432
        %2889 = vmatprep.subr.mxu0 %v2437
        %2890 = vmatpush1.msra.mxu0 %v2436
        %2891 = vmatprep.subr.mxu0 %v2441
        %2892 = vmatpush1.msra.mxu0 %v2440
        %2893 = vmatprep.subr.mxu0 %v2445
        %2894 = vmatpush1.msra.mxu0 %v2444
        %2895 = vmatprep.subr.mxu0 %v2449
        %2896 = vmatpush1.msra.mxu0 %v2448
        %2897 = vmatprep.subr.mxu0 %v2453
        %2898 = vmatpush1.msra.mxu0 %v2452
        %2899 = vmatprep.subr.mxu0 %v2457
        %2900 = vmatpush1.msra.mxu0 %v2456
        %2901 = vmatprep.subr.mxu0 %v2461
        %2902 = vmatpush1.msra.mxu0 %v2460
        %2903 = vmatprep.mubr.f32.mxu0 %v417
        %2904 = vmatmul.mubr.f32.gmra.mrb[0].mxu0 %v416
        %v2905 = vpop.f32.mrb[0].mxu0
        %v2906 = vadd.f32 %v2835, %v2905
        %v2907 = vpop.f32.mrb[0].mxu0
        %v2908 = vadd.f32 %v2837, %v2907
        %2909 = vdwg.mxu0
        %v2910 = vmax.f32 %v2693, 0.0
        %v2911 = vmax.f32 %v2695, 0.0
        %v2912 = vmax.f32 %v2906, 0.0
        %v2913 = vmax.f32 %v2908, 0.0
        %v2914 = vld [vmem:[%s4] sm:$0xff]
        %v2915 = vld [vmem:[%s4 + $0x8] sm:$0xff]
        %v2916 = vld [vmem:[%s4 + $0x10] sm:$0xff]
        %v2917 = vld [vmem:[%s4 + $0x18] sm:$0xff]
        %v2918 = vld [vmem:[%s4 + $0x20] sm:$0xff]
        %v2919 = vld [vmem:[%s4 + $0x28] sm:$0xff]
        %v2920 = vld [vmem:[%s4 + $0x30] sm:$0xff]
        %v2921 = vld [vmem:[%s4 + $0x38] sm:$0xff]
        %v2922 = vld [vmem:[%s4 + $0x40] sm:$0xff]
        %v2923 = vld [vmem:[%s4 + $0x48] sm:$0xff]
        %v2924 = vld [vmem:[%s4 + $0x50] sm:$0xff]
        %v2925 = vld [vmem:[%s4 + $0x58] sm:$0xff]
        %v2926 = vld [vmem:[%s4 + $0x60] sm:$0xff]
        %v2927 = vld [vmem:[%s4 + $0x68] sm:$0xff]
        %v2928 = vld [vmem:[%s4 + $0x70] sm:$0xff]
        %v2929 = vld [vmem:[%s4 + $0x78] sm:$0xff]
        %v2930 = vld [vmem:[%s4 + $0x80] sm:$0xff]
        %v2931 = vld [vmem:[%s4 + $0x88] sm:$0xff]
        %v2932 = vld [vmem:[%s4 + $0x90] sm:$0xff]
        %v2933 = vld [vmem:[%s4 + $0x98] sm:$0xff]
        %v2934 = vld [vmem:[%s4 + $0xa0] sm:$0xff]
        %v2935 = vld [vmem:[%s4 + $0xa8] sm:$0xff]
        %v2936 = vld [vmem:[%s4 + $0xb0] sm:$0xff]
        %v2937 = vld [vmem:[%s4 + $0xb8] sm:$0xff]
        %v2938 = vld [vmem:[%s4 + $0xc0] sm:$0xff]
        %v2939 = vld [vmem:[%s4 + $0xc8] sm:$0xff]
        %v2940 = vld [vmem:[%s4 + $0xd0] sm:$0xff]
        %v2941 = vld [vmem:[%s4 + $0xd8] sm:$0xff]
        %v2942 = vld [vmem:[%s4 + $0xe0] sm:$0xff]
        %v2943 = vld [vmem:[%s4 + $0xe8] sm:$0xff]
        %v2944 = vld [vmem:[%s4 + $0xf0] sm:$0xff]
        %v2945 = vld [vmem:[%s4 + $0xf8] sm:$0xff]
        %v2946 = vld [vmem:[%s4 + $0x100] sm:$0xff]
        %v2947 = vld [vmem:[%s4 + $0x108] sm:$0xff]
        %v2948 = vld [vmem:[%s4 + $0x110] sm:$0xff]
        %v2949 = vld [vmem:[%s4 + $0x118] sm:$0xff]
        %v2950 = vld [vmem:[%s4 + $0x120] sm:$0xff]
        %v2951 = vld [vmem:[%s4 + $0x128] sm:$0xff]
        %v2952 = vld [vmem:[%s4 + $0x130] sm:$0xff]
        %v2953 = vld [vmem:[%s4 + $0x138] sm:$0xff]
        %v2954 = vld [vmem:[%s4 + $0x140] sm:$0xff]
        %v2955 = vld [vmem:[%s4 + $0x148] sm:$0xff]
        %v2956 = vld [vmem:[%s4 + $0x150] sm:$0xff]
        %v2957 = vld [vmem:[%s4 + $0x158] sm:$0xff]
        %v2958 = vld [vmem:[%s4 + $0x160] sm:$0xff]
        %v2959 = vld [vmem:[%s4 + $0x168] sm:$0xff]
        %v2960 = vld [vmem:[%s4 + $0x170] sm:$0xff]
        %v2961 = vld [vmem:[%s4 + $0x178] sm:$0xff]
        %v2962 = vld [vmem:[%s4 + $0x180] sm:$0xff]
        %v2963 = vld [vmem:[%s4 + $0x188] sm:$0xff]
        %v2964 = vld [vmem:[%s4 + $0x190] sm:$0xff]
        %v2965 = vld [vmem:[%s4 + $0x198] sm:$0xff]
        %v2966 = vld [vmem:[%s4 + $0x1a0] sm:$0xff]
        %v2967 = vld [vmem:[%s4 + $0x1a8] sm:$0xff]
        %v2968 = vld [vmem:[%s4 + $0x1b0] sm:$0xff]
        %v2969 = vld [vmem:[%s4 + $0x1b8] sm:$0xff]
        %v2970 = vld [vmem:[%s4 + $0x1c0] sm:$0xff]
        %v2971 = vld [vmem:[%s4 + $0x1c8] sm:$0xff]
        %v2972 = vld [vmem:[%s4 + $0x1d0] sm:$0xff]
        %v2973 = vld [vmem:[%s4 + $0x1d8] sm:$0xff]
        %v2974 = vld [vmem:[%s4 + $0x1e0] sm:$0xff]
        %v2975 = vld [vmem:[%s4 + $0x1e8] sm:$0xff]
        %v2976 = vld [vmem:[%s4 + $0x1f0] sm:$0xff]
        %v2977 = vld [vmem:[%s4 + $0x1f8] sm:$0xff]
        %v2978 = vld [vmem:[%s4 + $0x200] sm:$0xff]
        %v2979 = vld [vmem:[%s4 + $0x208] sm:$0xff]
        %v2980 = vld [vmem:[%s4 + $0x210] sm:$0xff]
        %v2981 = vld [vmem:[%s4 + $0x218] sm:$0xff]
        %v2982 = vld [vmem:[%s4 + $0x220] sm:$0xff]
        %v2983 = vld [vmem:[%s4 + $0x228] sm:$0xff]
        %v2984 = vld [vmem:[%s4 + $0x230] sm:$0xff]
        %v2985 = vld [vmem:[%s4 + $0x238] sm:$0xff]
        %v2986 = vld [vmem:[%s4 + $0x240] sm:$0xff]
        %v2987 = vld [vmem:[%s4 + $0x248] sm:$0xff]
        %v2988 = vld [vmem:[%s4 + $0x250] sm:$0xff]
        %v2989 = vld [vmem:[%s4 + $0x258] sm:$0xff]
        %v2990 = vld [vmem:[%s4 + $0x260] sm:$0xff]
        %v2991 = vld [vmem:[%s4 + $0x268] sm:$0xff]
        %v2992 = vld [vmem:[%s4 + $0x270] sm:$0xff]
        %v2993 = vld [vmem:[%s4 + $0x278] sm:$0xff]
        %v2994 = vld [vmem:[%s4 + $0x280] sm:$0xff]
        %v2995 = vld [vmem:[%s4 + $0x288] sm:$0xff]
        %v2996 = vld [vmem:[%s4 + $0x290] sm:$0xff]
        %v2997 = vld [vmem:[%s4 + $0x298] sm:$0xff]
        %v2998 = vld [vmem:[%s4 + $0x2a0] sm:$0xff]
        %v2999 = vld [vmem:[%s4 + $0x2a8] sm:$0xff]
        %v3000 = vld [vmem:[%s4 + $0x2b0] sm:$0xff]
        %v3001 = vld [vmem:[%s4 + $0x2b8] sm:$0xff]
        %v3002 = vld [vmem:[%s4 + $0x2c0] sm:$0xff]
        %v3003 = vld [vmem:[%s4 + $0x2c8] sm:$0xff]
        %v3004 = vld [vmem:[%s4 + $0x2d0] sm:$0xff]
        %v3005 = vld [vmem:[%s4 + $0x2d8] sm:$0xff]
        %v3006 = vld [vmem:[%s4 + $0x2e0] sm:$0xff]
        %v3007 = vld [vmem:[%s4 + $0x2e8] sm:$0xff]
        %v3008 = vld [vmem:[%s4 + $0x2f0] sm:$0xff]
        %v3009 = vld [vmem:[%s4 + $0x2f8] sm:$0xff]
        %v3010 = vld [vmem:[%s4 + $0x300] sm:$0xff]
        %v3011 = vld [vmem:[%s4 + $0x308] sm:$0xff]
        %v3012 = vld [vmem:[%s4 + $0x310] sm:$0xff]
        %v3013 = vld [vmem:[%s4 + $0x318] sm:$0xff]
        %v3014 = vld [vmem:[%s4 + $0x320] sm:$0xff]
        %v3015 = vld [vmem:[%s4 + $0x328] sm:$0xff]
        %v3016 = vld [vmem:[%s4 + $0x330] sm:$0xff]
        %v3017 = vld [vmem:[%s4 + $0x338] sm:$0xff]
        %v3018 = vld [vmem:[%s4 + $0x340] sm:$0xff]
        %v3019 = vld [vmem:[%s4 + $0x348] sm:$0xff]
        %v3020 = vld [vmem:[%s4 + $0x350] sm:$0xff]
        %v3021 = vld [vmem:[%s4 + $0x358] sm:$0xff]
        %v3022 = vld [vmem:[%s6] sm:$0x3]
        %v3024 = vlaneseq
        %v3025 = vshrl.u32 %v3024, 7
        %v3026 = vsub.s32 0, %v3025
        %v3027 = vrot.slane %v3022, %v3026
        %v3028 = vlaneseq
        %v3029 = vshrl.u32 %v3028, 7
        %v3030 = vsub.s32 1, %v3029
        %v3031 = vrot.slane %v3022, %v3030
        %vm3034 = vcmask 392192
        %v3036 = vsel %vm3034, %v2077, 0
        %3038 = vmatprep.subr.mxu0 %v2915
        %3039 = vmatpush1.msra.mxu0 %v2914
        %3040 = vmatprep.subr.mxu0 %v2917
        %3041 = vmatpush1.msra.mxu0 %v2916
        %3042 = vmatprep.subr.mxu0 %v2919
        %3043 = vmatpush1.msra.mxu0 %v2918
        %3044 = vmatprep.subr.mxu0 %v2921
        %3045 = vmatpush1.msra.mxu0 %v2920
        %3046 = vmatprep.subr.mxu0 %v2923
        %3047 = vmatpush1.msra.mxu0 %v2922
        %3048 = vmatprep.subr.mxu0 %v2925
        %3049 = vmatpush1.msra.mxu0 %v2924
        %3050 = vmatprep.subr.mxu0 %v2927
        %3051 = vmatpush1.msra.mxu0 %v2926
        %3052 = vmatprep.subr.mxu0 %v2929
        %3053 = vmatpush1.msra.mxu0 %v2928
        %3054 = vmatprep.subr.mxu0 %v2931
        %3055 = vmatpush1.msra.mxu0 %v2930
        %3056 = vmatprep.subr.mxu0 %v2933
        %3057 = vmatpush1.msra.mxu0 %v2932
        %3058 = vmatprep.subr.mxu0 %v2935
        %3059 = vmatpush1.msra.mxu0 %v2934
        %3060 = vmatprep.subr.mxu0 %v2937
        %3061 = vmatpush1.msra.mxu0 %v2936
        %3062 = vmatprep.subr.mxu0 %v2939
        %3063 = vmatpush1.msra.mxu0 %v2938
        %3064 = vmatprep.subr.mxu0 %v2941
        %3065 = vmatpush1.msra.mxu0 %v2940
        %3066 = vmatprep.subr.mxu0 %v2943
        %3067 = vmatpush1.msra.mxu0 %v2942
        %3068 = vmatprep.subr.mxu0 %v2945
        %3069 = vmatpush1.msra.mxu0 %v2944
        %3070 = vmatprep.subr.mxu0 %v2947
        %3071 = vmatpush1.msra.mxu0 %v2946
        %3072 = vmatprep.subr.mxu0 %v2949
        %3073 = vmatpush1.msra.mxu0 %v2948
        %3074 = vmatprep.subr.mxu0 %v2951
        %3075 = vmatpush1.msra.mxu0 %v2950
        %3076 = vmatprep.subr.mxu0 %v2953
        %3077 = vmatpush1.msra.mxu0 %v2952
        %3078 = vmatprep.subr.mxu0 %v2955
        %3079 = vmatpush1.msra.mxu0 %v2954
        %3080 = vmatprep.subr.mxu0 %v2957
        %3081 = vmatpush1.msra.mxu0 %v2956
        %3082 = vmatprep.subr.mxu0 %v2959
        %3083 = vmatpush1.msra.mxu0 %v2958
        %3084 = vmatprep.subr.mxu0 %v2961
        %3085 = vmatpush1.msra.mxu0 %v2960
        %3086 = vmatprep.subr.mxu0 %v2963
        %3087 = vmatpush1.msra.mxu0 %v2962
        %3088 = vmatprep.subr.mxu0 %v2965
        %3089 = vmatpush1.msra.mxu0 %v2964
        %3090 = vmatprep.subr.mxu0 %v2967
        %3091 = vmatpush1.msra.mxu0 %v2966
        %3092 = vmatprep.subr.mxu0 %v2969
        %3093 = vmatpush1.msra.mxu0 %v2968
        %3094 = vmatprep.subr.mxu0 %v2971
        %3095 = vmatpush1.msra.mxu0 %v2970
        %3096 = vmatprep.subr.mxu0 %v2973
        %3097 = vmatpush1.msra.mxu0 %v2972
        %3098 = vmatprep.subr.mxu0 %v2975
        %3099 = vmatpush1.msra.mxu0 %v2974
        %3100 = vmatprep.subr.mxu0 %v2977
        %3101 = vmatpush1.msra.mxu0 %v2976
        %3102 = vmatprep.mubr.f32.mxu0 %v2063
        %3103 = vmatmul.mubr.f32.gmra.mrb[0].mxu0 %v2056
        %v3104 = vpop.f32.mrb[0].mxu0
        %v3105 = vadd.f32 %v3027, %v3104
        %v3106 = vpop.f32.mrb[0].mxu0
        %v3107 = vadd.f32 %v3031, %v3106
        %3108 = vdwg.mxu0
        %3109 = vmatprep.subr.mxu0 %v2979
        %3110 = vmatpush1.msra.mxu0 %v2978
        %3111 = vmatprep.subr.mxu0 %v2981
        %3112 = vmatpush1.msra.mxu0 %v2980
        %3113 = vmatprep.subr.mxu0 %v2983
        %3114 = vmatpush1.msra.mxu0 %v2982
        %3115 = vmatprep.subr.mxu0 %v2985
        %3116 = vmatpush1.msra.mxu0 %v2984
        %3117 = vmatprep.subr.mxu0 %v2987
        %3118 = vmatpush1.msra.mxu0 %v2986
        %3119 = vmatprep.subr.mxu0 %v2989
        %3120 = vmatpush1.msra.mxu0 %v2988
        %3121 = vmatprep.subr.mxu0 %v2991
        %3122 = vmatpush1.msra.mxu0 %v2990
        %3123 = vmatprep.subr.mxu0 %v2993
        %3124 = vmatpush1.msra.mxu0 %v2992
        %3125 = vmatprep.subr.mxu0 %v2995
        %3126 = vmatpush1.msra.mxu0 %v2994
        %3127 = vmatprep.subr.mxu0 %v2997
        %3128 = vmatpush1.msra.mxu0 %v2996
        %3129 = vmatprep.subr.mxu0 %v2999
        %3130 = vmatpush1.msra.mxu0 %v2998
        %3131 = vmatprep.subr.mxu0 %v3001
        %3132 = vmatpush1.msra.mxu0 %v3000
        %3133 = vmatprep.subr.mxu0 %v3003
        %3134 = vmatpush1.msra.mxu0 %v3002
        %3135 = vmatprep.subr.mxu0 %v3005
        %3136 = vmatpush1.msra.mxu0 %v3004
        %3137 = vmatprep.subr.mxu0 %v3007
        %3138 = vmatpush1.msra.mxu0 %v3006
        %3139 = vmatprep.subr.mxu0 %v3009
        %3140 = vmatpush1.msra.mxu0 %v3008
        %3141 = vmatprep.subr.mxu0 %v3011
        %3142 = vmatpush1.msra.mxu0 %v3010
        %3143 = vmatprep.subr.mxu0 %v3013
        %3144 = vmatpush1.msra.mxu0 %v3012
        %3145 = vmatprep.subr.mxu0 %v3015
        %3146 = vmatpush1.msra.mxu0 %v3014
        %3147 = vmatprep.subr.mxu0 %v3017
        %3148 = vmatpush1.msra.mxu0 %v3016
        %3149 = vmatprep.subr.mxu0 %v3019
        %3150 = vmatpush1.msra.mxu0 %v3018
        %3151 = vmatprep.subr.mxu0 %v3021
        %3152 = vmatpush1.msra.mxu0 %v3020
        %3153 = vmatprep.subr.mxu0 0.0
        %3154 = vmatpush1.msra.mxu0 0.0
        %3155 = vmatprep.subr.mxu0 0.0
        %3156 = vmatpush1.msra.mxu0 0.0
        %3157 = vmatprep.subr.mxu0 0.0
        %3158 = vmatpush1.msra.mxu0 0.0
        %3159 = vmatprep.subr.mxu0 0.0
        %3160 = vmatpush1.msra.mxu0 0.0
        %3161 = vmatprep.subr.mxu0 0.0
        %3162 = vmatpush1.msra.mxu0 0.0
        %3163 = vmatprep.subr.mxu0 0.0
        %3164 = vmatpush1.msra.mxu0 0.0
        %3165 = vmatprep.subr.mxu0 0.0
        %3166 = vmatpush1.msra.mxu0 0.0
        %3167 = vmatprep.subr.mxu0 0.0
        %3168 = vmatpush1.msra.mxu0 0.0
        %3169 = vmatprep.subr.mxu0 0.0
        %3170 = vmatpush1.msra.mxu0 0.0
        %3171 = vmatprep.subr.mxu0 0.0
        %3172 = vmatpush1.msra.mxu0 0.0
        %3173 = vmatprep.mubr.f32.mxu0 %v3036
        %3174 = vmatmul.mubr.f32.gmra.mrb[0].mxu0 %v2070
        %v3175 = vpop.f32.mrb[0].mxu0
        %v3176 = vadd.f32 %v3105, %v3175
        %v3177 = vpop.f32.mrb[0].mxu0
        %v3178 = vadd.f32 %v3107, %v3177
        %3179 = vdwg.mxu0
        %v3180 = vmax.f32 %v3176, 0.0
        %v3181 = vmax.f32 %v3178, 0.0
        %v3182 = vld [vmem:[%s7] sm:$0xff]
        %v3183 = vld [vmem:[%s7 + $0x8] sm:$0xff]
        %v3184 = vld [vmem:[%s7 + $0x10] sm:$0xff]
        %v3185 = vld [vmem:[%s7 + $0x18] sm:$0xff]
        %v3186 = vld [vmem:[%s7 + $0x20] sm:$0xff]
        %v3187 = vld [vmem:[%s7 + $0x28] sm:$0xff]
        %v3188 = vld [vmem:[%s7 + $0x30] sm:$0xff]
        %v3189 = vld [vmem:[%s7 + $0x38] sm:$0xff]
        %v3190 = vld [vmem:[%s7 + $0x40] sm:$0xff]
        %v3191 = vld [vmem:[%s7 + $0x48] sm:$0xff]
        %v3192 = vld [vmem:[%s7 + $0x50] sm:$0xff]
        %v3193 = vld [vmem:[%s7 + $0x58] sm:$0xff]
        %v3194 = vld [vmem:[%s7 + $0x60] sm:$0xff]
        %v3195 = vld [vmem:[%s7 + $0x68] sm:$0xff]
        %v3196 = vld [vmem:[%s7 + $0x70] sm:$0xff]
        %v3197 = vld [vmem:[%s7 + $0x78] sm:$0xff]
        %v3198 = vld [vmem:[%s7 + $0x80] sm:$0xff]
        %v3199 = vld [vmem:[%s7 + $0x88] sm:$0xff]
        %v3200 = vld [vmem:[%s7 + $0x90] sm:$0xff]
        %v3201 = vld [vmem:[%s7 + $0x98] sm:$0xff]
        %v3202 = vld [vmem:[%s7 + $0xa0] sm:$0xff]
        %v3203 = vld [vmem:[%s7 + $0xa8] sm:$0xff]
        %v3204 = vld [vmem:[%s7 + $0xb0] sm:$0xff]
        %v3205 = vld [vmem:[%s7 + $0xb8] sm:$0xff]
        %v3206 = vld [vmem:[%s7 + $0xc0] sm:$0xff]
        %v3207 = vld [vmem:[%s7 + $0xc8] sm:$0xff]
        %v3208 = vld [vmem:[%s7 + $0xd0] sm:$0xff]
        %v3209 = vld [vmem:[%s7 + $0xd8] sm:$0xff]
        %v3210 = vld [vmem:[%s7 + $0xe0] sm:$0xff]
        %v3211 = vld [vmem:[%s7 + $0xe8] sm:$0xff]
        %v3212 = vld [vmem:[%s7 + $0xf0] sm:$0xff]
        %v3213 = vld [vmem:[%s7 + $0xf8] sm:$0xff]
        %v3214 = vld [vmem:[%s7 + $0x100] sm:$0xff]
        %v3215 = vld [vmem:[%s7 + $0x108] sm:$0xff]
        %v3216 = vld [vmem:[%s7 + $0x110] sm:$0xff]
        %v3217 = vld [vmem:[%s7 + $0x118] sm:$0xff]
        %v3218 = vld [vmem:[%s7 + $0x120] sm:$0xff]
        %v3219 = vld [vmem:[%s7 + $0x128] sm:$0xff]
        %v3220 = vld [vmem:[%s7 + $0x130] sm:$0xff]
        %v3221 = vld [vmem:[%s7 + $0x138] sm:$0xff]
        %v3222 = vld [vmem:[%s7 + $0x140] sm:$0xff]
        %v3223 = vld [vmem:[%s7 + $0x148] sm:$0xff]
        %v3224 = vld [vmem:[%s7 + $0x150] sm:$0xff]
        %v3225 = vld [vmem:[%s7 + $0x158] sm:$0xff]
        %v3226 = vld [vmem:[%s7 + $0x160] sm:$0xff]
        %v3227 = vld [vmem:[%s7 + $0x168] sm:$0xff]
        %v3228 = vld [vmem:[%s7 + $0x170] sm:$0xff]
        %v3229 = vld [vmem:[%s7 + $0x178] sm:$0xff]
        %v3230 = vld [vmem:[%s7 + $0x180] sm:$0xff]
        %v3231 = vld [vmem:[%s7 + $0x188] sm:$0xff]
        %v3232 = vld [vmem:[%s7 + $0x190] sm:$0xff]
        %v3233 = vld [vmem:[%s7 + $0x198] sm:$0xff]
        %v3234 = vld [vmem:[%s7 + $0x1a0] sm:$0xff]
        %v3235 = vld [vmem:[%s7 + $0x1a8] sm:$0xff]
        %v3236 = vld [vmem:[%s7 + $0x1b0] sm:$0xff]
        %v3237 = vld [vmem:[%s7 + $0x1b8] sm:$0xff]
        %v3238 = vld [vmem:[%s7 + $0x1c0] sm:$0xff]
        %v3239 = vld [vmem:[%s7 + $0x1c8] sm:$0xff]
        %v3240 = vld [vmem:[%s7 + $0x1d0] sm:$0xff]
        %v3241 = vld [vmem:[%s7 + $0x1d8] sm:$0xff]
        %v3242 = vld [vmem:[%s7 + $0x1e0] sm:$0xff]
        %v3243 = vld [vmem:[%s7 + $0x1e8] sm:$0xff]
        %v3244 = vld [vmem:[%s7 + $0x1f0] sm:$0xff]
        %v3245 = vld [vmem:[%s7 + $0x1f8] sm:$0xff]
        %v3246 = vld [vmem:[%s7 + $0x200] sm:$0xff]
        %v3247 = vld [vmem:[%s7 + $0x208] sm:$0xff]
        %v3248 = vld [vmem:[%s7 + $0x210] sm:$0xff]
        %v3249 = vld [vmem:[%s7 + $0x218] sm:$0xff]
        %v3250 = vld [vmem:[%s7 + $0x220] sm:$0xff]
        %v3251 = vld [vmem:[%s7 + $0x228] sm:$0xff]
        %v3252 = vld [vmem:[%s7 + $0x230] sm:$0xff]
        %v3253 = vld [vmem:[%s7 + $0x238] sm:$0xff]
        %v3254 = vld [vmem:[%s7 + $0x240] sm:$0xff]
        %v3255 = vld [vmem:[%s7 + $0x248] sm:$0xff]
        %v3256 = vld [vmem:[%s7 + $0x250] sm:$0xff]
        %v3257 = vld [vmem:[%s7 + $0x258] sm:$0xff]
        %v3258 = vld [vmem:[%s7 + $0x260] sm:$0xff]
        %v3259 = vld [vmem:[%s7 + $0x268] sm:$0xff]
        %v3260 = vld [vmem:[%s7 + $0x270] sm:$0xff]
        %v3261 = vld [vmem:[%s7 + $0x278] sm:$0xff]
        %v3262 = vld [vmem:[%s7 + $0x280] sm:$0xff]
        %v3263 = vld [vmem:[%s7 + $0x288] sm:$0xff]
        %v3264 = vld [vmem:[%s7 + $0x290] sm:$0xff]
        %v3265 = vld [vmem:[%s7 + $0x298] sm:$0xff]
        %v3266 = vld [vmem:[%s7 + $0x2a0] sm:$0xff]
        %v3267 = vld [vmem:[%s7 + $0x2a8] sm:$0xff]
        %v3268 = vld [vmem:[%s7 + $0x2b0] sm:$0xff]
        %v3269 = vld [vmem:[%s7 + $0x2b8] sm:$0xff]
        %v3270 = vld [vmem:[%s7 + $0x2c0] sm:$0xff]
        %v3271 = vld [vmem:[%s7 + $0x2c8] sm:$0xff]
        %v3272 = vld [vmem:[%s7 + $0x2d0] sm:$0xff]
        %v3273 = vld [vmem:[%s7 + $0x2d8] sm:$0xff]
        %v3274 = vld [vmem:[%s7 + $0x2e0] sm:$0xff]
        %v3275 = vld [vmem:[%s7 + $0x2e8] sm:$0xff]
        %v3276 = vld [vmem:[%s7 + $0x2f0] sm:$0xff]
        %v3277 = vld [vmem:[%s7 + $0x2f8] sm:$0xff]
        %v3278 = vld [vmem:[%s7 + $0x300] sm:$0xff]
        %v3279 = vld [vmem:[%s7 + $0x308] sm:$0xff]
        %v3280 = vld [vmem:[%s7 + $0x310] sm:$0xff]
        %v3281 = vld [vmem:[%s7 + $0x318] sm:$0xff]
        %v3282 = vld [vmem:[%s7 + $0x320] sm:$0xff]
        %v3283 = vld [vmem:[%s7 + $0x328] sm:$0xff]
        %v3284 = vld [vmem:[%s7 + $0x330] sm:$0xff]
        %v3285 = vld [vmem:[%s7 + $0x338] sm:$0xff]
        %v3286 = vld [vmem:[%s7 + $0x340] sm:$0xff]
        %v3287 = vld [vmem:[%s7 + $0x348] sm:$0xff]
        %v3288 = vld [vmem:[%s7 + $0x350] sm:$0xff]
        %v3289 = vld [vmem:[%s7 + $0x358] sm:$0xff]
        %v3290 = vld [vmem:[%s7 + $0x360] sm:$0xff]
        %v3291 = vld [vmem:[%s7 + $0x368] sm:$0xff]
        %v3292 = vld [vmem:[%s7 + $0x370] sm:$0xff]
        %v3293 = vld [vmem:[%s7 + $0x378] sm:$0xff]
        %v3294 = vld [vmem:[%s7 + $0x380] sm:$0xff]
        %v3295 = vld [vmem:[%s7 + $0x388] sm:$0xff]
        %v3296 = vld [vmem:[%s7 + $0x390] sm:$0xff]
        %v3297 = vld [vmem:[%s7 + $0x398] sm:$0xff]
        %v3298 = vld [vmem:[%s7 + $0x3a0] sm:$0xff]
        %v3299 = vld [vmem:[%s7 + $0x3a8] sm:$0xff]
        %v3300 = vld [vmem:[%s7 + $0x3b0] sm:$0xff]
        %v3301 = vld [vmem:[%s7 + $0x3b8] sm:$0xff]
        %v3302 = vld [vmem:[%s7 + $0x3c0] sm:$0xff]
        %v3303 = vld [vmem:[%s7 + $0x3c8] sm:$0xff]
        %v3304 = vld [vmem:[%s7 + $0x3d0] sm:$0xff]
        %v3305 = vld [vmem:[%s7 + $0x3d8] sm:$0xff]
        %v3306 = vld [vmem:[%s7 + $0x3e0] sm:$0xff]
        %v3307 = vld [vmem:[%s7 + $0x3e8] sm:$0xff]
        %v3308 = vld [vmem:[%s7 + $0x3f0] sm:$0xff]
        %v3309 = vld [vmem:[%s7 + $0x3f8] sm:$0xff]
        %v3310 = vld [vmem:[%s7 + $0x400] sm:$0xff]
        %v3311 = vld [vmem:[%s7 + $0x408] sm:$0xff]
        %v3312 = vld [vmem:[%s7 + $0x410] sm:$0xff]
        %v3313 = vld [vmem:[%s7 + $0x418] sm:$0xff]
        %v3314 = vld [vmem:[%s7 + $0x420] sm:$0xff]
        %v3315 = vld [vmem:[%s7 + $0x428] sm:$0xff]
        %v3316 = vld [vmem:[%s7 + $0x430] sm:$0xff]
        %v3317 = vld [vmem:[%s7 + $0x438] sm:$0xff]
        %v3318 = vld [vmem:[%s7 + $0x440] sm:$0xff]
        %v3319 = vld [vmem:[%s7 + $0x448] sm:$0xff]
        %v3320 = vld [vmem:[%s7 + $0x450] sm:$0xff]
        %v3321 = vld [vmem:[%s7 + $0x458] sm:$0xff]
        %v3322 = vld [vmem:[%s7 + $0x460] sm:$0xff]
        %v3323 = vld [vmem:[%s7 + $0x468] sm:$0xff]
        %v3324 = vld [vmem:[%s7 + $0x470] sm:$0xff]
        %v3325 = vld [vmem:[%s7 + $0x478] sm:$0xff]
        %v3326 = vld [vmem:[%s7 + $0x480] sm:$0xff]
        %v3327 = vld [vmem:[%s7 + $0x488] sm:$0xff]
        %v3328 = vld [vmem:[%s7 + $0x490] sm:$0xff]
        %v3329 = vld [vmem:[%s7 + $0x498] sm:$0xff]
        %v3330 = vld [vmem:[%s7 + $0x4a0] sm:$0xff]
        %v3331 = vld [vmem:[%s7 + $0x4a8] sm:$0xff]
        %v3332 = vld [vmem:[%s7 + $0x4b0] sm:$0xff]
        %v3333 = vld [vmem:[%s7 + $0x4b8] sm:$0xff]
        %v3334 = vld [vmem:[%s7 + $0x4c0] sm:$0xff]
        %v3335 = vld [vmem:[%s7 + $0x4c8] sm:$0xff]
        %v3336 = vld [vmem:[%s7 + $0x4d0] sm:$0xff]
        %v3337 = vld [vmem:[%s7 + $0x4d8] sm:$0xff]
        %v3338 = vld [vmem:[%s7 + $0x4e0] sm:$0xff]
        %v3339 = vld [vmem:[%s7 + $0x4e8] sm:$0xff]
        %v3340 = vld [vmem:[%s7 + $0x4f0] sm:$0xff]
        %v3341 = vld [vmem:[%s7 + $0x4f8] sm:$0xff]
        %v3342 = vld [vmem:[%s7 + $0x500] sm:$0xff]
        %v3343 = vld [vmem:[%s7 + $0x508] sm:$0xff]
        %v3344 = vld [vmem:[%s7 + $0x510] sm:$0xff]
        %v3345 = vld [vmem:[%s7 + $0x518] sm:$0xff]
        %v3346 = vld [vmem:[%s7 + $0x520] sm:$0xff]
        %v3347 = vld [vmem:[%s7 + $0x528] sm:$0xff]
        %v3348 = vld [vmem:[%s7 + $0x530] sm:$0xff]
        %v3349 = vld [vmem:[%s7 + $0x538] sm:$0xff]
        %v3350 = vld [vmem:[%s7 + $0x540] sm:$0xff]
        %v3351 = vld [vmem:[%s7 + $0x548] sm:$0xff]
        %v3352 = vld [vmem:[%s7 + $0x550] sm:$0xff]
        %v3353 = vld [vmem:[%s7 + $0x558] sm:$0xff]
        %v3354 = vld [vmem:[%s7 + $0x560] sm:$0xff]
        %v3355 = vld [vmem:[%s7 + $0x568] sm:$0xff]
        %v3356 = vld [vmem:[%s7 + $0x570] sm:$0xff]
        %v3357 = vld [vmem:[%s7 + $0x578] sm:$0xff]
        %v3358 = vld [vmem:[%s7 + $0x580] sm:$0xff]
        %v3359 = vld [vmem:[%s7 + $0x588] sm:$0xff]
        %v3360 = vld [vmem:[%s7 + $0x590] sm:$0xff]
        %v3361 = vld [vmem:[%s7 + $0x598] sm:$0xff]
        %v3362 = vld [vmem:[%s7 + $0x5a0] sm:$0xff]
        %v3363 = vld [vmem:[%s7 + $0x5a8] sm:$0xff]
        %v3364 = vld [vmem:[%s7 + $0x5b0] sm:$0xff]
        %v3365 = vld [vmem:[%s7 + $0x5b8] sm:$0xff]
        %v3366 = vld [vmem:[%s7 + $0x5c0] sm:$0xff]
        %v3367 = vld [vmem:[%s7 + $0x5c8] sm:$0xff]
        %v3368 = vld [vmem:[%s7 + $0x5d0] sm:$0xff]
        %v3369 = vld [vmem:[%s7 + $0x5d8] sm:$0xff]
        %v3370 = vld [vmem:[%s7 + $0x5e0] sm:$0xff]
        %v3371 = vld [vmem:[%s7 + $0x5e8] sm:$0xff]
        %v3372 = vld [vmem:[%s7 + $0x5f0] sm:$0xff]
        %v3373 = vld [vmem:[%s7 + $0x5f8] sm:$0xff]
        %v3374 = vld [vmem:[%s7 + $0x600] sm:$0xff]
        %v3375 = vld [vmem:[%s7 + $0x608] sm:$0xff]
        %v3376 = vld [vmem:[%s7 + $0x610] sm:$0xff]
        %v3377 = vld [vmem:[%s7 + $0x618] sm:$0xff]
        %v3378 = vld [vmem:[%s7 + $0x620] sm:$0xff]
        %v3379 = vld [vmem:[%s7 + $0x628] sm:$0xff]
        %v3380 = vld [vmem:[%s7 + $0x630] sm:$0xff]
        %v3381 = vld [vmem:[%s7 + $0x638] sm:$0xff]
        %v3382 = vld [vmem:[%s7 + $0x640] sm:$0xff]
        %v3383 = vld [vmem:[%s7 + $0x648] sm:$0xff]
        %v3384 = vld [vmem:[%s7 + $0x650] sm:$0xff]
        %v3385 = vld [vmem:[%s7 + $0x658] sm:$0xff]
        %v3386 = vld [vmem:[%s7 + $0x660] sm:$0xff]
        %v3387 = vld [vmem:[%s7 + $0x668] sm:$0xff]
        %v3388 = vld [vmem:[%s7 + $0x670] sm:$0xff]
        %v3389 = vld [vmem:[%s7 + $0x678] sm:$0xff]
        %v3390 = vld [vmem:[%s7 + $0x680] sm:$0xff]
        %v3391 = vld [vmem:[%s7 + $0x688] sm:$0xff]
        %v3392 = vld [vmem:[%s7 + $0x690] sm:$0xff]
        %v3393 = vld [vmem:[%s7 + $0x698] sm:$0xff]
        %v3394 = vld [vmem:[%s7 + $0x6a0] sm:$0xff]
        %v3395 = vld [vmem:[%s7 + $0x6a8] sm:$0xff]
        %v3396 = vld [vmem:[%s7 + $0x6b0] sm:$0xff]
        %v3397 = vld [vmem:[%s7 + $0x6b8] sm:$0xff]
        %v3398 = vld [vmem:[%s7 + $0x6c0] sm:$0xff]
        %v3399 = vld [vmem:[%s7 + $0x6c8] sm:$0xff]
        %v3400 = vld [vmem:[%s7 + $0x6d0] sm:$0xff]
        %v3401 = vld [vmem:[%s7 + $0x6d8] sm:$0xff]
        %v3402 = vld [vmem:[%s7 + $0x6e0] sm:$0xff]
        %v3403 = vld [vmem:[%s7 + $0x6e8] sm:$0xff]
        %v3404 = vld [vmem:[%s7 + $0x6f0] sm:$0xff]
        %v3405 = vld [vmem:[%s7 + $0x6f8] sm:$0xff]
        %v3406 = vld [vmem:[%s7 + $0x700] sm:$0xff]
        %v3407 = vld [vmem:[%s7 + $0x708] sm:$0xff]
        %v3408 = vld [vmem:[%s7 + $0x710] sm:$0xff]
        %v3409 = vld [vmem:[%s7 + $0x718] sm:$0xff]
        %v3410 = vld [vmem:[%s7 + $0x720] sm:$0xff]
        %v3411 = vld [vmem:[%s7 + $0x728] sm:$0xff]
        %v3412 = vld [vmem:[%s7 + $0x730] sm:$0xff]
        %v3413 = vld [vmem:[%s7 + $0x738] sm:$0xff]
        %v3414 = vld [vmem:[%s7 + $0x740] sm:$0xff]
        %v3415 = vld [vmem:[%s7 + $0x748] sm:$0xff]
        %v3416 = vld [vmem:[%s7 + $0x750] sm:$0xff]
        %v3417 = vld [vmem:[%s7 + $0x758] sm:$0xff]
        %v3418 = vld [vmem:[%s7 + $0x760] sm:$0xff]
        %v3419 = vld [vmem:[%s7 + $0x768] sm:$0xff]
        %v3420 = vld [vmem:[%s7 + $0x770] sm:$0xff]
        %v3421 = vld [vmem:[%s7 + $0x778] sm:$0xff]
        %v3422 = vld [vmem:[%s7 + $0x780] sm:$0xff]
        %v3423 = vld [vmem:[%s7 + $0x788] sm:$0xff]
        %v3424 = vld [vmem:[%s7 + $0x790] sm:$0xff]
        %v3425 = vld [vmem:[%s7 + $0x798] sm:$0xff]
        %v3426 = vld [vmem:[%s7 + $0x7a0] sm:$0xff]
        %v3427 = vld [vmem:[%s7 + $0x7a8] sm:$0xff]
        %v3428 = vld [vmem:[%s7 + $0x7b0] sm:$0xff]
        %v3429 = vld [vmem:[%s7 + $0x7b8] sm:$0xff]
        %v3430 = vld [vmem:[%s7 + $0x7c0] sm:$0xff]
        %v3431 = vld [vmem:[%s7 + $0x7c8] sm:$0xff]
        %v3432 = vld [vmem:[%s7 + $0x7d0] sm:$0xff]
        %v3433 = vld [vmem:[%s7 + $0x7d8] sm:$0xff]
        %v3434 = vld [vmem:[%s7 + $0x7e0] sm:$0xff]
        %v3435 = vld [vmem:[%s7 + $0x7e8] sm:$0xff]
        %v3436 = vld [vmem:[%s7 + $0x7f0] sm:$0xff]
        %v3437 = vld [vmem:[%s7 + $0x7f8] sm:$0xff]
        %v3438 = vld [vmem:[%s7 + $0x800] sm:$0xff]
        %v3439 = vld [vmem:[%s7 + $0x808] sm:$0xff]
        %v3440 = vld [vmem:[%s7 + $0x810] sm:$0xff]
        %v3441 = vld [vmem:[%s7 + $0x818] sm:$0xff]
        %v3442 = vld [vmem:[%s7 + $0x820] sm:$0xff]
        %v3443 = vld [vmem:[%s7 + $0x828] sm:$0xff]
        %v3444 = vld [vmem:[%s7 + $0x830] sm:$0xff]
        %v3445 = vld [vmem:[%s7 + $0x838] sm:$0xff]
        %v3446 = vld [vmem:[%s7 + $0x840] sm:$0xff]
        %v3447 = vld [vmem:[%s7 + $0x848] sm:$0xff]
        %v3448 = vld [vmem:[%s7 + $0x850] sm:$0xff]
        %v3449 = vld [vmem:[%s7 + $0x858] sm:$0xff]
        %v3450 = vld [vmem:[%s7 + $0x860] sm:$0xff]
        %v3451 = vld [vmem:[%s7 + $0x868] sm:$0xff]
        %v3452 = vld [vmem:[%s7 + $0x870] sm:$0xff]
        %v3453 = vld [vmem:[%s7 + $0x878] sm:$0xff]
        %v3454 = vld [vmem:[%s7 + $0x880] sm:$0xff]
        %v3455 = vld [vmem:[%s7 + $0x888] sm:$0xff]
        %v3456 = vld [vmem:[%s7 + $0x890] sm:$0xff]
        %v3457 = vld [vmem:[%s7 + $0x898] sm:$0xff]
        %v3458 = vld [vmem:[%s7 + $0x8a0] sm:$0xff]
        %v3459 = vld [vmem:[%s7 + $0x8a8] sm:$0xff]
        %v3460 = vld [vmem:[%s7 + $0x8b0] sm:$0xff]
        %v3461 = vld [vmem:[%s7 + $0x8b8] sm:$0xff]
        %v3462 = vld [vmem:[%s7 + $0x8c0] sm:$0xff]
        %v3463 = vld [vmem:[%s7 + $0x8c8] sm:$0xff]
        %v3464 = vld [vmem:[%s7 + $0x8d0] sm:$0xff]
        %v3465 = vld [vmem:[%s7 + $0x8d8] sm:$0xff]
        %v3466 = vld [vmem:[%s7 + $0x8e0] sm:$0xff]
        %v3467 = vld [vmem:[%s7 + $0x8e8] sm:$0xff]
        %v3468 = vld [vmem:[%s7 + $0x8f0] sm:$0xff]
        %v3469 = vld [vmem:[%s7 + $0x8f8] sm:$0xff]
        %v3470 = vld [vmem:[%s7 + $0x900] sm:$0xff]
        %v3471 = vld [vmem:[%s7 + $0x908] sm:$0xff]
        %v3472 = vld [vmem:[%s7 + $0x910] sm:$0xff]
        %v3473 = vld [vmem:[%s7 + $0x918] sm:$0xff]
        %v3474 = vld [vmem:[%s7 + $0x920] sm:$0xff]
        %v3475 = vld [vmem:[%s7 + $0x928] sm:$0xff]
        %v3476 = vld [vmem:[%s7 + $0x930] sm:$0xff]
        %v3477 = vld [vmem:[%s7 + $0x938] sm:$0xff]
        %v3478 = vld [vmem:[%s7 + $0x940] sm:$0xff]
        %v3479 = vld [vmem:[%s7 + $0x948] sm:$0xff]
        %v3480 = vld [vmem:[%s7 + $0x950] sm:$0xff]
        %v3481 = vld [vmem:[%s7 + $0x958] sm:$0xff]
        %v3482 = vld [vmem:[%s7 + $0x960] sm:$0xff]
        %v3483 = vld [vmem:[%s7 + $0x968] sm:$0xff]
        %v3484 = vld [vmem:[%s7 + $0x970] sm:$0xff]
        %v3485 = vld [vmem:[%s7 + $0x978] sm:$0xff]
        %v3486 = vld [vmem:[%s7 + $0x980] sm:$0xff]
        %v3487 = vld [vmem:[%s7 + $0x988] sm:$0xff]
        %v3488 = vld [vmem:[%s7 + $0x990] sm:$0xff]
        %v3489 = vld [vmem:[%s7 + $0x998] sm:$0xff]
        %v3490 = vld [vmem:[%s7 + $0x9a0] sm:$0xff]
        %v3491 = vld [vmem:[%s7 + $0x9a8] sm:$0xff]
        %v3492 = vld [vmem:[%s7 + $0x9b0] sm:$0xff]
        %v3493 = vld [vmem:[%s7 + $0x9b8] sm:$0xff]
        %v3494 = vld [vmem:[%s7 + $0x9c0] sm:$0xff]
        %v3495 = vld [vmem:[%s7 + $0x9c8] sm:$0xff]
        %v3496 = vld [vmem:[%s7 + $0x9d0] sm:$0xff]
        %v3497 = vld [vmem:[%s7 + $0x9d8] sm:$0xff]
        %v3498 = vld [vmem:[%s7 + $0x9e0] sm:$0xff]
        %v3499 = vld [vmem:[%s7 + $0x9e8] sm:$0xff]
        %v3500 = vld [vmem:[%s7 + $0x9f0] sm:$0xff]
        %v3501 = vld [vmem:[%s7 + $0x9f8] sm:$0xff]
        %v3502 = vld [vmem:[%s7 + $0xa00] sm:$0xff]
        %v3503 = vld [vmem:[%s7 + $0xa08] sm:$0xff]
        %v3504 = vld [vmem:[%s7 + $0xa10] sm:$0xff]
        %v3505 = vld [vmem:[%s7 + $0xa18] sm:$0xff]
        %v3506 = vld [vmem:[%s7 + $0xa20] sm:$0xff]
        %v3507 = vld [vmem:[%s7 + $0xa28] sm:$0xff]
        %v3508 = vld [vmem:[%s7 + $0xa30] sm:$0xff]
        %v3509 = vld [vmem:[%s7 + $0xa38] sm:$0xff]
        %v3510 = vld [vmem:[%s7 + $0xa40] sm:$0xff]
        %v3511 = vld [vmem:[%s7 + $0xa48] sm:$0xff]
        %v3512 = vld [vmem:[%s7 + $0xa50] sm:$0xff]
        %v3513 = vld [vmem:[%s7 + $0xa58] sm:$0xff]
        %v3514 = vld [vmem:[%s7 + $0xa60] sm:$0xff]
        %v3515 = vld [vmem:[%s7 + $0xa68] sm:$0xff]
        %v3516 = vld [vmem:[%s7 + $0xa70] sm:$0xff]
        %v3517 = vld [vmem:[%s7 + $0xa78] sm:$0xff]
        %v3518 = vld [vmem:[%s7 + $0xa80] sm:$0xff]
        %v3519 = vld [vmem:[%s7 + $0xa88] sm:$0xff]
        %v3520 = vld [vmem:[%s7 + $0xa90] sm:$0xff]
        %v3521 = vld [vmem:[%s7 + $0xa98] sm:$0xff]
        %v3522 = vld [vmem:[%s7 + $0xaa0] sm:$0xff]
        %v3523 = vld [vmem:[%s7 + $0xaa8] sm:$0xff]
        %v3524 = vld [vmem:[%s7 + $0xab0] sm:$0xff]
        %v3525 = vld [vmem:[%s7 + $0xab8] sm:$0xff]
        %v3526 = vld [vmem:[%s7 + $0xac0] sm:$0xff]
        %v3527 = vld [vmem:[%s7 + $0xac8] sm:$0xff]
        %v3528 = vld [vmem:[%s7 + $0xad0] sm:$0xff]
        %v3529 = vld [vmem:[%s7 + $0xad8] sm:$0xff]
        %v3530 = vld [vmem:[%s7 + $0xae0] sm:$0xff]
        %v3531 = vld [vmem:[%s7 + $0xae8] sm:$0xff]
        %v3532 = vld [vmem:[%s7 + $0xaf0] sm:$0xff]
        %v3533 = vld [vmem:[%s7 + $0xaf8] sm:$0xff]
        %v3534 = vld [vmem:[%s7 + $0xb00] sm:$0xff]
        %v3535 = vld [vmem:[%s7 + $0xb08] sm:$0xff]
        %v3536 = vld [vmem:[%s7 + $0xb10] sm:$0xff]
        %v3537 = vld [vmem:[%s7 + $0xb18] sm:$0xff]
        %v3538 = vld [vmem:[%s7 + $0xb20] sm:$0xff]
        %v3539 = vld [vmem:[%s7 + $0xb28] sm:$0xff]
        %v3540 = vld [vmem:[%s7 + $0xb30] sm:$0xff]
        %v3541 = vld [vmem:[%s7 + $0xb38] sm:$0xff]
        %v3542 = vld [vmem:[%s7 + $0xb40] sm:$0xff]
        %v3543 = vld [vmem:[%s7 + $0xb48] sm:$0xff]
        %v3544 = vld [vmem:[%s7 + $0xb50] sm:$0xff]
        %v3545 = vld [vmem:[%s7 + $0xb58] sm:$0xff]
        %v3546 = vld [vmem:[%s7 + $0xb60] sm:$0xff]
        %v3547 = vld [vmem:[%s7 + $0xb68] sm:$0xff]
        %v3548 = vld [vmem:[%s7 + $0xb70] sm:$0xff]
        %v3549 = vld [vmem:[%s7 + $0xb78] sm:$0xff]
        %v3550 = vld [vmem:[%s7 + $0xb80] sm:$0xff]
        %v3551 = vld [vmem:[%s7 + $0xb88] sm:$0xff]
        %v3552 = vld [vmem:[%s7 + $0xb90] sm:$0xff]
        %v3553 = vld [vmem:[%s7 + $0xb98] sm:$0xff]
        %v3554 = vld [vmem:[%s7 + $0xba0] sm:$0xff]
        %v3555 = vld [vmem:[%s7 + $0xba8] sm:$0xff]
        %v3556 = vld [vmem:[%s7 + $0xbb0] sm:$0xff]
        %v3557 = vld [vmem:[%s7 + $0xbb8] sm:$0xff]
        %v3558 = vld [vmem:[%s7 + $0xbc0] sm:$0xff]
        %v3559 = vld [vmem:[%s7 + $0xbc8] sm:$0xff]
        %v3560 = vld [vmem:[%s7 + $0xbd0] sm:$0xff]
        %v3561 = vld [vmem:[%s7 + $0xbd8] sm:$0xff]
        %v3562 = vld [vmem:[%s7 + $0xbe0] sm:$0xff]
        %v3563 = vld [vmem:[%s7 + $0xbe8] sm:$0xff]
        %v3564 = vld [vmem:[%s7 + $0xbf0] sm:$0xff]
        %v3565 = vld [vmem:[%s7 + $0xbf8] sm:$0xff]
        %v3566 = vld [vmem:[%s8] sm:$0xff]
        %v3567 = vld [vmem:[%s8 + $0x8] sm:$0xff]
        %v3568 = vld [vmem:[%s8 + $0x10] sm:$0xff]
        %v3569 = vld [vmem:[%s8 + $0x18] sm:$0xff]
        %v3570 = vld [vmem:[%s8 + $0x20] sm:$0xff]
        %v3571 = vld [vmem:[%s8 + $0x28] sm:$0xff]
        %v3572 = vld [vmem:[%s8 + $0x30] sm:$0xff]
        %v3573 = vld [vmem:[%s8 + $0x38] sm:$0xff]
        %v3574 = vld [vmem:[%s8 + $0x40] sm:$0xff]
        %v3575 = vld [vmem:[%s8 + $0x48] sm:$0xff]
        %v3576 = vld [vmem:[%s8 + $0x50] sm:$0xff]
        %v3577 = vld [vmem:[%s8 + $0x58] sm:$0xff]
        %v3578 = vld [vmem:[%s8 + $0x60] sm:$0xff]
        %v3579 = vld [vmem:[%s8 + $0x68] sm:$0xff]
        %v3580 = vld [vmem:[%s8 + $0x70] sm:$0xff]
        %v3581 = vld [vmem:[%s8 + $0x78] sm:$0xff]
        %v3582 = vld [vmem:[%s8 + $0x80] sm:$0xff]
        %v3583 = vld [vmem:[%s8 + $0x88] sm:$0xff]
        %v3584 = vld [vmem:[%s8 + $0x90] sm:$0xff]
        %v3585 = vld [vmem:[%s8 + $0x98] sm:$0xff]
        %v3586 = vld [vmem:[%s8 + $0xa0] sm:$0xff]
        %v3587 = vld [vmem:[%s8 + $0xa8] sm:$0xff]
        %v3588 = vld [vmem:[%s8 + $0xb0] sm:$0xff]
        %v3589 = vld [vmem:[%s8 + $0xb8] sm:$0xff]
        %v3590 = vld [vmem:[%s8 + $0xc0] sm:$0xff]
        %v3591 = vld [vmem:[%s8 + $0xc8] sm:$0xff]
        %v3592 = vld [vmem:[%s8 + $0xd0] sm:$0xff]
        %v3593 = vld [vmem:[%s8 + $0xd8] sm:$0xff]
        %v3594 = vld [vmem:[%s8 + $0xe0] sm:$0xff]
        %v3595 = vld [vmem:[%s8 + $0xe8] sm:$0xff]
        %v3596 = vld [vmem:[%s8 + $0xf0] sm:$0xff]
        %v3597 = vld [vmem:[%s8 + $0xf8] sm:$0xff]
        %v3598 = vld [vmem:[%s8 + $0x100] sm:$0xff]
        %v3599 = vld [vmem:[%s8 + $0x108] sm:$0xff]
        %v3600 = vld [vmem:[%s8 + $0x110] sm:$0xff]
        %v3601 = vld [vmem:[%s8 + $0x118] sm:$0xff]
        %v3602 = vld [vmem:[%s8 + $0x120] sm:$0xff]
        %v3603 = vld [vmem:[%s8 + $0x128] sm:$0xff]
        %v3604 = vld [vmem:[%s8 + $0x130] sm:$0xff]
        %v3605 = vld [vmem:[%s8 + $0x138] sm:$0xff]
        %v3606 = vld [vmem:[%s8 + $0x140] sm:$0xff]
        %v3607 = vld [vmem:[%s8 + $0x148] sm:$0xff]
        %v3608 = vld [vmem:[%s8 + $0x150] sm:$0xff]
        %v3609 = vld [vmem:[%s8 + $0x158] sm:$0xff]
        %v3610 = vld [vmem:[%s8 + $0x160] sm:$0xff]
        %v3611 = vld [vmem:[%s8 + $0x168] sm:$0xff]
        %v3612 = vld [vmem:[%s8 + $0x170] sm:$0xff]
        %v3613 = vld [vmem:[%s8 + $0x178] sm:$0xff]
        %v3614 = vld [vmem:[%s8 + $0x180] sm:$0xff]
        %v3615 = vld [vmem:[%s8 + $0x188] sm:$0xff]
        %v3616 = vld [vmem:[%s8 + $0x190] sm:$0xff]
        %v3617 = vld [vmem:[%s8 + $0x198] sm:$0xff]
        %v3618 = vld [vmem:[%s8 + $0x1a0] sm:$0xff]
        %v3619 = vld [vmem:[%s8 + $0x1a8] sm:$0xff]
        %v3620 = vld [vmem:[%s8 + $0x1b0] sm:$0xff]
        %v3621 = vld [vmem:[%s8 + $0x1b8] sm:$0xff]
        %v3622 = vld [vmem:[%s8 + $0x1c0] sm:$0xff]
        %v3623 = vld [vmem:[%s8 + $0x1c8] sm:$0xff]
        %v3624 = vld [vmem:[%s8 + $0x1d0] sm:$0xff]
        %v3625 = vld [vmem:[%s8 + $0x1d8] sm:$0xff]
        %v3626 = vld [vmem:[%s8 + $0x1e0] sm:$0xff]
        %v3627 = vld [vmem:[%s8 + $0x1e8] sm:$0xff]
        %v3628 = vld [vmem:[%s8 + $0x1f0] sm:$0xff]
        %v3629 = vld [vmem:[%s8 + $0x1f8] sm:$0xff]
        %v3630 = vld [vmem:[%s8 + $0x200] sm:$0xff]
        %v3631 = vld [vmem:[%s8 + $0x208] sm:$0xff]
        %v3632 = vld [vmem:[%s8 + $0x210] sm:$0xff]
        %v3633 = vld [vmem:[%s8 + $0x218] sm:$0xff]
        %v3634 = vld [vmem:[%s8 + $0x220] sm:$0xff]
        %v3635 = vld [vmem:[%s8 + $0x228] sm:$0xff]
        %v3636 = vld [vmem:[%s8 + $0x230] sm:$0xff]
        %v3637 = vld [vmem:[%s8 + $0x238] sm:$0xff]
        %v3638 = vld [vmem:[%s8 + $0x240] sm:$0xff]
        %v3639 = vld [vmem:[%s8 + $0x248] sm:$0xff]
        %v3640 = vld [vmem:[%s8 + $0x250] sm:$0xff]
        %v3641 = vld [vmem:[%s8 + $0x258] sm:$0xff]
        %v3642 = vld [vmem:[%s8 + $0x260] sm:$0xff]
        %v3643 = vld [vmem:[%s8 + $0x268] sm:$0xff]
        %v3644 = vld [vmem:[%s8 + $0x270] sm:$0xff]
        %v3645 = vld [vmem:[%s8 + $0x278] sm:$0xff]
        %v3646 = vld [vmem:[%s8 + $0x280] sm:$0xff]
        %v3647 = vld [vmem:[%s8 + $0x288] sm:$0xff]
        %v3648 = vld [vmem:[%s8 + $0x290] sm:$0xff]
        %v3649 = vld [vmem:[%s8 + $0x298] sm:$0xff]
        %v3650 = vld [vmem:[%s8 + $0x2a0] sm:$0xff]
        %v3651 = vld [vmem:[%s8 + $0x2a8] sm:$0xff]
        %v3652 = vld [vmem:[%s8 + $0x2b0] sm:$0xff]
        %v3653 = vld [vmem:[%s8 + $0x2b8] sm:$0xff]
        %v3654 = vld [vmem:[%s8 + $0x2c0] sm:$0xff]
        %v3655 = vld [vmem:[%s8 + $0x2c8] sm:$0xff]
        %v3656 = vld [vmem:[%s8 + $0x2d0] sm:$0xff]
        %v3657 = vld [vmem:[%s8 + $0x2d8] sm:$0xff]
        %v3658 = vld [vmem:[%s8 + $0x2e0] sm:$0xff]
        %v3659 = vld [vmem:[%s8 + $0x2e8] sm:$0xff]
        %v3660 = vld [vmem:[%s8 + $0x2f0] sm:$0xff]
        %v3661 = vld [vmem:[%s8 + $0x2f8] sm:$0xff]
        %v3662 = vld [vmem:[%s8 + $0x300] sm:$0xff]
        %v3663 = vld [vmem:[%s8 + $0x308] sm:$0xff]
        %v3664 = vld [vmem:[%s8 + $0x310] sm:$0xff]
        %v3665 = vld [vmem:[%s8 + $0x318] sm:$0xff]
        %v3666 = vld [vmem:[%s8 + $0x320] sm:$0xff]
        %v3667 = vld [vmem:[%s8 + $0x328] sm:$0xff]
        %v3668 = vld [vmem:[%s8 + $0x330] sm:$0xff]
        %v3669 = vld [vmem:[%s8 + $0x338] sm:$0xff]
        %v3670 = vld [vmem:[%s8 + $0x340] sm:$0xff]
        %v3671 = vld [vmem:[%s8 + $0x348] sm:$0xff]
        %v3672 = vld [vmem:[%s8 + $0x350] sm:$0xff]
        %v3673 = vld [vmem:[%s8 + $0x358] sm:$0xff]
        %v3674 = vld [vmem:[%s8 + $0x360] sm:$0xff]
        %v3675 = vld [vmem:[%s8 + $0x368] sm:$0xff]
        %v3676 = vld [vmem:[%s8 + $0x370] sm:$0xff]
        %v3677 = vld [vmem:[%s8 + $0x378] sm:$0xff]
        %v3678 = vld [vmem:[%s8 + $0x380] sm:$0xff]
        %v3679 = vld [vmem:[%s8 + $0x388] sm:$0xff]
        %v3680 = vld [vmem:[%s8 + $0x390] sm:$0xff]
        %v3681 = vld [vmem:[%s8 + $0x398] sm:$0xff]
        %v3682 = vld [vmem:[%s8 + $0x3a0] sm:$0xff]
        %v3683 = vld [vmem:[%s8 + $0x3a8] sm:$0xff]
        %v3684 = vld [vmem:[%s8 + $0x3b0] sm:$0xff]
        %v3685 = vld [vmem:[%s8 + $0x3b8] sm:$0xff]
        %v3686 = vld [vmem:[%s8 + $0x3c0] sm:$0xff]
        %v3687 = vld [vmem:[%s8 + $0x3c8] sm:$0xff]
        %v3688 = vld [vmem:[%s8 + $0x3d0] sm:$0xff]
        %v3689 = vld [vmem:[%s8 + $0x3d8] sm:$0xff]
        %v3690 = vld [vmem:[%s8 + $0x3e0] sm:$0xff]
        %v3691 = vld [vmem:[%s8 + $0x3e8] sm:$0xff]
        %v3692 = vld [vmem:[%s8 + $0x3f0] sm:$0xff]
        %v3693 = vld [vmem:[%s8 + $0x3f8] sm:$0xff]
        %v3694 = vld [vmem:[%s8 + $0x400] sm:$0xff]
        %v3695 = vld [vmem:[%s8 + $0x408] sm:$0xff]
        %v3696 = vld [vmem:[%s8 + $0x410] sm:$0xff]
        %v3697 = vld [vmem:[%s8 + $0x418] sm:$0xff]
        %v3698 = vld [vmem:[%s8 + $0x420] sm:$0xff]
        %v3699 = vld [vmem:[%s8 + $0x428] sm:$0xff]
        %v3700 = vld [vmem:[%s8 + $0x430] sm:$0xff]
        %v3701 = vld [vmem:[%s8 + $0x438] sm:$0xff]
        %v3702 = vld [vmem:[%s8 + $0x440] sm:$0xff]
        %v3703 = vld [vmem:[%s8 + $0x448] sm:$0xff]
        %v3704 = vld [vmem:[%s8 + $0x450] sm:$0xff]
        %v3705 = vld [vmem:[%s8 + $0x458] sm:$0xff]
        %v3706 = vld [vmem:[%s8 + $0x460] sm:$0xff]
        %v3707 = vld [vmem:[%s8 + $0x468] sm:$0xff]
        %v3708 = vld [vmem:[%s8 + $0x470] sm:$0xff]
        %v3709 = vld [vmem:[%s8 + $0x478] sm:$0xff]
        %v3710 = vld [vmem:[%s8 + $0x480] sm:$0xff]
        %v3711 = vld [vmem:[%s8 + $0x488] sm:$0xff]
        %v3712 = vld [vmem:[%s8 + $0x490] sm:$0xff]
        %v3713 = vld [vmem:[%s8 + $0x498] sm:$0xff]
        %v3714 = vld [vmem:[%s8 + $0x4a0] sm:$0xff]
        %v3715 = vld [vmem:[%s8 + $0x4a8] sm:$0xff]
        %v3716 = vld [vmem:[%s8 + $0x4b0] sm:$0xff]
        %v3717 = vld [vmem:[%s8 + $0x4b8] sm:$0xff]
        %v3718 = vld [vmem:[%s8 + $0x4c0] sm:$0xff]
        %v3719 = vld [vmem:[%s8 + $0x4c8] sm:$0xff]
        %v3720 = vld [vmem:[%s8 + $0x4d0] sm:$0xff]
        %v3721 = vld [vmem:[%s8 + $0x4d8] sm:$0xff]
        %v3722 = vld [vmem:[%s8 + $0x4e0] sm:$0xff]
        %v3723 = vld [vmem:[%s8 + $0x4e8] sm:$0xff]
        %v3724 = vld [vmem:[%s8 + $0x4f0] sm:$0xff]
        %v3725 = vld [vmem:[%s8 + $0x4f8] sm:$0xff]
        %v3726 = vld [vmem:[%s8 + $0x500] sm:$0xff]
        %v3727 = vld [vmem:[%s8 + $0x508] sm:$0xff]
        %v3728 = vld [vmem:[%s8 + $0x510] sm:$0xff]
        %v3729 = vld [vmem:[%s8 + $0x518] sm:$0xff]
        %v3730 = vld [vmem:[%s8 + $0x520] sm:$0xff]
        %v3731 = vld [vmem:[%s8 + $0x528] sm:$0xff]
        %v3732 = vld [vmem:[%s8 + $0x530] sm:$0xff]
        %v3733 = vld [vmem:[%s8 + $0x538] sm:$0xff]
        %v3734 = vld [vmem:[%s8 + $0x540] sm:$0xff]
        %v3735 = vld [vmem:[%s8 + $0x548] sm:$0xff]
        %v3736 = vld [vmem:[%s8 + $0x550] sm:$0xff]
        %v3737 = vld [vmem:[%s8 + $0x558] sm:$0xff]
        %v3738 = vld [vmem:[%s8 + $0x560] sm:$0xff]
        %v3739 = vld [vmem:[%s8 + $0x568] sm:$0xff]
        %v3740 = vld [vmem:[%s8 + $0x570] sm:$0xff]
        %v3741 = vld [vmem:[%s8 + $0x578] sm:$0xff]
        %v3742 = vld [vmem:[%s8 + $0x580] sm:$0xff]
        %v3743 = vld [vmem:[%s8 + $0x588] sm:$0xff]
        %v3744 = vld [vmem:[%s8 + $0x590] sm:$0xff]
        %v3745 = vld [vmem:[%s8 + $0x598] sm:$0xff]
        %v3746 = vld [vmem:[%s8 + $0x5a0] sm:$0xff]
        %v3747 = vld [vmem:[%s8 + $0x5a8] sm:$0xff]
        %v3748 = vld [vmem:[%s8 + $0x5b0] sm:$0xff]
        %v3749 = vld [vmem:[%s8 + $0x5b8] sm:$0xff]
        %v3750 = vld [vmem:[%s8 + $0x5c0] sm:$0xff]
        %v3751 = vld [vmem:[%s8 + $0x5c8] sm:$0xff]
        %v3752 = vld [vmem:[%s8 + $0x5d0] sm:$0xff]
        %v3753 = vld [vmem:[%s8 + $0x5d8] sm:$0xff]
        %v3754 = vld [vmem:[%s8 + $0x5e0] sm:$0xff]
        %v3755 = vld [vmem:[%s8 + $0x5e8] sm:$0xff]
        %v3756 = vld [vmem:[%s8 + $0x5f0] sm:$0xff]
        %v3757 = vld [vmem:[%s8 + $0x5f8] sm:$0xff]
        %3758 = vmatprep.subr.mxu0 %v3567
        %3759 = vmatpush1.msra.mxu0 %v3566
        %3760 = vmatprep.subr.mxu0 %v3573
        %3761 = vmatpush1.msra.mxu0 %v3572
        %3762 = vmatprep.subr.mxu0 %v3579
        %3763 = vmatpush1.msra.mxu0 %v3578
        %3764 = vmatprep.subr.mxu0 %v3585
        %3765 = vmatpush1.msra.mxu0 %v3584
        %3766 = vmatprep.subr.mxu0 %v3591
        %3767 = vmatpush1.msra.mxu0 %v3590
        %3768 = vmatprep.subr.mxu0 %v3597
        %3769 = vmatpush1.msra.mxu0 %v3596
        %3770 = vmatprep.subr.mxu0 %v3603
        %3771 = vmatpush1.msra.mxu0 %v3602
        %3772 = vmatprep.subr.mxu0 %v3609
        %3773 = vmatpush1.msra.mxu0 %v3608
        %3774 = vmatprep.subr.mxu0 %v3615
        %3775 = vmatpush1.msra.mxu0 %v3614
        %3776 = vmatprep.subr.mxu0 %v3621
        %3777 = vmatpush1.msra.mxu0 %v3620
        %3778 = vmatprep.subr.mxu0 %v3627
        %3779 = vmatpush1.msra.mxu0 %v3626
        %3780 = vmatprep.subr.mxu0 %v3633
        %3781 = vmatpush1.msra.mxu0 %v3632
        %3782 = vmatprep.subr.mxu0 %v3639
        %3783 = vmatpush1.msra.mxu0 %v3638
        %3784 = vmatprep.subr.mxu0 %v3645
        %3785 = vmatpush1.msra.mxu0 %v3644
        %3786 = vmatprep.subr.mxu0 %v3651
        %3787 = vmatpush1.msra.mxu0 %v3650
        %3788 = vmatprep.subr.mxu0 %v3657
        %3789 = vmatpush1.msra.mxu0 %v3656
        %3790 = vmatprep.subr.mxu0 %v3663
        %3791 = vmatpush1.msra.mxu0 %v3662
        %3792 = vmatprep.subr.mxu0 %v3669
        %3793 = vmatpush1.msra.mxu0 %v3668
        %3794 = vmatprep.subr.mxu0 %v3675
        %3795 = vmatpush1.msra.mxu0 %v3674
        %3796 = vmatprep.subr.mxu0 %v3681
        %3797 = vmatpush1.msra.mxu0 %v3680
        %3798 = vmatprep.subr.mxu0 %v3687
        %3799 = vmatpush1.msra.mxu0 %v3686
        %3800 = vmatprep.subr.mxu0 %v3693
        %3801 = vmatpush1.msra.mxu0 %v3692
        %3802 = vmatprep.subr.mxu0 %v3699
        %3803 = vmatpush1.msra.mxu0 %v3698
        %3804 = vmatprep.subr.mxu0 %v3705
        %3805 = vmatpush1.msra.mxu0 %v3704
        %3806 = vmatprep.subr.mxu0 %v3711
        %3807 = vmatpush1.msra.mxu0 %v3710
        %3808 = vmatprep.subr.mxu0 %v3717
        %3809 = vmatpush1.msra.mxu0 %v3716
        %3810 = vmatprep.subr.mxu0 %v3723
        %3811 = vmatpush1.msra.mxu0 %v3722
        %3812 = vmatprep.subr.mxu0 %v3729
        %3813 = vmatpush1.msra.mxu0 %v3728
        %3814 = vmatprep.subr.mxu0 %v3735
        %3815 = vmatpush1.msra.mxu0 %v3734
        %3816 = vmatprep.subr.mxu0 %v3741
        %3817 = vmatpush1.msra.mxu0 %v3740
        %3818 = vmatprep.subr.mxu0 %v3747
        %3819 = vmatpush1.msra.mxu0 %v3746
        %3820 = vmatprep.subr.mxu0 %v3753
        %3821 = vmatpush1.msra.mxu0 %v3752
        %3822 = vmatprep.mubr.f32.mxu0 %v3181
        %3823 = vmatmul.mubr.f32.gmra.mrb[0].mxu0 %v3180
        %v3824 = vpop.f32.mrb[0].mxu0
        %v3825 = vadd.f32 0.0, %v3824
        %v3826 = vpop.f32.mrb[0].mxu0
        %v3827 = vadd.f32 0.0, %v3826
        %3828 = vdwg.mxu0
        %3829 = vmatprep.subr.mxu0 %v3569
        %3830 = vmatpush1.msra.mxu0 %v3568
        %3831 = vmatprep.subr.mxu0 %v3575
        %3832 = vmatpush1.msra.mxu0 %v3574
        %3833 = vmatprep.subr.mxu0 %v3581
        %3834 = vmatpush1.msra.mxu0 %v3580
        %3835 = vmatprep.subr.mxu0 %v3587
        %3836 = vmatpush1.msra.mxu0 %v3586
        %3837 = vmatprep.subr.mxu0 %v3593
        %3838 = vmatpush1.msra.mxu0 %v3592
        %3839 = vmatprep.subr.mxu0 %v3599
        %3840 = vmatpush1.msra.mxu0 %v3598
        %3841 = vmatprep.subr.mxu0 %v3605
        %3842 = vmatpush1.msra.mxu0 %v3604
        %3843 = vmatprep.subr.mxu0 %v3611
        %3844 = vmatpush1.msra.mxu0 %v3610
        %3845 = vmatprep.subr.mxu0 %v3617
        %3846 = vmatpush1.msra.mxu0 %v3616
        %3847 = vmatprep.subr.mxu0 %v3623
        %3848 = vmatpush1.msra.mxu0 %v3622
        %3849 = vmatprep.subr.mxu0 %v3629
        %3850 = vmatpush1.msra.mxu0 %v3628
        %3851 = vmatprep.subr.mxu0 %v3635
        %3852 = vmatpush1.msra.mxu0 %v3634
        %3853 = vmatprep.subr.mxu0 %v3641
        %3854 = vmatpush1.msra.mxu0 %v3640
        %3855 = vmatprep.subr.mxu0 %v3647
        %3856 = vmatpush1.msra.mxu0 %v3646
        %3857 = vmatprep.subr.mxu0 %v3653
        %3858 = vmatpush1.msra.mxu0 %v3652
        %3859 = vmatprep.subr.mxu0 %v3659
        %3860 = vmatpush1.msra.mxu0 %v3658
        %3861 = vmatprep.subr.mxu0 %v3665
        %3862 = vmatpush1.msra.mxu0 %v3664
        %3863 = vmatprep.subr.mxu0 %v3671
        %3864 = vmatpush1.msra.mxu0 %v3670
        %3865 = vmatprep.subr.mxu0 %v3677
        %3866 = vmatpush1.msra.mxu0 %v3676
        %3867 = vmatprep.subr.mxu0 %v3683
        %3868 = vmatpush1.msra.mxu0 %v3682
        %3869 = vmatprep.subr.mxu0 %v3689
        %3870 = vmatpush1.msra.mxu0 %v3688
        %3871 = vmatprep.subr.mxu0 %v3695
        %3872 = vmatpush1.msra.mxu0 %v3694
        %3873 = vmatprep.subr.mxu0 %v3701
        %3874 = vmatpush1.msra.mxu0 %v3700
        %3875 = vmatprep.subr.mxu0 %v3707
        %3876 = vmatpush1.msra.mxu0 %v3706
        %3877 = vmatprep.subr.mxu0 %v3713
        %3878 = vmatpush1.msra.mxu0 %v3712
        %3879 = vmatprep.subr.mxu0 %v3719
        %3880 = vmatpush1.msra.mxu0 %v3718
        %3881 = vmatprep.subr.mxu0 %v3725
        %3882 = vmatpush1.msra.mxu0 %v3724
        %3883 = vmatprep.subr.mxu0 %v3731
        %3884 = vmatpush1.msra.mxu0 %v3730
        %3885 = vmatprep.subr.mxu0 %v3737
        %3886 = vmatpush1.msra.mxu0 %v3736
        %3887 = vmatprep.subr.mxu0 %v3743
        %3888 = vmatpush1.msra.mxu0 %v3742
        %3889 = vmatprep.subr.mxu0 %v3749
        %3890 = vmatpush1.msra.mxu0 %v3748
        %3891 = vmatprep.subr.mxu0 %v3755
        %3892 = vmatpush1.msra.mxu0 %v3754
        %3893 = vmatprep.mubr.f32.mxu0 %v3181
        %3894 = vmatmul.mubr.f32.gmra.mrb[0].mxu0 %v3180
        %v3895 = vpop.f32.mrb[0].mxu0
        %v3896 = vadd.f32 0.0, %v3895
        %v3897 = vpop.f32.mrb[0].mxu0
        %v3898 = vadd.f32 0.0, %v3897
        %3899 = vdwg.mxu0
        %3900 = vmatprep.subr.mxu0 %v3571
        %3901 = vmatpush1.msra.mxu0 %v3570
        %3902 = vmatprep.subr.mxu0 %v3577
        %3903 = vmatpush1.msra.mxu0 %v3576
        %3904 = vmatprep.subr.mxu0 %v3583
        %3905 = vmatpush1.msra.mxu0 %v3582
        %3906 = vmatprep.subr.mxu0 %v3589
        %3907 = vmatpush1.msra.mxu0 %v3588
        %3908 = vmatprep.subr.mxu0 %v3595
        %3909 = vmatpush1.msra.mxu0 %v3594
        %3910 = vmatprep.subr.mxu0 %v3601
        %3911 = vmatpush1.msra.mxu0 %v3600
        %3912 = vmatprep.subr.mxu0 %v3607
        %3913 = vmatpush1.msra.mxu0 %v3606
        %3914 = vmatprep.subr.mxu0 %v3613
        %3915 = vmatpush1.msra.mxu0 %v3612
        %3916 = vmatprep.subr.mxu0 %v3619
        %3917 = vmatpush1.msra.mxu0 %v3618
        %3918 = vmatprep.subr.mxu0 %v3625
        %3919 = vmatpush1.msra.mxu0 %v3624
        %3920 = vmatprep.subr.mxu0 %v3631
        %3921 = vmatpush1.msra.mxu0 %v3630
        %3922 = vmatprep.subr.mxu0 %v3637
        %3923 = vmatpush1.msra.mxu0 %v3636
        %3924 = vmatprep.subr.mxu0 %v3643
        %3925 = vmatpush1.msra.mxu0 %v3642
        %3926 = vmatprep.subr.mxu0 %v3649
        %3927 = vmatpush1.msra.mxu0 %v3648
        %3928 = vmatprep.subr.mxu0 %v3655
        %3929 = vmatpush1.msra.mxu0 %v3654
        %3930 = vmatprep.subr.mxu0 %v3661
        %3931 = vmatpush1.msra.mxu0 %v3660
        %3932 = vmatprep.subr.mxu0 %v3667
        %3933 = vmatpush1.msra.mxu0 %v3666
        %3934 = vmatprep.subr.mxu0 %v3673
        %3935 = vmatpush1.msra.mxu0 %v3672
        %3936 = vmatprep.subr.mxu0 %v3679
        %3937 = vmatpush1.msra.mxu0 %v3678
        %3938 = vmatprep.subr.mxu0 %v3685
        %3939 = vmatpush1.msra.mxu0 %v3684
        %3940 = vmatprep.subr.mxu0 %v3691
        %3941 = vmatpush1.msra.mxu0 %v3690
        %3942 = vmatprep.subr.mxu0 %v3697
        %3943 = vmatpush1.msra.mxu0 %v3696
        %3944 = vmatprep.subr.mxu0 %v3703
        %3945 = vmatpush1.msra.mxu0 %v3702
        %3946 = vmatprep.subr.mxu0 %v3709
        %3947 = vmatpush1.msra.mxu0 %v3708
        %3948 = vmatprep.subr.mxu0 %v3715
        %3949 = vmatpush1.msra.mxu0 %v3714
        %3950 = vmatprep.subr.mxu0 %v3721
        %3951 = vmatpush1.msra.mxu0 %v3720
        %3952 = vmatprep.subr.mxu0 %v3727
        %3953 = vmatpush1.msra.mxu0 %v3726
        %3954 = vmatprep.subr.mxu0 %v3733
        %3955 = vmatpush1.msra.mxu0 %v3732
        %3956 = vmatprep.subr.mxu0 %v3739
        %3957 = vmatpush1.msra.mxu0 %v3738
        %3958 = vmatprep.subr.mxu0 %v3745
        %3959 = vmatpush1.msra.mxu0 %v3744
        %3960 = vmatprep.subr.mxu0 %v3751
        %3961 = vmatpush1.msra.mxu0 %v3750
        %3962 = vmatprep.subr.mxu0 %v3757
        %3963 = vmatpush1.msra.mxu0 %v3756
        %3964 = vmatprep.mubr.f32.mxu0 %v3181
        %3965 = vmatmul.mubr.f32.gmra.mrb[0].mxu0 %v3180
        %v3966 = vpop.f32.mrb[0].mxu0
        %v3967 = vadd.f32 0.0, %v3966
        %v3968 = vpop.f32.mrb[0].mxu0
        %v3969 = vadd.f32 0.0, %v3968
        %3970 = vdwg.mxu0
        %3971 = vmatprep.subr.mxu0 %v3183
        %3972 = vmatpush1.msra.mxu0 %v3182
        %3973 = vmatprep.subr.mxu0 %v3189
        %3974 = vmatpush1.msra.mxu0 %v3188
        %3975 = vmatprep.subr.mxu0 %v3195
        %3976 = vmatpush1.msra.mxu0 %v3194
        %3977 = vmatprep.subr.mxu0 %v3201
        %3978 = vmatpush1.msra.mxu0 %v3200
        %3979 = vmatprep.subr.mxu0 %v3207
        %3980 = vmatpush1.msra.mxu0 %v3206
        %3981 = vmatprep.subr.mxu0 %v3213
        %3982 = vmatpush1.msra.mxu0 %v3212
        %3983 = vmatprep.subr.mxu0 %v3219
        %3984 = vmatpush1.msra.mxu0 %v3218
        %3985 = vmatprep.subr.mxu0 %v3225
        %3986 = vmatpush1.msra.mxu0 %v3224
        %3987 = vmatprep.subr.mxu0 %v3231
        %3988 = vmatpush1.msra.mxu0 %v3230
        %3989 = vmatprep.subr.mxu0 %v3237
        %3990 = vmatpush1.msra.mxu0 %v3236
        %3991 = vmatprep.subr.mxu0 %v3243
        %3992 = vmatpush1.msra.mxu0 %v3242
        %3993 = vmatprep.subr.mxu0 %v3249
        %3994 = vmatpush1.msra.mxu0 %v3248
        %3995 = vmatprep.subr.mxu0 %v3255
        %3996 = vmatpush1.msra.mxu0 %v3254
        %3997 = vmatprep.subr.mxu0 %v3261
        %3998 = vmatpush1.msra.mxu0 %v3260
        %3999 = vmatprep.subr.mxu0 %v3267
        %4000 = vmatpush1.msra.mxu0 %v3266
        %4001 = vmatprep.subr.mxu0 %v3273
        %4002 = vmatpush1.msra.mxu0 %v3272
        %4003 = vmatprep.subr.mxu0 %v3279
        %4004 = vmatpush1.msra.mxu0 %v3278
        %4005 = vmatprep.subr.mxu0 %v3285
        %4006 = vmatpush1.msra.mxu0 %v3284
        %4007 = vmatprep.subr.mxu0 %v3291
        %4008 = vmatpush1.msra.mxu0 %v3290
        %4009 = vmatprep.subr.mxu0 %v3297
        %4010 = vmatpush1.msra.mxu0 %v3296
        %4011 = vmatprep.subr.mxu0 %v3303
        %4012 = vmatpush1.msra.mxu0 %v3302
        %4013 = vmatprep.subr.mxu0 %v3309
        %4014 = vmatpush1.msra.mxu0 %v3308
        %4015 = vmatprep.subr.mxu0 %v3315
        %4016 = vmatpush1.msra.mxu0 %v3314
        %4017 = vmatprep.subr.mxu0 %v3321
        %4018 = vmatpush1.msra.mxu0 %v3320
        %4019 = vmatprep.subr.mxu0 %v3327
        %4020 = vmatpush1.msra.mxu0 %v3326
        %4021 = vmatprep.subr.mxu0 %v3333
        %4022 = vmatpush1.msra.mxu0 %v3332
        %4023 = vmatprep.subr.mxu0 %v3339
        %4024 = vmatpush1.msra.mxu0 %v3338
        %4025 = vmatprep.subr.mxu0 %v3345
        %4026 = vmatpush1.msra.mxu0 %v3344
        %4027 = vmatprep.subr.mxu0 %v3351
        %4028 = vmatpush1.msra.mxu0 %v3350
        %4029 = vmatprep.subr.mxu0 %v3357
        %4030 = vmatpush1.msra.mxu0 %v3356
        %4031 = vmatprep.subr.mxu0 %v3363
        %4032 = vmatpush1.msra.mxu0 %v3362
        %4033 = vmatprep.subr.mxu0 %v3369
        %4034 = vmatpush1.msra.mxu0 %v3368
        %4035 = vmatprep.mubr.f32.mxu0 %v2911
        %4036 = vmatmul.mubr.f32.gmra.mrb[0].mxu0 %v2910
        %v4037 = vpop.f32.mrb[0].mxu0
        %v4038 = vadd.f32 %v3825, %v4037
        %v4039 = vpop.f32.mrb[0].mxu0
        %v4040 = vadd.f32 %v3827, %v4039
        %4041 = vdwg.mxu0
        %4042 = vmatprep.subr.mxu0 %v3375
        %4043 = vmatpush1.msra.mxu0 %v3374
        %4044 = vmatprep.subr.mxu0 %v3381
        %4045 = vmatpush1.msra.mxu0 %v3380
        %4046 = vmatprep.subr.mxu0 %v3387
        %4047 = vmatpush1.msra.mxu0 %v3386
        %4048 = vmatprep.subr.mxu0 %v3393
        %4049 = vmatpush1.msra.mxu0 %v3392
        %4050 = vmatprep.subr.mxu0 %v3399
        %4051 = vmatpush1.msra.mxu0 %v3398
        %4052 = vmatprep.subr.mxu0 %v3405
        %4053 = vmatpush1.msra.mxu0 %v3404
        %4054 = vmatprep.subr.mxu0 %v3411
        %4055 = vmatpush1.msra.mxu0 %v3410
        %4056 = vmatprep.subr.mxu0 %v3417
        %4057 = vmatpush1.msra.mxu0 %v3416
        %4058 = vmatprep.subr.mxu0 %v3423
        %4059 = vmatpush1.msra.mxu0 %v3422
        %4060 = vmatprep.subr.mxu0 %v3429
        %4061 = vmatpush1.msra.mxu0 %v3428
        %4062 = vmatprep.subr.mxu0 %v3435
        %4063 = vmatpush1.msra.mxu0 %v3434
        %4064 = vmatprep.subr.mxu0 %v3441
        %4065 = vmatpush1.msra.mxu0 %v3440
        %4066 = vmatprep.subr.mxu0 %v3447
        %4067 = vmatpush1.msra.mxu0 %v3446
        %4068 = vmatprep.subr.mxu0 %v3453
        %4069 = vmatpush1.msra.mxu0 %v3452
        %4070 = vmatprep.subr.mxu0 %v3459
        %4071 = vmatpush1.msra.mxu0 %v3458
        %4072 = vmatprep.subr.mxu0 %v3465
        %4073 = vmatpush1.msra.mxu0 %v3464
        %4074 = vmatprep.subr.mxu0 %v3471
        %4075 = vmatpush1.msra.mxu0 %v3470
        %4076 = vmatprep.subr.mxu0 %v3477
        %4077 = vmatpush1.msra.mxu0 %v3476
        %4078 = vmatprep.subr.mxu0 %v3483
        %4079 = vmatpush1.msra.mxu0 %v3482
        %4080 = vmatprep.subr.mxu0 %v3489
        %4081 = vmatpush1.msra.mxu0 %v3488
        %4082 = vmatprep.subr.mxu0 %v3495
        %4083 = vmatpush1.msra.mxu0 %v3494
        %4084 = vmatprep.subr.mxu0 %v3501
        %4085 = vmatpush1.msra.mxu0 %v3500
        %4086 = vmatprep.subr.mxu0 %v3507
        %4087 = vmatpush1.msra.mxu0 %v3506
        %4088 = vmatprep.subr.mxu0 %v3513
        %4089 = vmatpush1.msra.mxu0 %v3512
        %4090 = vmatprep.subr.mxu0 %v3519
        %4091 = vmatpush1.msra.mxu0 %v3518
        %4092 = vmatprep.subr.mxu0 %v3525
        %4093 = vmatpush1.msra.mxu0 %v3524
        %4094 = vmatprep.subr.mxu0 %v3531
        %4095 = vmatpush1.msra.mxu0 %v3530
        %4096 = vmatprep.subr.mxu0 %v3537
        %4097 = vmatpush1.msra.mxu0 %v3536
        %4098 = vmatprep.subr.mxu0 %v3543
        %4099 = vmatpush1.msra.mxu0 %v3542
        %4100 = vmatprep.subr.mxu0 %v3549
        %4101 = vmatpush1.msra.mxu0 %v3548
        %4102 = vmatprep.subr.mxu0 %v3555
        %4103 = vmatpush1.msra.mxu0 %v3554
        %4104 = vmatprep.subr.mxu0 %v3561
        %4105 = vmatpush1.msra.mxu0 %v3560
        %4106 = vmatprep.mubr.f32.mxu0 %v2913
        %4107 = vmatmul.mubr.f32.gmra.mrb[0].mxu0 %v2912
        %v4108 = vpop.f32.mrb[0].mxu0
        %v4109 = vadd.f32 %v4038, %v4108
        %v4110 = vpop.f32.mrb[0].mxu0
        %v4111 = vadd.f32 %v4040, %v4110
        %4112 = vdwg.mxu0
        %4113 = vmatprep.subr.mxu0 %v3185
        %4114 = vmatpush1.msra.mxu0 %v3184
        %4115 = vmatprep.subr.mxu0 %v3191
        %4116 = vmatpush1.msra.mxu0 %v3190
        %4117 = vmatprep.subr.mxu0 %v3197
        %4118 = vmatpush1.msra.mxu0 %v3196
        %4119 = vmatprep.subr.mxu0 %v3203
        %4120 = vmatpush1.msra.mxu0 %v3202
        %4121 = vmatprep.subr.mxu0 %v3209
        %4122 = vmatpush1.msra.mxu0 %v3208
        %4123 = vmatprep.subr.mxu0 %v3215
        %4124 = vmatpush1.msra.mxu0 %v3214
        %4125 = vmatprep.subr.mxu0 %v3221
        %4126 = vmatpush1.msra.mxu0 %v3220
        %4127 = vmatprep.subr.mxu0 %v3227
        %4128 = vmatpush1.msra.mxu0 %v3226
        %4129 = vmatprep.subr.mxu0 %v3233
        %4130 = vmatpush1.msra.mxu0 %v3232
        %4131 = vmatprep.subr.mxu0 %v3239
        %4132 = vmatpush1.msra.mxu0 %v3238
        %4133 = vmatprep.subr.mxu0 %v3245
        %4134 = vmatpush1.msra.mxu0 %v3244
        %4135 = vmatprep.subr.mxu0 %v3251
        %4136 = vmatpush1.msra.mxu0 %v3250
        %4137 = vmatprep.subr.mxu0 %v3257
        %4138 = vmatpush1.msra.mxu0 %v3256
        %4139 = vmatprep.subr.mxu0 %v3263
        %4140 = vmatpush1.msra.mxu0 %v3262
        %4141 = vmatprep.subr.mxu0 %v3269
        %4142 = vmatpush1.msra.mxu0 %v3268
        %4143 = vmatprep.subr.mxu0 %v3275
        %4144 = vmatpush1.msra.mxu0 %v3274
        %4145 = vmatprep.subr.mxu0 %v3281
        %4146 = vmatpush1.msra.mxu0 %v3280
        %4147 = vmatprep.subr.mxu0 %v3287
        %4148 = vmatpush1.msra.mxu0 %v3286
        %4149 = vmatprep.subr.mxu0 %v3293
        %4150 = vmatpush1.msra.mxu0 %v3292
        %4151 = vmatprep.subr.mxu0 %v3299
        %4152 = vmatpush1.msra.mxu0 %v3298
        %4153 = vmatprep.subr.mxu0 %v3305
        %4154 = vmatpush1.msra.mxu0 %v3304
        %4155 = vmatprep.subr.mxu0 %v3311
        %4156 = vmatpush1.msra.mxu0 %v3310
        %4157 = vmatprep.subr.mxu0 %v3317
        %4158 = vmatpush1.msra.mxu0 %v3316
        %4159 = vmatprep.subr.mxu0 %v3323
        %4160 = vmatpush1.msra.mxu0 %v3322
        %4161 = vmatprep.subr.mxu0 %v3329
        %4162 = vmatpush1.msra.mxu0 %v3328
        %4163 = vmatprep.subr.mxu0 %v3335
        %4164 = vmatpush1.msra.mxu0 %v3334
        %4165 = vmatprep.subr.mxu0 %v3341
        %4166 = vmatpush1.msra.mxu0 %v3340
        %4167 = vmatprep.subr.mxu0 %v3347
        %4168 = vmatpush1.msra.mxu0 %v3346
        %4169 = vmatprep.subr.mxu0 %v3353
        %4170 = vmatpush1.msra.mxu0 %v3352
        %4171 = vmatprep.subr.mxu0 %v3359
        %4172 = vmatpush1.msra.mxu0 %v3358
        %4173 = vmatprep.subr.mxu0 %v3365
        %4174 = vmatpush1.msra.mxu0 %v3364
        %4175 = vmatprep.subr.mxu0 %v3371
        %4176 = vmatpush1.msra.mxu0 %v3370
        %4177 = vmatprep.mubr.f32.mxu0 %v2911
        %4178 = vmatmul.mubr.f32.gmra.mrb[0].mxu0 %v2910
        %v4179 = vpop.f32.mrb[0].mxu0
        %v4180 = vadd.f32 %v3896, %v4179
        %v4181 = vpop.f32.mrb[0].mxu0
        %v4182 = vadd.f32 %v3898, %v4181
        %4183 = vdwg.mxu0
        %4184 = vmatprep.subr.mxu0 %v3377
        %4185 = vmatpush1.msra.mxu0 %v3376
        %4186 = vmatprep.subr.mxu0 %v3383
        %4187 = vmatpush1.msra.mxu0 %v3382
        %4188 = vmatprep.subr.mxu0 %v3389
        %4189 = vmatpush1.msra.mxu0 %v3388
        %4190 = vmatprep.subr.mxu0 %v3395
        %4191 = vmatpush1.msra.mxu0 %v3394
        %4192 = vmatprep.subr.mxu0 %v3401
        %4193 = vmatpush1.msra.mxu0 %v3400
        %4194 = vmatprep.subr.mxu0 %v3407
        %4195 = vmatpush1.msra.mxu0 %v3406
        %4196 = vmatprep.subr.mxu0 %v3413
        %4197 = vmatpush1.msra.mxu0 %v3412
        %4198 = vmatprep.subr.mxu0 %v3419
        %4199 = vmatpush1.msra.mxu0 %v3418
        %4200 = vmatprep.subr.mxu0 %v3425
        %4201 = vmatpush1.msra.mxu0 %v3424
        %4202 = vmatprep.subr.mxu0 %v3431
        %4203 = vmatpush1.msra.mxu0 %v3430
        %4204 = vmatprep.subr.mxu0 %v3437
        %4205 = vmatpush1.msra.mxu0 %v3436
        %4206 = vmatprep.subr.mxu0 %v3443
        %4207 = vmatpush1.msra.mxu0 %v3442
        %4208 = vmatprep.subr.mxu0 %v3449
        %4209 = vmatpush1.msra.mxu0 %v3448
        %4210 = vmatprep.subr.mxu0 %v3455
        %4211 = vmatpush1.msra.mxu0 %v3454
        %4212 = vmatprep.subr.mxu0 %v3461
        %4213 = vmatpush1.msra.mxu0 %v3460
        %4214 = vmatprep.subr.mxu0 %v3467
        %4215 = vmatpush1.msra.mxu0 %v3466
        %4216 = vmatprep.subr.mxu0 %v3473
        %4217 = vmatpush1.msra.mxu0 %v3472
        %4218 = vmatprep.subr.mxu0 %v3479
        %4219 = vmatpush1.msra.mxu0 %v3478
        %4220 = vmatprep.subr.mxu0 %v3485
        %4221 = vmatpush1.msra.mxu0 %v3484
        %4222 = vmatprep.subr.mxu0 %v3491
        %4223 = vmatpush1.msra.mxu0 %v3490
        %4224 = vmatprep.subr.mxu0 %v3497
        %4225 = vmatpush1.msra.mxu0 %v3496
        %4226 = vmatprep.subr.mxu0 %v3503
        %4227 = vmatpush1.msra.mxu0 %v3502
        %4228 = vmatprep.subr.mxu0 %v3509
        %4229 = vmatpush1.msra.mxu0 %v3508
        %4230 = vmatprep.subr.mxu0 %v3515
        %4231 = vmatpush1.msra.mxu0 %v3514
        %4232 = vmatprep.subr.mxu0 %v3521
        %4233 = vmatpush1.msra.mxu0 %v3520
        %4234 = vmatprep.subr.mxu0 %v3527
        %4235 = vmatpush1.msra.mxu0 %v3526
        %4236 = vmatprep.subr.mxu0 %v3533
        %4237 = vmatpush1.msra.mxu0 %v3532
        %4238 = vmatprep.subr.mxu0 %v3539
        %4239 = vmatpush1.msra.mxu0 %v3538
        %4240 = vmatprep.subr.mxu0 %v3545
        %4241 = vmatpush1.msra.mxu0 %v3544
        %4242 = vmatprep.subr.mxu0 %v3551
        %4243 = vmatpush1.msra.mxu0 %v3550
        %4244 = vmatprep.subr.mxu0 %v3557
        %4245 = vmatpush1.msra.mxu0 %v3556
        %4246 = vmatprep.subr.mxu0 %v3563
        %4247 = vmatpush1.msra.mxu0 %v3562
        %4248 = vmatprep.mubr.f32.mxu0 %v2913
        %4249 = vmatmul.mubr.f32.gmra.mrb[0].mxu0 %v2912
        %v4250 = vpop.f32.mrb[0].mxu0
        %v4251 = vadd.f32 %v4180, %v4250
        %v4252 = vpop.f32.mrb[0].mxu0
        %v4253 = vadd.f32 %v4182, %v4252
        %4254 = vdwg.mxu0
        %4255 = vmatprep.subr.mxu0 %v3187
        %4256 = vmatpush1.msra.mxu0 %v3186
        %4257 = vmatprep.subr.mxu0 %v3193
        %4258 = vmatpush1.msra.mxu0 %v3192
        %4259 = vmatprep.subr.mxu0 %v3199
        %4260 = vmatpush1.msra.mxu0 %v3198
        %4261 = vmatprep.subr.mxu0 %v3205
        %4262 = vmatpush1.msra.mxu0 %v3204
        %4263 = vmatprep.subr.mxu0 %v3211
        %4264 = vmatpush1.msra.mxu0 %v3210
        %4265 = vmatprep.subr.mxu0 %v3217
        %4266 = vmatpush1.msra.mxu0 %v3216
        %4267 = vmatprep.subr.mxu0 %v3223
        %4268 = vmatpush1.msra.mxu0 %v3222
        %4269 = vmatprep.subr.mxu0 %v3229
        %4270 = vmatpush1.msra.mxu0 %v3228
        %4271 = vmatprep.subr.mxu0 %v3235
        %4272 = vmatpush1.msra.mxu0 %v3234
        %4273 = vmatprep.subr.mxu0 %v3241
        %4274 = vmatpush1.msra.mxu0 %v3240
        %4275 = vmatprep.subr.mxu0 %v3247
        %4276 = vmatpush1.msra.mxu0 %v3246
        %4277 = vmatprep.subr.mxu0 %v3253
        %4278 = vmatpush1.msra.mxu0 %v3252
        %4279 = vmatprep.subr.mxu0 %v3259
        %4280 = vmatpush1.msra.mxu0 %v3258
        %4281 = vmatprep.subr.mxu0 %v3265
        %4282 = vmatpush1.msra.mxu0 %v3264
        %4283 = vmatprep.subr.mxu0 %v3271
        %4284 = vmatpush1.msra.mxu0 %v3270
        %4285 = vmatprep.subr.mxu0 %v3277
        %4286 = vmatpush1.msra.mxu0 %v3276
        %4287 = vmatprep.subr.mxu0 %v3283
        %4288 = vmatpush1.msra.mxu0 %v3282
        %4289 = vmatprep.subr.mxu0 %v3289
        %4290 = vmatpush1.msra.mxu0 %v3288
        %4291 = vmatprep.subr.mxu0 %v3295
        %4292 = vmatpush1.msra.mxu0 %v3294
        %4293 = vmatprep.subr.mxu0 %v3301
        %4294 = vmatpush1.msra.mxu0 %v3300
        %4295 = vmatprep.subr.mxu0 %v3307
        %4296 = vmatpush1.msra.mxu0 %v3306
        %4297 = vmatprep.subr.mxu0 %v3313
        %4298 = vmatpush1.msra.mxu0 %v3312
        %4299 = vmatprep.subr.mxu0 %v3319
        %4300 = vmatpush1.msra.mxu0 %v3318
        %4301 = vmatprep.subr.mxu0 %v3325
        %4302 = vmatpush1.msra.mxu0 %v3324
        %4303 = vmatprep.subr.mxu0 %v3331
        %4304 = vmatpush1.msra.mxu0 %v3330
        %4305 = vmatprep.subr.mxu0 %v3337
        %4306 = vmatpush1.msra.mxu0 %v3336
        %4307 = vmatprep.subr.mxu0 %v3343
        %4308 = vmatpush1.msra.mxu0 %v3342
        %4309 = vmatprep.subr.mxu0 %v3349
        %4310 = vmatpush1.msra.mxu0 %v3348
        %4311 = vmatprep.subr.mxu0 %v3355
        %4312 = vmatpush1.msra.mxu0 %v3354
        %4313 = vmatprep.subr.mxu0 %v3361
        %4314 = vmatpush1.msra.mxu0 %v3360
        %4315 = vmatprep.subr.mxu0 %v3367
        %4316 = vmatpush1.msra.mxu0 %v3366
        %4317 = vmatprep.subr.mxu0 %v3373
        %4318 = vmatpush1.msra.mxu0 %v3372
        %4319 = vmatprep.mubr.f32.mxu0 %v2911
        %4320 = vmatmul.mubr.f32.gmra.mrb[0].mxu0 %v2910
        %v4321 = vpop.f32.mrb[0].mxu0
        %v4322 = vadd.f32 %v3967, %v4321
        %v4323 = vpop.f32.mrb[0].mxu0
        %v4324 = vadd.f32 %v3969, %v4323
        %4325 = vdwg.mxu0
        %4326 = vmatprep.subr.mxu0 %v3379
        %4327 = vmatpush1.msra.mxu0 %v3378
        %4328 = vmatprep.subr.mxu0 %v3385
        %4329 = vmatpush1.msra.mxu0 %v3384
        %4330 = vmatprep.subr.mxu0 %v3391
        %4331 = vmatpush1.msra.mxu0 %v3390
        %4332 = vmatprep.subr.mxu0 %v3397
        %4333 = vmatpush1.msra.mxu0 %v3396
        %4334 = vmatprep.subr.mxu0 %v3403
        %4335 = vmatpush1.msra.mxu0 %v3402
        %4336 = vmatprep.subr.mxu0 %v3409
        %4337 = vmatpush1.msra.mxu0 %v3408
        %4338 = vmatprep.subr.mxu0 %v3415
        %4339 = vmatpush1.msra.mxu0 %v3414
        %4340 = vmatprep.subr.mxu0 %v3421
        %4341 = vmatpush1.msra.mxu0 %v3420
        %4342 = vmatprep.subr.mxu0 %v3427
        %4343 = vmatpush1.msra.mxu0 %v3426
        %4344 = vmatprep.subr.mxu0 %v3433
        %4345 = vmatpush1.msra.mxu0 %v3432
        %4346 = vmatprep.subr.mxu0 %v3439
        %4347 = vmatpush1.msra.mxu0 %v3438
        %4348 = vmatprep.subr.mxu0 %v3445
        %4349 = vmatpush1.msra.mxu0 %v3444
        %4350 = vmatprep.subr.mxu0 %v3451
        %4351 = vmatpush1.msra.mxu0 %v3450
        %4352 = vmatprep.subr.mxu0 %v3457
        %4353 = vmatpush1.msra.mxu0 %v3456
        %4354 = vmatprep.subr.mxu0 %v3463
        %4355 = vmatpush1.msra.mxu0 %v3462
        %4356 = vmatprep.subr.mxu0 %v3469
        %4357 = vmatpush1.msra.mxu0 %v3468
        %4358 = vmatprep.subr.mxu0 %v3475
        %4359 = vmatpush1.msra.mxu0 %v3474
        %4360 = vmatprep.subr.mxu0 %v3481
        %4361 = vmatpush1.msra.mxu0 %v3480
        %4362 = vmatprep.subr.mxu0 %v3487
        %4363 = vmatpush1.msra.mxu0 %v3486
        %4364 = vmatprep.subr.mxu0 %v3493
        %4365 = vmatpush1.msra.mxu0 %v3492
        %4366 = vmatprep.subr.mxu0 %v3499
        %4367 = vmatpush1.msra.mxu0 %v3498
        %4368 = vmatprep.subr.mxu0 %v3505
        %4369 = vmatpush1.msra.mxu0 %v3504
        %4370 = vmatprep.subr.mxu0 %v3511
        %4371 = vmatpush1.msra.mxu0 %v3510
        %4372 = vmatprep.subr.mxu0 %v3517
        %4373 = vmatpush1.msra.mxu0 %v3516
        %4374 = vmatprep.subr.mxu0 %v3523
        %4375 = vmatpush1.msra.mxu0 %v3522
        %4376 = vmatprep.subr.mxu0 %v3529
        %4377 = vmatpush1.msra.mxu0 %v3528
        %4378 = vmatprep.subr.mxu0 %v3535
        %4379 = vmatpush1.msra.mxu0 %v3534
        %4380 = vmatprep.subr.mxu0 %v3541
        %4381 = vmatpush1.msra.mxu0 %v3540
        %4382 = vmatprep.subr.mxu0 %v3547
        %4383 = vmatpush1.msra.mxu0 %v3546
        %4384 = vmatprep.subr.mxu0 %v3553
        %4385 = vmatpush1.msra.mxu0 %v3552
        %4386 = vmatprep.subr.mxu0 %v3559
        %4387 = vmatpush1.msra.mxu0 %v3558
        %4388 = vmatprep.subr.mxu0 %v3565
        %4389 = vmatpush1.msra.mxu0 %v3564
        %4390 = vmatprep.mubr.f32.mxu0 %v2913
        %4391 = vmatmul.mubr.f32.gmra.mrb[0].mxu0 %v2912
        %v4392 = vpop.f32.mrb[0].mxu0
        %v4393 = vadd.f32 %v4322, %v4392
        %v4394 = vpop.f32.mrb[0].mxu0
        %v4395 = vadd.f32 %v4324, %v4394
        %4396 = vdwg.mxu0
        %v4397 = vld [vmem:[%s9] sm:$0x3f]
        %v4399 = vlaneseq
        %v4400 = vshrl.u32 %v4399, 7
        %v4401 = vsub.s32 0, %v4400
        %v4402 = vrot.slane %v4397, %v4401
        %v4403 = vlaneseq
        %v4404 = vshrl.u32 %v4403, 7
        %v4405 = vsub.s32 1, %v4404
        %v4406 = vrot.slane %v4397, %v4405
        %v4407 = vlaneseq
        %v4408 = vshrl.u32 %v4407, 7
        %v4409 = vsub.s32 2, %v4408
        %v4410 = vrot.slane %v4397, %v4409
        %v4411 = vlaneseq
        %v4412 = vshrl.u32 %v4411, 7
        %v4413 = vsub.s32 3, %v4412
        %v4414 = vrot.slane %v4397, %v4413
        %v4415 = vlaneseq
        %v4416 = vshrl.u32 %v4415, 7
        %v4417 = vsub.s32 4, %v4416
        %v4418 = vrot.slane %v4397, %v4417
        %v4419 = vlaneseq
        %v4420 = vshrl.u32 %v4419, 7
        %v4421 = vsub.s32 5, %v4420
        %v4422 = vrot.slane %v4397, %v4421
        %v4429 = vadd.f32 %v4109, %v4402
        %v4430 = vadd.f32 %v4111, %v4406
        %v4431 = vadd.f32 %v4251, %v4410
        %v4432 = vadd.f32 %v4253, %v4414
        %v4433 = vadd.f32 %v4393, %v4418
        %v4434 = vadd.f32 %v4395, %v4422
        %v4435 = vmax.f32 %v4429, 0.0
        %v4436 = vmax.f32 %v4430, 0.0
        %v4437 = vmax.f32 %v4431, 0.0
        %v4438 = vmax.f32 %v4432, 0.0
        %v4439 = vmax.f32 %v4433, 0.0
        %v4440 = vmax.f32 %v4434, 0.0
        %v4441 = vld [vmem:[%s10] sm:$0xff]
        %v4442 = vld [vmem:[%s10 + $0x8] sm:$0xff]
        %v4443 = vld [vmem:[%s10 + $0x10] sm:$0xff]
        %v4444 = vld [vmem:[%s10 + $0x18] sm:$0xff]
        %v4445 = vld [vmem:[%s10 + $0x20] sm:$0xff]
        %v4446 = vld [vmem:[%s10 + $0x28] sm:$0xff]
        %v4447 = vld [vmem:[%s10 + $0x30] sm:$0xff]
        %v4448 = vld [vmem:[%s10 + $0x38] sm:$0xff]
        %v4449 = vld [vmem:[%s10 + $0x40] sm:$0xff]
        %v4450 = vld [vmem:[%s10 + $0x48] sm:$0xff]
        %v4451 = vld [vmem:[%s10 + $0x50] sm:$0xff]
        %v4452 = vld [vmem:[%s10 + $0x58] sm:$0xff]
        %v4453 = vld [vmem:[%s10 + $0x60] sm:$0xff]
        %v4454 = vld [vmem:[%s10 + $0x68] sm:$0xff]
        %v4455 = vld [vmem:[%s10 + $0x70] sm:$0xff]
        %v4456 = vld [vmem:[%s10 + $0x78] sm:$0xff]
        %v4457 = vld [vmem:[%s10 + $0x80] sm:$0xff]
        %v4458 = vld [vmem:[%s10 + $0x88] sm:$0xff]
        %v4459 = vld [vmem:[%s10 + $0x90] sm:$0xff]
        %v4460 = vld [vmem:[%s10 + $0x98] sm:$0xff]
        %v4461 = vld [vmem:[%s10 + $0xa0] sm:$0xff]
        %v4462 = vld [vmem:[%s10 + $0xa8] sm:$0xff]
        %v4463 = vld [vmem:[%s10 + $0xb0] sm:$0xff]
        %v4464 = vld [vmem:[%s10 + $0xb8] sm:$0xff]
        %v4465 = vld [vmem:[%s10 + $0xc0] sm:$0xff]
        %v4466 = vld [vmem:[%s10 + $0xc8] sm:$0xff]
        %v4467 = vld [vmem:[%s10 + $0xd0] sm:$0xff]
        %v4468 = vld [vmem:[%s10 + $0xd8] sm:$0xff]
        %v4469 = vld [vmem:[%s10 + $0xe0] sm:$0xff]
        %v4470 = vld [vmem:[%s10 + $0xe8] sm:$0xff]
        %v4471 = vld [vmem:[%s10 + $0xf0] sm:$0xff]
        %v4472 = vld [vmem:[%s10 + $0xf8] sm:$0xff]
        %v4473 = vld [vmem:[%s10 + $0x100] sm:$0xff]
        %v4474 = vld [vmem:[%s10 + $0x108] sm:$0xff]
        %v4475 = vld [vmem:[%s10 + $0x110] sm:$0xff]
        %v4476 = vld [vmem:[%s10 + $0x118] sm:$0xff]
        %v4477 = vld [vmem:[%s10 + $0x120] sm:$0xff]
        %v4478 = vld [vmem:[%s10 + $0x128] sm:$0xff]
        %v4479 = vld [vmem:[%s10 + $0x130] sm:$0xff]
        %v4480 = vld [vmem:[%s10 + $0x138] sm:$0xff]
        %v4481 = vld [vmem:[%s10 + $0x140] sm:$0xff]
        %v4482 = vld [vmem:[%s10 + $0x148] sm:$0xff]
        %v4483 = vld [vmem:[%s10 + $0x150] sm:$0xff]
        %v4484 = vld [vmem:[%s10 + $0x158] sm:$0xff]
        %v4485 = vld [vmem:[%s10 + $0x160] sm:$0xff]
        %v4486 = vld [vmem:[%s10 + $0x168] sm:$0xff]
        %v4487 = vld [vmem:[%s10 + $0x170] sm:$0xff]
        %v4488 = vld [vmem:[%s10 + $0x178] sm:$0xff]
        %v4489 = vld [vmem:[%s10 + $0x180] sm:$0xff]
        %v4490 = vld [vmem:[%s10 + $0x188] sm:$0xff]
        %v4491 = vld [vmem:[%s10 + $0x190] sm:$0xff]
        %v4492 = vld [vmem:[%s10 + $0x198] sm:$0xff]
        %v4493 = vld [vmem:[%s10 + $0x1a0] sm:$0xff]
        %v4494 = vld [vmem:[%s10 + $0x1a8] sm:$0xff]
        %v4495 = vld [vmem:[%s10 + $0x1b0] sm:$0xff]
        %v4496 = vld [vmem:[%s10 + $0x1b8] sm:$0xff]
        %v4497 = vld [vmem:[%s10 + $0x1c0] sm:$0xff]
        %v4498 = vld [vmem:[%s10 + $0x1c8] sm:$0xff]
        %v4499 = vld [vmem:[%s10 + $0x1d0] sm:$0xff]
        %v4500 = vld [vmem:[%s10 + $0x1d8] sm:$0xff]
        %v4501 = vld [vmem:[%s10 + $0x1e0] sm:$0xff]
        %v4502 = vld [vmem:[%s10 + $0x1e8] sm:$0xff]
        %v4503 = vld [vmem:[%s10 + $0x1f0] sm:$0xff]
        %v4504 = vld [vmem:[%s10 + $0x1f8] sm:$0xff]
        %v4505 = vld [vmem:[%s10 + $0x200] sm:$0xff]
        %v4506 = vld [vmem:[%s10 + $0x208] sm:$0xff]
        %v4507 = vld [vmem:[%s10 + $0x210] sm:$0xff]
        %v4508 = vld [vmem:[%s10 + $0x218] sm:$0xff]
        %v4509 = vld [vmem:[%s10 + $0x220] sm:$0xff]
        %v4510 = vld [vmem:[%s10 + $0x228] sm:$0xff]
        %v4511 = vld [vmem:[%s10 + $0x230] sm:$0xff]
        %v4512 = vld [vmem:[%s10 + $0x238] sm:$0xff]
        %v4513 = vld [vmem:[%s10 + $0x240] sm:$0xff]
        %v4514 = vld [vmem:[%s10 + $0x248] sm:$0xff]
        %v4515 = vld [vmem:[%s10 + $0x250] sm:$0xff]
        %v4516 = vld [vmem:[%s10 + $0x258] sm:$0xff]
        %v4517 = vld [vmem:[%s10 + $0x260] sm:$0xff]
        %v4518 = vld [vmem:[%s10 + $0x268] sm:$0xff]
        %v4519 = vld [vmem:[%s10 + $0x270] sm:$0xff]
        %v4520 = vld [vmem:[%s10 + $0x278] sm:$0xff]
        %v4521 = vld [vmem:[%s10 + $0x280] sm:$0xff]
        %v4522 = vld [vmem:[%s10 + $0x288] sm:$0xff]
        %v4523 = vld [vmem:[%s10 + $0x290] sm:$0xff]
        %v4524 = vld [vmem:[%s10 + $0x298] sm:$0xff]
        %v4525 = vld [vmem:[%s10 + $0x2a0] sm:$0xff]
        %v4526 = vld [vmem:[%s10 + $0x2a8] sm:$0xff]
        %v4527 = vld [vmem:[%s10 + $0x2b0] sm:$0xff]
        %v4528 = vld [vmem:[%s10 + $0x2b8] sm:$0xff]
        %v4529 = vld [vmem:[%s10 + $0x2c0] sm:$0xff]
        %v4530 = vld [vmem:[%s10 + $0x2c8] sm:$0xff]
        %v4531 = vld [vmem:[%s10 + $0x2d0] sm:$0xff]
        %v4532 = vld [vmem:[%s10 + $0x2d8] sm:$0xff]
        %v4533 = vld [vmem:[%s10 + $0x2e0] sm:$0xff]
        %v4534 = vld [vmem:[%s10 + $0x2e8] sm:$0xff]
        %v4535 = vld [vmem:[%s10 + $0x2f0] sm:$0xff]
        %v4536 = vld [vmem:[%s10 + $0x2f8] sm:$0xff]
        %v4537 = vld [vmem:[%s11] sm:$0x1]
        %v4539 = vlaneseq
        %v4540 = vshrl.u32 %v4539, 7
        %v4541 = vsub.s32 0, %v4540
        %v4542 = vrot.slane %v4537, %v4541
        %4544 = vmatprep.subr.mxu0 0.0
        %4545 = vmatpush1.msra.mxu0 %v4441
        %4546 = vmatprep.subr.mxu0 0.0
        %4547 = vmatpush1.msra.mxu0 %v4442
        %4548 = vmatprep.subr.mxu0 0.0
        %4549 = vmatpush1.msra.mxu0 %v4443
        %4550 = vmatprep.subr.mxu0 0.0
        %4551 = vmatpush1.msra.mxu0 %v4444
        %4552 = vmatprep.subr.mxu0 0.0
        %4553 = vmatpush1.msra.mxu0 %v4445
        %4554 = vmatprep.subr.mxu0 0.0
        %4555 = vmatpush1.msra.mxu0 %v4446
        %4556 = vmatprep.subr.mxu0 0.0
        %4557 = vmatpush1.msra.mxu0 %v4447
        %4558 = vmatprep.subr.mxu0 0.0
        %4559 = vmatpush1.msra.mxu0 %v4448
        %4560 = vmatprep.subr.mxu0 0.0
        %4561 = vmatpush1.msra.mxu0 %v4449
        %4562 = vmatprep.subr.mxu0 0.0
        %4563 = vmatpush1.msra.mxu0 %v4450
        %4564 = vmatprep.subr.mxu0 0.0
        %4565 = vmatpush1.msra.mxu0 %v4451
        %4566 = vmatprep.subr.mxu0 0.0
        %4567 = vmatpush1.msra.mxu0 %v4452
        %4568 = vmatprep.subr.mxu0 0.0
        %4569 = vmatpush1.msra.mxu0 %v4453
        %4570 = vmatprep.subr.mxu0 0.0
        %4571 = vmatpush1.msra.mxu0 %v4454
        %4572 = vmatprep.subr.mxu0 0.0
        %4573 = vmatpush1.msra.mxu0 %v4455
        %4574 = vmatprep.subr.mxu0 0.0
        %4575 = vmatpush1.msra.mxu0 %v4456
        %4576 = vmatprep.subr.mxu0 0.0
        %4577 = vmatpush1.msra.mxu0 %v4457
        %4578 = vmatprep.subr.mxu0 0.0
        %4579 = vmatpush1.msra.mxu0 %v4458
        %4580 = vmatprep.subr.mxu0 0.0
        %4581 = vmatpush1.msra.mxu0 %v4459
        %4582 = vmatprep.subr.mxu0 0.0
        %4583 = vmatpush1.msra.mxu0 %v4460
        %4584 = vmatprep.subr.mxu0 0.0
        %4585 = vmatpush1.msra.mxu0 %v4461
        %4586 = vmatprep.subr.mxu0 0.0
        %4587 = vmatpush1.msra.mxu0 %v4462
        %4588 = vmatprep.subr.mxu0 0.0
        %4589 = vmatpush1.msra.mxu0 %v4463
        %4590 = vmatprep.subr.mxu0 0.0
        %4591 = vmatpush1.msra.mxu0 %v4464
        %4592 = vmatprep.subr.mxu0 0.0
        %4593 = vmatpush1.msra.mxu0 %v4465
        %4594 = vmatprep.subr.mxu0 0.0
        %4595 = vmatpush1.msra.mxu0 %v4466
        %4596 = vmatprep.subr.mxu0 0.0
        %4597 = vmatpush1.msra.mxu0 %v4467
        %4598 = vmatprep.subr.mxu0 0.0
        %4599 = vmatpush1.msra.mxu0 %v4468
        %4600 = vmatprep.subr.mxu0 0.0
        %4601 = vmatpush1.msra.mxu0 %v4469
        %4602 = vmatprep.subr.mxu0 0.0
        %4603 = vmatpush1.msra.mxu0 %v4470
        %4604 = vmatprep.subr.mxu0 0.0
        %4605 = vmatpush1.msra.mxu0 %v4471
        %4606 = vmatprep.subr.mxu0 0.0
        %4607 = vmatpush1.msra.mxu0 %v4472
        %4608 = vmatprep.mubr.f32.mxu0 %v4436
        %4609 = vmatmul.mubr.f32.gmra.mrb[0].mxu0 %v4435
        %v4610 = vpop.f32.mrb[0].mxu0
        %v4611 = vadd.f32 %v4542, %v4610
        %v4612 = vpop.f32.mrb[0].mxu0
        %4613 = vdwg.mxu0
        %4614 = vmatprep.subr.mxu0 0.0
        %4615 = vmatpush1.msra.mxu0 %v4473
        %4616 = vmatprep.subr.mxu0 0.0
        %4617 = vmatpush1.msra.mxu0 %v4474
        %4618 = vmatprep.subr.mxu0 0.0
        %4619 = vmatpush1.msra.mxu0 %v4475
        %4620 = vmatprep.subr.mxu0 0.0
        %4621 = vmatpush1.msra.mxu0 %v4476
        %4622 = vmatprep.subr.mxu0 0.0
        %4623 = vmatpush1.msra.mxu0 %v4477
        %4624 = vmatprep.subr.mxu0 0.0
        %4625 = vmatpush1.msra.mxu0 %v4478
        %4626 = vmatprep.subr.mxu0 0.0
        %4627 = vmatpush1.msra.mxu0 %v4479
        %4628 = vmatprep.subr.mxu0 0.0
        %4629 = vmatpush1.msra.mxu0 %v4480
        %4630 = vmatprep.subr.mxu0 0.0
        %4631 = vmatpush1.msra.mxu0 %v4481
        %4632 = vmatprep.subr.mxu0 0.0
        %4633 = vmatpush1.msra.mxu0 %v4482
        %4634 = vmatprep.subr.mxu0 0.0
        %4635 = vmatpush1.msra.mxu0 %v4483
        %4636 = vmatprep.subr.mxu0 0.0
        %4637 = vmatpush1.msra.mxu0 %v4484
        %4638 = vmatprep.subr.mxu0 0.0
        %4639 = vmatpush1.msra.mxu0 %v4485
        %4640 = vmatprep.subr.mxu0 0.0
        %4641 = vmatpush1.msra.mxu0 %v4486
        %4642 = vmatprep.subr.mxu0 0.0
        %4643 = vmatpush1.msra.mxu0 %v4487
        %4644 = vmatprep.subr.mxu0 0.0
        %4645 = vmatpush1.msra.mxu0 %v4488
        %4646 = vmatprep.subr.mxu0 0.0
        %4647 = vmatpush1.msra.mxu0 %v4489
        %4648 = vmatprep.subr.mxu0 0.0
        %4649 = vmatpush1.msra.mxu0 %v4490
        %4650 = vmatprep.subr.mxu0 0.0
        %4651 = vmatpush1.msra.mxu0 %v4491
        %4652 = vmatprep.subr.mxu0 0.0
        %4653 = vmatpush1.msra.mxu0 %v4492
        %4654 = vmatprep.subr.mxu0 0.0
        %4655 = vmatpush1.msra.mxu0 %v4493
        %4656 = vmatprep.subr.mxu0 0.0
        %4657 = vmatpush1.msra.mxu0 %v4494
        %4658 = vmatprep.subr.mxu0 0.0
        %4659 = vmatpush1.msra.mxu0 %v4495
        %4660 = vmatprep.subr.mxu0 0.0
        %4661 = vmatpush1.msra.mxu0 %v4496
        %4662 = vmatprep.subr.mxu0 0.0
        %4663 = vmatpush1.msra.mxu0 %v4497
        %4664 = vmatprep.subr.mxu0 0.0
        %4665 = vmatpush1.msra.mxu0 %v4498
        %4666 = vmatprep.subr.mxu0 0.0
        %4667 = vmatpush1.msra.mxu0 %v4499
        %4668 = vmatprep.subr.mxu0 0.0
        %4669 = vmatpush1.msra.mxu0 %v4500
        %4670 = vmatprep.subr.mxu0 0.0
        %4671 = vmatpush1.msra.mxu0 %v4501
        %4672 = vmatprep.subr.mxu0 0.0
        %4673 = vmatpush1.msra.mxu0 %v4502
        %4674 = vmatprep.subr.mxu0 0.0
        %4675 = vmatpush1.msra.mxu0 %v4503
        %4676 = vmatprep.subr.mxu0 0.0
        %4677 = vmatpush1.msra.mxu0 %v4504
        %4678 = vmatprep.mubr.f32.mxu0 %v4438
        %4679 = vmatmul.mubr.f32.gmra.mrb[0].mxu0 %v4437
        %v4680 = vpop.f32.mrb[0].mxu0
        %v4681 = vadd.f32 %v4611, %v4680
        %v4682 = vpop.f32.mrb[0].mxu0
        %4683 = vdwg.mxu0
        %4684 = vmatprep.subr.mxu0 0.0
        %4685 = vmatpush1.msra.mxu0 %v4505
        %4686 = vmatprep.subr.mxu0 0.0
        %4687 = vmatpush1.msra.mxu0 %v4506
        %4688 = vmatprep.subr.mxu0 0.0
        %4689 = vmatpush1.msra.mxu0 %v4507
        %4690 = vmatprep.subr.mxu0 0.0
        %4691 = vmatpush1.msra.mxu0 %v4508
        %4692 = vmatprep.subr.mxu0 0.0
        %4693 = vmatpush1.msra.mxu0 %v4509
        %4694 = vmatprep.subr.mxu0 0.0
        %4695 = vmatpush1.msra.mxu0 %v4510
        %4696 = vmatprep.subr.mxu0 0.0
        %4697 = vmatpush1.msra.mxu0 %v4511
        %4698 = vmatprep.subr.mxu0 0.0
        %4699 = vmatpush1.msra.mxu0 %v4512
        %4700 = vmatprep.subr.mxu0 0.0
        %4701 = vmatpush1.msra.mxu0 %v4513
        %4702 = vmatprep.subr.mxu0 0.0
        %4703 = vmatpush1.msra.mxu0 %v4514
        %4704 = vmatprep.subr.mxu0 0.0
        %4705 = vmatpush1.msra.mxu0 %v4515
        %4706 = vmatprep.subr.mxu0 0.0
        %4707 = vmatpush1.msra.mxu0 %v4516
        %4708 = vmatprep.subr.mxu0 0.0
        %4709 = vmatpush1.msra.mxu0 %v4517
        %4710 = vmatprep.subr.mxu0 0.0
        %4711 = vmatpush1.msra.mxu0 %v4518
        %4712 = vmatprep.subr.mxu0 0.0
        %4713 = vmatpush1.msra.mxu0 %v4519
        %4714 = vmatprep.subr.mxu0 0.0
        %4715 = vmatpush1.msra.mxu0 %v4520
        %4716 = vmatprep.subr.mxu0 0.0
        %4717 = vmatpush1.msra.mxu0 %v4521
        %4718 = vmatprep.subr.mxu0 0.0
        %4719 = vmatpush1.msra.mxu0 %v4522
        %4720 = vmatprep.subr.mxu0 0.0
        %4721 = vmatpush1.msra.mxu0 %v4523
        %4722 = vmatprep.subr.mxu0 0.0
        %4723 = vmatpush1.msra.mxu0 %v4524
        %4724 = vmatprep.subr.mxu0 0.0
        %4725 = vmatpush1.msra.mxu0 %v4525
        %4726 = vmatprep.subr.mxu0 0.0
        %4727 = vmatpush1.msra.mxu0 %v4526
        %4728 = vmatprep.subr.mxu0 0.0
        %4729 = vmatpush1.msra.mxu0 %v4527
        %4730 = vmatprep.subr.mxu0 0.0
        %4731 = vmatpush1.msra.mxu0 %v4528
        %4732 = vmatprep.subr.mxu0 0.0
        %4733 = vmatpush1.msra.mxu0 %v4529
        %4734 = vmatprep.subr.mxu0 0.0
        %4735 = vmatpush1.msra.mxu0 %v4530
        %4736 = vmatprep.subr.mxu0 0.0
        %4737 = vmatpush1.msra.mxu0 %v4531
        %4738 = vmatprep.subr.mxu0 0.0
        %4739 = vmatpush1.msra.mxu0 %v4532
        %4740 = vmatprep.subr.mxu0 0.0
        %4741 = vmatpush1.msra.mxu0 %v4533
        %4742 = vmatprep.subr.mxu0 0.0
        %4743 = vmatpush1.msra.mxu0 %v4534
        %4744 = vmatprep.subr.mxu0 0.0
        %4745 = vmatpush1.msra.mxu0 %v4535
        %4746 = vmatprep.subr.mxu0 0.0
        %4747 = vmatpush1.msra.mxu0 %v4536
        %4748 = vmatprep.mubr.f32.mxu0 %v4440
        %4749 = vmatmul.mubr.f32.gmra.mrb[0].mxu0 %v4439
        %v4750 = vpop.f32.mrb[0].mxu0
        %v4751 = vadd.f32 %v4681, %v4750
        %v4752 = vpop.f32.mrb[0].mxu0
        %4753 = vdwg.mxu0
        %v4754 = vmul.f32 %v4751, %v4751
        %4755 = vadd.xlane.f32.xlu0 %v4754
        %v4756 = vpop.xlane.xlu0 %4755
        %v4757 = vmax.f32 %v4756, 1e-24
        %v4758 = vrsqrt.pop %v4757
        %v4759 = vmul.f32 %v4751, %v4758
        %4760 = vst [vmem:[%s406] sm:$0xff] %v4759
        %s4761 = sand.u32 %s291, 1
        %s4762 = scalar_lea.sflag [#allocation3], %s4761
        %s4763 = sand.u32 %s291, 1
        %s4764 = smul.addr %s4763, 8
        %s4765 = scalar_lea.vmem [#allocation2], %s4764
        // Predicated region
        $region69: #{patchwise_detector_with_freq.1} parent=67 // pred_check
          %p4766 = pneg %p301
        $region70: #{patchwise_detector_with_freq.1} parent=67 // pred_check_branch
          %4768 = sbr.rel (%p4766) target = $region72
        $region71: #{patchwise_detector_with_freq.1} parent=67 // pred_region
          %s4770 = ssub.s32 128, 128
          %4771 = vsyncadd %s4762, %s4770
          %s4772 = smul.addr %s26, 128
          %s4773 = scalar_lea.hbm %s12, %s4772
          %s4775 = sshll.u32 %s4765, 4
          %s4776 = int_to_ptr.vmem [resolvable:$true] %s4775
          %4778 = dma.vmem_to_hbm [thread:$0]  %s4776, 128, %s4773, %s4762
        $region72: #{patchwise_detector_with_freq.1} parent=67 // pred_fallthru
          _
      $region68: #{patchwise_detector_with_freq.1} parent=5 // pred_fallthru
        _
      %p4779 = scmp.le.s32.totalorder 2, %s21
      // Predicated region
      $region73: #{patchwise_detector_with_freq.1} parent=5 // pred_check
        %p4780 = pneg %p4779
      $region74: #{patchwise_detector_with_freq.1} parent=5 // pred_check_branch
        %4782 = sbr.rel (%p4780) target = $region76
      $region75: #{patchwise_detector_with_freq.1} parent=5 // pred_region
        %s4783 = ssub.s32 %s21, 2
        // Predicated region
        $region77: #{patchwise_detector_with_freq.1} parent=75 // pred_check
          %p4784 = pneg %p307
        $region78: #{patchwise_detector_with_freq.1} parent=75 // pred_check_branch
          %4786 = sbr.rel (%p4784) target = $region80
        $region79: #{patchwise_detector_with_freq.1} parent=75 // pred_region
          %s4787 = sand.u32 %s292, 1
          %s4788 = scalar_lea.sflag [#allocation3], %s4787
          %s4789 = sand.u32 %s292, 1
          %s4790 = smul.addr %s4789, 8
          %s4791 = scalar_lea.vmem [#allocation2], %s4790
          %4792 = dma.done %s4788, 128
        $region80: #{patchwise_detector_with_freq.1} parent=75 // pred_fallthru
          _
      $region76: #{patchwise_detector_with_freq.1} parent=5 // pred_fallthru
        _
    $region6: #{patchwise_detector_with_freq.1} parent=1 // loop_footer
      %s25 = sadd.s32 1, %s21
    $region7: #{patchwise_detector_with_freq.1} parent=1 // loop_footer_branch
      %20 = sbr.rel target = $region3
    $region8: #{patchwise_detector_with_freq.1} parent=1 // loop_exit
      _
    %4793 = vsyncpa [#allocation3], 1
    %s4794 = scalar_lea.sflag [#allocation3], 1
    %4795 = vsyncpa %s4794, 1

</llo_original>
